<compile_context>
chip_gen: v5e
topology: v5e:2x2
jax: 0.10.0
libtpu: 0.0.40
codegen_flags: <defaults>
</compile_context>

<pallas_src>
import functools

import jax
import jax.numpy as jnp
import numpy as np
from jax.experimental import pallas as pl
from jax.experimental.pallas import tpu as pltpu

LN_EPS = 1e-5


def _round_up(x, m):
    return ((x + m - 1) // m) * m


def _masked_layernorm(x, g, b, true_d, lane_mask):
    """LayerNorm over the last dim where only the first `true_d` lanes are real.

    Padded lanes of `x` are zero and padded lanes of g/b are zero, so the output's
    padded lanes are zero too (keeps the zero-pad invariant through the network).
    """
    inv_d = 1.0 / true_d
    mu = jnp.sum(x, axis=-1, keepdims=True) * inv_d          # pad lanes contribute 0
    diff = (x - mu) * lane_mask
    var = jnp.sum(diff * diff, axis=-1, keepdims=True) * inv_d
    return (x - mu) * jax.lax.rsqrt(var + LN_EPS) * g + b


def _silu(x):
    return x * jax.nn.sigmoid(x)


# ---------------------------------------------------------------------------
# Fused Pallas kernel: single invocation, all layers unrolled, lane-dense data
# ---------------------------------------------------------------------------
def fused_transformer_kernel(
    x_ref,
    ln1_g_ref, ln1_b_ref, wqkv_ref, bqkv_ref, wo_ref, bo_ref,
    ln2_g_ref, ln2_b_ref, w1_ref, b1_ref, w2_ref, b2_ref,
    fln_g_ref, fln_b_ref, wc1_ref, bc1_ref, wc2_ref, bc2_ref,
    o_ref,
    *, n_layers, n_heads, d_key, d_model, batch, seq, d_pad, k_pad,
):
    H, D, Dp, Kp = n_heads, d_model, d_pad, k_pad
    B, S = batch, seq
    M = B * S
    scale = 1.0 / (d_key ** 0.5)          # reference scale uses the TRUE d_key
    bf16 = jnp.bfloat16

    lane = jax.lax.broadcasted_iota(jnp.int32, (1, Dp), 1)
    lane_mask = (lane < D).astype(jnp.float32)

    q_off = 0
    k_off = H * Kp
    v_off = 2 * H * Kp

    x = x_ref[...]                         # (M, Dp) f32, padded lanes are zero

    for l in range(n_layers):              # static unroll: all weights already in VMEM
        # ---------------- attention sublayer ----------------
        xn = _masked_layernorm(x, ln1_g_ref[l], ln1_b_ref[l], D, lane_mask)
        qkv = jnp.dot(xn.astype(bf16), wqkv_ref[l],
                      preferred_element_type=jnp.float32) + bqkv_ref[l]   # (M, C) f32

        z_heads = []
        for h in range(H):                 # 128-aligned lane slabs: whole-vreg slices
            q = qkv[:, q_off + h * Kp: q_off + (h + 1) * Kp].reshape(B, S, Kp)
            k = qkv[:, k_off + h * Kp: k_off + (h + 1) * Kp].reshape(B, S, Kp)
            v = qkv[:, v_off + h * Dp: v_off + (h + 1) * Dp].reshape(B, S, Dp)
            # zero-padded lanes contribute 0 to the contraction -> exact scores
            s = jnp.einsum("bqd,bkd->bqk", q.astype(bf16), k.astype(bf16),
                           preferred_element_type=jnp.float32) * scale
            s = s - jnp.max(s, axis=-1, keepdims=True)
            e = jnp.exp(s)
            p = e * pl.reciprocal(jnp.sum(e, axis=-1, keepdims=True), approx=True)
            z = jnp.einsum("bqk,bkd->bqd", p.astype(bf16), v.astype(bf16),
                           preferred_element_type=jnp.float32)
            z_heads.append(z.reshape(M, Dp))
        z_all = jnp.concatenate(z_heads, axis=-1)      # (M, H*Dp), aligned lane concat
        attn = jnp.dot(z_all.astype(bf16), wo_ref[l],
                       preferred_element_type=jnp.float32) + bo_ref[l]
        x = x + attn

        # ---------------- MLP sublayer ----------------
        xn2 = _masked_layernorm(x, ln2_g_ref[l], ln2_b_ref[l], D, lane_mask)
        h1 = _silu(jnp.dot(xn2.astype(bf16), w1_ref[l],
                           preferred_element_type=jnp.float32) + b1_ref[l])
        x = x + jnp.dot(h1.astype(bf16), w2_ref[l],
                        preferred_element_type=jnp.float32) + b2_ref[l]

    # ---------------- classifier head (f32: tiny, stays close to f32 reference) ----
    pooled = jnp.mean(x.reshape(B, S, Dp), axis=1)     # (B, Dp) == torch.mean(., 1)
    pn = _masked_layernorm(pooled, fln_g_ref[...], fln_b_ref[...], D, lane_mask)
    hc = _silu(jnp.dot(pn, wc1_ref[...], preferred_element_type=jnp.float32)
               + bc1_ref[...])
    o_ref[...] = (jnp.dot(hc, wc2_ref[...], preferred_element_type=jnp.float32)
                  + bc2_ref[...])


# ---------------------------------------------------------------------------
# Weight packing: zero lane-padding to 128, head-aligned QKV slabs, bf16 weights
# ---------------------------------------------------------------------------
_LAYER_NAMES = ("ln1_g", "ln1_b", "wqkv", "bqkv", "wo", "bo",
                "ln2_g", "ln2_b", "w1", "b1", "w2", "b2")
_HEAD_NAMES = ("fln_g", "fln_b", "wc1", "bc1", "wc2", "bc2")
_BF16_LAYER = ("wqkv", "wo", "w1", "w2")     # MXU operands -> bf16


def pack_params(params, *, n_heads, d_key, d_model, mlp_factor, n_classes):
    H, Dk, D = n_heads, d_key, d_model
    Dp = _round_up(D, 128)
    Kp = _round_up(Dk, 128)
    Fp = _round_up(mlp_factor * D, 128)
    Np = _round_up(n_classes, 128)
    C = 2 * H * Kp + H * Dp                  # [Q slabs | K slabs | V slabs]

    def pad2(w, rows, cols):
        return jnp.zeros((rows, cols), jnp.float32).at[:w.shape[0], :w.shape[1]].set(w)

    def pack_layer(lp):
        wqkv = jnp.zeros((Dp, C), jnp.float32)
        bqkv = jnp.zeros((1, C), jnp.float32)
        wo = jnp.zeros((H * Dp, Dp), jnp.float32)
        for h in range(H):
            qc, kc, vc = h * Kp, H * Kp + h * Kp, 2 * H * Kp + h * Dp
            wqkv = wqkv.at[:D, qc:qc + Dk].set(lp["wq"][h])
            bqkv = bqkv.at[:, qc:qc + Dk].set(lp["bq"][h])
            wqkv = wqkv.at[:D, kc:kc + Dk].set(lp["wk"][h])
            bqkv = bqkv.at[:, kc:kc + Dk].set(lp["bk"][h])
            wqkv = wqkv.at[:D, vc:vc + D].set(lp["wv"][h])
            bqkv = bqkv.at[:, vc:vc + D].set(lp["bv"][h])
            wo = wo.at[h * Dp:h * Dp + D, :D].set(lp["wo"][h * D:(h + 1) * D, :])
        return {
            "ln1_g": pad2(lp["ln1_g"], 1, Dp), "ln1_b": pad2(lp["ln1_b"], 1, Dp),
            "wqkv": wqkv, "bqkv": bqkv,
            "wo": wo, "bo": pad2(lp["bo"], 1, Dp),
            "ln2_g": pad2(lp["ln2_g"], 1, Dp), "ln2_b": pad2(lp["ln2_b"], 1, Dp),
            "w1": pad2(lp["w1"], Dp, Fp), "b1": pad2(lp["b1"], 1, Fp),
            "w2": pad2(lp["w2"], Fp, Dp), "b2": pad2(lp["b2"], 1, Dp),
        }

    packed = [pack_layer(lp) for lp in params["layers"]]
    stacked = {}
    for name in _LAYER_NAMES:
        arr = jnp.stack([d[name] for d in packed])
        if name in _BF16_LAYER:
            arr = arr.astype(jnp.bfloat16)
        stacked[name] = arr

    head = {
        "fln_g": pad2(params["fln_g"], 1, Dp), "fln_b": pad2(params["fln_b"], 1, Dp),
        "wc1": pad2(params["wc1"], Dp, Dp), "bc1": pad2(params["bc1"], 1, Dp),
        "wc2": pad2(params["wc2"], Dp, Np), "bc2": pad2(params["bc2"], 1, Np),
    }
    dims = dict(d_pad=Dp, k_pad=Kp, f_pad=Fp, n_pad=Np, qkv_cols=C)
    return stacked, head, dims


# ---------------------------------------------------------------------------
# Wrapper
# ---------------------------------------------------------------------------
def transformer_classifier(tokens, params, *, n_heads, d_key, mlp_factor,
                           n_layers, n_classes):
    B, S = tokens.shape
    D = params["emb"].shape[-1]

    stacked, head, dims = pack_params(params, n_heads=n_heads, d_key=d_key,
                                      d_model=D, mlp_factor=mlp_factor,
                                      n_classes=n_classes)
    Dp, Kp, Fp, Np = dims["d_pad"], dims["k_pad"], dims["f_pad"], dims["n_pad"]

    # Embedding gather stays as an XLA gather (negligible at this size), lane-padded.
    # TODO(synk): fuse the gather (scalar-prefetched tokens + pl.Element row gather)
    # once B*S*D is large enough for the extra HBM round-trip to matter.
    x = params["emb"][tokens].reshape(B * S, D)
    x = jnp.zeros((B * S, Dp), jnp.float32).at[:, :D].set(x)

    layer_args = [stacked[n] for n in _LAYER_NAMES]
    head_args = [head[n] for n in _HEAD_NAMES]

    def full_spec(arr):
        nd = arr.ndim
        return pl.BlockSpec(arr.shape, lambda i, nd=nd: (0,) * nd)

    in_specs = [full_spec(a) for a in [x] + layer_args + head_args]

    kernel = functools.partial(
        fused_transformer_kernel, n_layers=n_layers, n_heads=n_heads, d_key=d_key,
        d_model=D, batch=B, seq=S, d_pad=Dp, k_pad=Kp)

    # Advisory cost estimate for XLA scheduling around the custom call.
    M = B * S
    C = dims["qkv_cols"]
    flops_layer = (2 * M * Dp * C
                   + n_heads * (2 * B * S * S * Kp + 2 * B * S * S * Dp)
                   + 2 * M * (n_heads * Dp) * Dp
                   + 2 * M * Dp * Fp + 2 * M * Fp * Dp)
    flops = n_layers * flops_layer + 2 * B * Dp * Dp + 2 * B * Dp * Np
    transcendentals = n_layers * (B * n_heads * S * S + M * Fp) + B * Dp
    in_bytes = int(x.nbytes) + sum(int(a.nbytes) for a in layer_args + head_args)
    bytes_accessed = in_bytes + B * Np * 4
    cost = pl.CostEstimate(flops=int(flops), transcendentals=int(transcendentals),
                           bytes_accessed=int(bytes_accessed))

    # Footprint-derived VMEM request (v7x has only 64 MiB of VMEM per TensorCore).
    vmem_limit = int(min(64 * 1024 * 1024, max(4 * 1024 * 1024, 2 * bytes_accessed)))

    out_padded = pl.pallas_call(
        kernel,
        out_shape=jax.ShapeDtypeStruct((B, Np), jnp.float32),
        grid=(1,),                                   # single fused invocation
        in_specs=in_specs,
        out_specs=pl.BlockSpec((B, Np), lambda i: (0, 0)),
        compiler_params=pltpu.CompilerParams(
            dimension_semantics=("arbitrary",),
            vmem_limit_bytes=vmem_limit),
        cost_estimate=cost,
    )(x, *layer_args, *head_args)
    return out_padded[:, :n_classes]


# ---------------------------------------------------------------------------
# Deterministic parameter init (PyTorch-layout: y = x @ W + b)
# ---------------------------------------------------------------------------
def init_params(key, *, n_embeds, n_classes, d_model, d_key, n_heads, mlp_factor, n_layers):
    keys = list(jax.random.split(key, 8 + n_layers * (6 * n_heads + 8)))
    it = iter(keys)

    def lin(in_d, out_d):
        w = jax.random.normal(next(it), (in_d, out_d), jnp.float32) / np.sqrt(in_d)
        b = 0.01 * jax.random.normal(next(it), (1, out_d), jnp.float32)
        return w, b

    params = {"emb": 0.02 * jax.random.normal(next(it), (n_embeds, d_model), jnp.float32)}

    layers = []
    for _ in range(n_layers):
        wq_l, bq_l, wk_l, bk_l, wv_l, bv_l = [], [], [], [], [], []
        for _h in range(n_heads):
            w, b = lin(d_model, d_key); wq_l.append(w); bq_l.append(b)
            w, b = lin(d_model, d_key); wk_l.append(w); bk_l.append(b)
            w, b = lin(d_model, d_model); wv_l.append(w); bv_l.append(b)
        wo, bo = lin(n_heads * d_model, d_model)
        w1, b1 = lin(d_model, mlp_factor * d_model)
        w2, b2 = lin(mlp_factor * d_model, d_model)
        layers.append({
            "ln1_g": jnp.ones((1, d_model), jnp.float32),
            "ln1_b": jnp.zeros((1, d_model), jnp.float32),
            "wq": jnp.stack(wq_l), "bq": jnp.stack(bq_l),   # (H, D, Dk), (H, 1, Dk)
            "wk": jnp.stack(wk_l), "bk": jnp.stack(bk_l),
            "wv": jnp.stack(wv_l), "bv": jnp.stack(bv_l),   # (H, D, D), (H, 1, D)
            "wo": wo, "bo": bo,
            "ln2_g": jnp.ones((1, d_model), jnp.float32),
            "ln2_b": jnp.zeros((1, d_model), jnp.float32),
            "w1": w1, "b1": b1, "w2": w2, "b2": b2,
        })
    params["layers"] = layers

    params["fln_g"] = jnp.ones((1, d_model), jnp.float32)
    params["fln_b"] = jnp.zeros((1, d_model), jnp.float32)
    params["wc1"], params["bc1"] = lin(d_model, d_model)
    params["wc2"], params["bc2"] = lin(d_model, n_classes)
    return params


# ---------------------------------------------------------------------------
# Pure-JAX f32 reference (matches the PyTorch module)
# ---------------------------------------------------------------------------
def _layernorm_ref(x, g, b):
    mu = jnp.mean(x, axis=-1, keepdims=True)
    var = jnp.mean((x - mu) ** 2, axis=-1, keepdims=True)
    return (x - mu) * jax.lax.rsqrt(var + LN_EPS) * g + b


def reference_forward(tokens, params, *, n_heads, d_key):
    x = params["emb"][tokens]
    for lp in params["layers"]:
        xn = _layernorm_ref(x, lp["ln1_g"], lp["ln1_b"])
        heads = []
        for h in range(n_heads):
            q = xn @ lp["wq"][h] + lp["bq"][h]
            k = xn @ lp["wk"][h] + lp["bk"][h]
            v = xn @ lp["wv"][h] + lp["bv"][h]
            a = (q @ jnp.swapaxes(k, -2, -1)) / (d_key ** 0.5)
            a = jax.nn.softmax(a, axis=-1)
            heads.append(a @ v)
        attn = jnp.concatenate(heads, axis=-1) @ lp["wo"] + lp["bo"]
        x = x + attn
        xn2 = _layernorm_ref(x, lp["ln2_g"], lp["ln2_b"])
        h1 = _silu(xn2 @ lp["w1"] + lp["b1"])
        x = x + h1 @ lp["w2"] + lp["b2"]
    pooled = jnp.mean(x, axis=1)
    xn = _layernorm_ref(pooled, params["fln_g"], params["fln_b"])
    h = _silu(xn @ params["wc1"] + params["bc1"])
    return h @ params["wc2"] + params["bc2"]


if __name__ == "__main__":
    B, S = 2, 8
    n_embeds, n_classes = 50, 5
    d_model, d_key, n_heads, mlp_factor, n_layers = 32, 16, 2, 4, 2

    key = jax.random.PRNGKey(0)
    k_tok, k_par = jax.random.split(key)
    tokens = jax.random.randint(k_tok, (B, S), 0, n_embeds, dtype=jnp.int32)
    params = init_params(k_par, n_embeds=n_embeds, n_classes=n_classes, d_model=d_model,
                         d_key=d_key, n_heads=n_heads, mlp_factor=mlp_factor,
                         n_layers=n_layers)

    out = transformer_classifier(tokens, params, n_heads=n_heads, d_key=d_key,
                                 mlp_factor=mlp_factor, n_layers=n_layers,
                                 n_classes=n_classes)
    out = jax.block_until_ready(out)

    ref = jax.block_until_ready(reference_forward(tokens, params, n_heads=n_heads, d_key=d_key))
    assert out.shape == (B, n_classes)
    # bf16 matmul operands + approx softmax reciprocal => bf16-appropriate tolerance.
    np.testing.assert_allclose(np.asarray(out), np.asarray(ref), rtol=2e-2, atol=2e-2)

    print("KERNEL_OK")
</pallas_src>

<mosaic_0001>
module attributes {stable_mosaic.version = 11 : i64} {
  func.func @fused_transformer_kernel(%arg0: i32, %arg1: memref<16x128xf32, #tpu.memory_space<vmem>>, %arg2: memref<2x1x128xf32, #tpu.memory_space<vmem>>, %arg3: memref<2x1x128xf32, #tpu.memory_space<vmem>>, %arg4: memref<2x128x768xbf16, #tpu.memory_space<vmem>>, %arg5: memref<2x1x768xf32, #tpu.memory_space<vmem>>, %arg6: memref<2x256x128xbf16, #tpu.memory_space<vmem>>, %arg7: memref<2x1x128xf32, #tpu.memory_space<vmem>>, %arg8: memref<2x1x128xf32, #tpu.memory_space<vmem>>, %arg9: memref<2x1x128xf32, #tpu.memory_space<vmem>>, %arg10: memref<2x128x128xbf16, #tpu.memory_space<vmem>>, %arg11: memref<2x1x128xf32, #tpu.memory_space<vmem>>, %arg12: memref<2x128x128xbf16, #tpu.memory_space<vmem>>, %arg13: memref<2x1x128xf32, #tpu.memory_space<vmem>>, %arg14: memref<1x128xf32, #tpu.memory_space<vmem>>, %arg15: memref<1x128xf32, #tpu.memory_space<vmem>>, %arg16: memref<128x128xf32, #tpu.memory_space<vmem>>, %arg17: memref<1x128xf32, #tpu.memory_space<vmem>>, %arg18: memref<128x128xf32, #tpu.memory_space<vmem>>, %arg19: memref<1x128xf32, #tpu.memory_space<vmem>>, %arg20: memref<2x128xf32, #tpu.memory_space<vmem>>) attributes {dimension_semantics = [#tpu.dimension_semantics<arbitrary>], iteration_bounds = array<i64: 1>, scalar_prefetch = 0 : i64, scratch_operands = 0 : i64, tpu.core_type = #tpu.core_type<tc>, window_params = [{pipeline_mode = #tpu.pipeline_mode<synchronous>, transform_indices = @transform_0, window_bounds = array<i64: 16, 128>}, {pipeline_mode = #tpu.pipeline_mode<synchronous>, transform_indices = @transform_1, window_bounds = array<i64: 2, 1, 128>}, {pipeline_mode = #tpu.pipeline_mode<synchronous>, transform_indices = @transform_2, window_bounds = array<i64: 2, 1, 128>}, {pipeline_mode = #tpu.pipeline_mode<synchronous>, transform_indices = @transform_3, window_bounds = array<i64: 2, 128, 768>}, {pipeline_mode = #tpu.pipeline_mode<synchronous>, transform_indices = @transform_4, window_bounds = array<i64: 2, 1, 768>}, {pipeline_mode = #tpu.pipeline_mode<synchronous>, transform_indices = @transform_5, window_bounds = array<i64: 2, 256, 128>}, {pipeline_mode = #tpu.pipeline_mode<synchronous>, transform_indices = @transform_6, window_bounds = array<i64: 2, 1, 128>}, {pipeline_mode = #tpu.pipeline_mode<synchronous>, transform_indices = @transform_7, window_bounds = array<i64: 2, 1, 128>}, {pipeline_mode = #tpu.pipeline_mode<synchronous>, transform_indices = @transform_8, window_bounds = array<i64: 2, 1, 128>}, {pipeline_mode = #tpu.pipeline_mode<synchronous>, transform_indices = @transform_9, window_bounds = array<i64: 2, 128, 128>}, {pipeline_mode = #tpu.pipeline_mode<synchronous>, transform_indices = @transform_10, window_bounds = array<i64: 2, 1, 128>}, {pipeline_mode = #tpu.pipeline_mode<synchronous>, transform_indices = @transform_11, window_bounds = array<i64: 2, 128, 128>}, {pipeline_mode = #tpu.pipeline_mode<synchronous>, transform_indices = @transform_12, window_bounds = array<i64: 2, 1, 128>}, {pipeline_mode = #tpu.pipeline_mode<synchronous>, transform_indices = @transform_13, window_bounds = array<i64: 1, 128>}, {pipeline_mode = #tpu.pipeline_mode<synchronous>, transform_indices = @transform_14, window_bounds = array<i64: 1, 128>}, {pipeline_mode = #tpu.pipeline_mode<synchronous>, transform_indices = @transform_15, window_bounds = array<i64: 128, 128>}, {pipeline_mode = #tpu.pipeline_mode<synchronous>, transform_indices = @transform_16, window_bounds = array<i64: 1, 128>}, {pipeline_mode = #tpu.pipeline_mode<synchronous>, transform_indices = @transform_17, window_bounds = array<i64: 128, 128>}, {pipeline_mode = #tpu.pipeline_mode<synchronous>, transform_indices = @transform_18, window_bounds = array<i64: 1, 128>}, {pipeline_mode = #tpu.pipeline_mode<synchronous>, transform_indices = @transform_19, window_bounds = array<i64: 2, 128>}]} {
    %0 = tpu.iota {dimensions = array<i32: 1>} : vector<1x128xi32>
    %c32_i32 = arith.constant 32 : i32
    %1 = vector.broadcast %c32_i32 : i32 to vector<1x128xi32>
    %2 = arith.cmpi slt, %0, %1 : vector<1x128xi32>
    %3 = arith.extui %2 : vector<1x128xi1> to vector<1x128xi32>
    %4 = arith.sitofp %3 : vector<1x128xi32> to vector<1x128xf32>
    %c0 = arith.constant 0 : index
    %c0_0 = arith.constant 0 : index
    %5 = vector.load %arg1[%c0, %c0_0] : memref<16x128xf32, #tpu.memory_space<vmem>>, vector<16x128xf32>
    %c0_1 = arith.constant 0 : index
    %c0_2 = arith.constant 0 : index
    %c0_3 = arith.constant 0 : index
    %6 = vector.load %arg2[%c0_1, %c0_2, %c0_3] : memref<2x1x128xf32, #tpu.memory_space<vmem>>, vector<1x1x128xf32>
    %7 = vector.shape_cast %6 : vector<1x1x128xf32> to vector<1x128xf32>
    %c0_4 = arith.constant 0 : index
    %c0_5 = arith.constant 0 : index
    %c0_6 = arith.constant 0 : index
    %8 = vector.load %arg3[%c0_4, %c0_5, %c0_6] : memref<2x1x128xf32, #tpu.memory_space<vmem>>, vector<1x1x128xf32>
    %9 = vector.shape_cast %8 : vector<1x1x128xf32> to vector<1x128xf32>
    %cst = arith.constant dense<0.000000e+00> : vector<16xf32>
    %10 = vector.multi_reduction <add>, %5, %cst [1] : vector<16x128xf32> to vector<16xf32>
    %11 = vector.shape_cast %10 : vector<16xf32> to vector<16x1xf32>
    %cst_7 = arith.constant 3.125000e-02 : f32
    %12 = vector.broadcast %cst_7 : f32 to vector<16x1xf32>
    %13 = arith.mulf %11, %12 : vector<16x1xf32>
    %14 = vector.broadcast %13 : vector<16x1xf32> to vector<16x128xf32>
    %15 = arith.subf %5, %14 : vector<16x128xf32>
    %16 = vector.broadcast %4 : vector<1x128xf32> to vector<16x128xf32>
    %17 = arith.mulf %15, %16 : vector<16x128xf32>
    %18 = arith.mulf %17, %17 : vector<16x128xf32>
    %cst_8 = arith.constant dense<0.000000e+00> : vector<16xf32>
    %19 = vector.multi_reduction <add>, %18, %cst_8 [1] : vector<16x128xf32> to vector<16xf32>
    %20 = vector.shape_cast %19 : vector<16xf32> to vector<16x1xf32>
    %cst_9 = arith.constant 3.125000e-02 : f32
    %21 = vector.broadcast %cst_9 : f32 to vector<16x1xf32>
    %22 = arith.mulf %20, %21 : vector<16x1xf32>
    %23 = vector.broadcast %13 : vector<16x1xf32> to vector<16x128xf32>
    %24 = arith.subf %5, %23 : vector<16x128xf32>
    %cst_10 = arith.constant 9.99999974E-6 : f32
    %25 = vector.broadcast %cst_10 : f32 to vector<16x1xf32>
    %26 = arith.addf %22, %25 : vector<16x1xf32>
    %27 = math.rsqrt %26 : vector<16x1xf32>
    %28 = vector.broadcast %27 : vector<16x1xf32> to vector<16x128xf32>
    %29 = arith.mulf %24, %28 : vector<16x128xf32>
    %30 = vector.broadcast %7 : vector<1x128xf32> to vector<16x128xf32>
    %31 = arith.mulf %29, %30 : vector<16x128xf32>
    %32 = vector.broadcast %9 : vector<1x128xf32> to vector<16x128xf32>
    %33 = arith.addf %31, %32 : vector<16x128xf32>
    %34 = arith.truncf %33 : vector<16x128xf32> to vector<16x128xbf16>
    %c0_11 = arith.constant 0 : index
    %c0_12 = arith.constant 0 : index
    %c0_13 = arith.constant 0 : index
    %35 = vector.load %arg4[%c0_11, %c0_12, %c0_13] : memref<2x128x768xbf16, #tpu.memory_space<vmem>>, vector<1x128x768xbf16>
    %36 = vector.shape_cast %35 : vector<1x128x768xbf16> to vector<128x768xbf16>
    %cst_14 = arith.constant dense<0.000000e+00> : vector<16x768xf32>
    %37 = tpu.matmul %34, %36, %cst_14 {dimension_numbers = #tpu.dot_dimension_numbers<[1], [0], [0], [1], [0, 0, 1, 1], [], []>} : vector<16x128xbf16>, vector<128x768xbf16>, vector<16x768xf32> -> vector<16x768xf32>
    %c0_15 = arith.constant 0 : index
    %c0_16 = arith.constant 0 : index
    %c0_17 = arith.constant 0 : index
    %38 = vector.load %arg5[%c0_15, %c0_16, %c0_17] : memref<2x1x768xf32, #tpu.memory_space<vmem>>, vector<1x1x768xf32>
    %39 = vector.shape_cast %38 : vector<1x1x768xf32> to vector<1x768xf32>
    %40 = vector.broadcast %39 : vector<1x768xf32> to vector<16x768xf32>
    %41 = arith.addf %37, %40 : vector<16x768xf32>
    %42 = vector.extract_strided_slice %41 {offsets = [0, 0], sizes = [16, 128], strides = [1, 1]} : vector<16x768xf32> to vector<16x128xf32>
    %43 = vector.shape_cast %42 : vector<16x128xf32> to vector<2x8x128xf32>
    %44 = vector.extract_strided_slice %41 {offsets = [0, 256], sizes = [16, 128], strides = [1, 1]} : vector<16x768xf32> to vector<16x128xf32>
    %45 = vector.shape_cast %44 : vector<16x128xf32> to vector<2x8x128xf32>
    %46 = vector.extract_strided_slice %41 {offsets = [0, 512], sizes = [16, 128], strides = [1, 1]} : vector<16x768xf32> to vector<16x128xf32>
    %47 = vector.shape_cast %46 : vector<16x128xf32> to vector<2x8x128xf32>
    %48 = arith.truncf %43 : vector<2x8x128xf32> to vector<2x8x128xbf16>
    %49 = arith.truncf %45 : vector<2x8x128xf32> to vector<2x8x128xbf16>
    "tpu.trace_start"() <{level = 10 : i32, message = "bqd,bkd->bqk"}> : () -> ()
    %cst_18 = arith.constant dense<0.000000e+00> : vector<2x8x8xf32>
    %50 = tpu.matmul %48, %49, %cst_18 {dimension_numbers = #tpu.dot_dimension_numbers<[2], [2], [1], [1], [0, 0, 0, 1, 1, 1], [0], [0]>} : vector<2x8x128xbf16>, vector<2x8x128xbf16>, vector<2x8x8xf32> -> vector<2x8x8xf32>
    "tpu.trace_stop"() : () -> ()
    %cst_19 = arith.constant 2.500000e-01 : f32
    %51 = vector.broadcast %cst_19 : f32 to vector<2x8x8xf32>
    %52 = arith.mulf %50, %51 : vector<2x8x8xf32>
    %cst_20 = arith.constant dense<0xFF800000> : vector<2x8xf32>
    %53 = vector.multi_reduction <maximumf>, %52, %cst_20 [2] : vector<2x8x8xf32> to vector<2x8xf32>
    %54 = vector.shape_cast %53 : vector<2x8xf32> to vector<2x8x1xf32>
    %55 = vector.broadcast %54 : vector<2x8x1xf32> to vector<2x8x8xf32>
    %56 = arith.subf %52, %55 : vector<2x8x8xf32>
    %57 = math.exp %56 : vector<2x8x8xf32>
    %cst_21 = arith.constant dense<0.000000e+00> : vector<2x8xf32>
    %58 = vector.multi_reduction <add>, %57, %cst_21 [2] : vector<2x8x8xf32> to vector<2x8xf32>
    %59 = vector.shape_cast %58 : vector<2x8xf32> to vector<2x8x1xf32>
    %60 = tpu.reciprocal %59 {approx = true} : vector<2x8x1xf32> -> vector<2x8x1xf32>
    %61 = vector.broadcast %60 : vector<2x8x1xf32> to vector<2x8x8xf32>
    %62 = arith.mulf %57, %61 : vector<2x8x8xf32>
    %63 = arith.truncf %62 : vector<2x8x8xf32> to vector<2x8x8xbf16>
    %64 = arith.truncf %47 : vector<2x8x128xf32> to vector<2x8x128xbf16>
    "tpu.trace_start"() <{level = 10 : i32, message = "bqk,bkd->bqd"}> : () -> ()
    %cst_22 = arith.constant dense<0.000000e+00> : vector<2x8x128xf32>
    %65 = tpu.matmul %63, %64, %cst_22 {dimension_numbers = #tpu.dot_dimension_numbers<[2], [1], [1], [2], [0, 0, 0, 1, 1, 2], [0], [0]>} : vector<2x8x8xbf16>, vector<2x8x128xbf16>, vector<2x8x128xf32> -> vector<2x8x128xf32>
    "tpu.trace_stop"() : () -> ()
    %66 = vector.shape_cast %65 : vector<2x8x128xf32> to vector<16x128xf32>
    %67 = vector.extract_strided_slice %41 {offsets = [0, 128], sizes = [16, 128], strides = [1, 1]} : vector<16x768xf32> to vector<16x128xf32>
    %68 = vector.shape_cast %67 : vector<16x128xf32> to vector<2x8x128xf32>
    %69 = vector.extract_strided_slice %41 {offsets = [0, 384], sizes = [16, 128], strides = [1, 1]} : vector<16x768xf32> to vector<16x128xf32>
    %70 = vector.shape_cast %69 : vector<16x128xf32> to vector<2x8x128xf32>
    %71 = vector.extract_strided_slice %41 {offsets = [0, 640], sizes = [16, 128], strides = [1, 1]} : vector<16x768xf32> to vector<16x128xf32>
    %72 = vector.shape_cast %71 : vector<16x128xf32> to vector<2x8x128xf32>
    %73 = arith.truncf %68 : vector<2x8x128xf32> to vector<2x8x128xbf16>
    %74 = arith.truncf %70 : vector<2x8x128xf32> to vector<2x8x128xbf16>
    "tpu.trace_start"() <{level = 10 : i32, message = "bqd,bkd->bqk"}> : () -> ()
    %cst_23 = arith.constant dense<0.000000e+00> : vector<2x8x8xf32>
    %75 = tpu.matmul %73, %74, %cst_23 {dimension_numbers = #tpu.dot_dimension_numbers<[2], [2], [1], [1], [0, 0, 0, 1, 1, 1], [0], [0]>} : vector<2x8x128xbf16>, vector<2x8x128xbf16>, vector<2x8x8xf32> -> vector<2x8x8xf32>
    "tpu.trace_stop"() : () -> ()
    %cst_24 = arith.constant 2.500000e-01 : f32
    %76 = vector.broadcast %cst_24 : f32 to vector<2x8x8xf32>
    %77 = arith.mulf %75, %76 : vector<2x8x8xf32>
    %cst_25 = arith.constant dense<0xFF800000> : vector<2x8xf32>
    %78 = vector.multi_reduction <maximumf>, %77, %cst_25 [2] : vector<2x8x8xf32> to vector<2x8xf32>
    %79 = vector.shape_cast %78 : vector<2x8xf32> to vector<2x8x1xf32>
    %80 = vector.broadcast %79 : vector<2x8x1xf32> to vector<2x8x8xf32>
    %81 = arith.subf %77, %80 : vector<2x8x8xf32>
    %82 = math.exp %81 : vector<2x8x8xf32>
    %cst_26 = arith.constant dense<0.000000e+00> : vector<2x8xf32>
    %83 = vector.multi_reduction <add>, %82, %cst_26 [2] : vector<2x8x8xf32> to vector<2x8xf32>
    %84 = vector.shape_cast %83 : vector<2x8xf32> to vector<2x8x1xf32>
    %85 = tpu.reciprocal %84 {approx = true} : vector<2x8x1xf32> -> vector<2x8x1xf32>
    %86 = vector.broadcast %85 : vector<2x8x1xf32> to vector<2x8x8xf32>
    %87 = arith.mulf %82, %86 : vector<2x8x8xf32>
    %88 = arith.truncf %87 : vector<2x8x8xf32> to vector<2x8x8xbf16>
    %89 = arith.truncf %72 : vector<2x8x128xf32> to vector<2x8x128xbf16>
    "tpu.trace_start"() <{level = 10 : i32, message = "bqk,bkd->bqd"}> : () -> ()
    %cst_27 = arith.constant dense<0.000000e+00> : vector<2x8x128xf32>
    %90 = tpu.matmul %88, %89, %cst_27 {dimension_numbers = #tpu.dot_dimension_numbers<[2], [1], [1], [2], [0, 0, 0, 1, 1, 2], [0], [0]>} : vector<2x8x8xbf16>, vector<2x8x128xbf16>, vector<2x8x128xf32> -> vector<2x8x128xf32>
    "tpu.trace_stop"() : () -> ()
    %91 = vector.shape_cast %90 : vector<2x8x128xf32> to vector<16x128xf32>
    %92 = tpu.concatenate %66, %91 in 1 : vector<16x128xf32>, vector<16x128xf32> -> vector<16x256xf32>
    %93 = arith.truncf %92 : vector<16x256xf32> to vector<16x256xbf16>
    %c0_28 = arith.constant 0 : index
    %c0_29 = arith.constant 0 : index
    %c0_30 = arith.constant 0 : index
    %94 = vector.load %arg6[%c0_28, %c0_29, %c0_30] : memref<2x256x128xbf16, #tpu.memory_space<vmem>>, vector<1x256x128xbf16>
    %95 = vector.shape_cast %94 : vector<1x256x128xbf16> to vector<256x128xbf16>
    %cst_31 = arith.constant dense<0.000000e+00> : vector<16x128xf32>
    %96 = tpu.matmul %93, %95, %cst_31 {dimension_numbers = #tpu.dot_dimension_numbers<[1], [0], [0], [1], [0, 0, 1, 1], [], []>} : vector<16x256xbf16>, vector<256x128xbf16>, vector<16x128xf32> -> vector<16x128xf32>
    %c0_32 = arith.constant 0 : index
    %c0_33 = arith.constant 0 : index
    %c0_34 = arith.constant 0 : index
    %97 = vector.load %arg7[%c0_32, %c0_33, %c0_34] : memref<2x1x128xf32, #tpu.memory_space<vmem>>, vector<1x1x128xf32>
    %98 = vector.shape_cast %97 : vector<1x1x128xf32> to vector<1x128xf32>
    %99 = vector.broadcast %98 : vector<1x128xf32> to vector<16x128xf32>
    %100 = arith.addf %96, %99 : vector<16x128xf32>
    %101 = arith.addf %5, %100 : vector<16x128xf32>
    %c0_35 = arith.constant 0 : index
    %c0_36 = arith.constant 0 : index
    %c0_37 = arith.constant 0 : index
    %102 = vector.load %arg8[%c0_35, %c0_36, %c0_37] : memref<2x1x128xf32, #tpu.memory_space<vmem>>, vector<1x1x128xf32>
    %103 = vector.shape_cast %102 : vector<1x1x128xf32> to vector<1x128xf32>
    %c0_38 = arith.constant 0 : index
    %c0_39 = arith.constant 0 : index
    %c0_40 = arith.constant 0 : index
    %104 = vector.load %arg9[%c0_38, %c0_39, %c0_40] : memref<2x1x128xf32, #tpu.memory_space<vmem>>, vector<1x1x128xf32>
    %105 = vector.shape_cast %104 : vector<1x1x128xf32> to vector<1x128xf32>
    %cst_41 = arith.constant dense<0.000000e+00> : vector<16xf32>
    %106 = vector.multi_reduction <add>, %101, %cst_41 [1] : vector<16x128xf32> to vector<16xf32>
    %107 = vector.shape_cast %106 : vector<16xf32> to vector<16x1xf32>
    %cst_42 = arith.constant 3.125000e-02 : f32
    %108 = vector.broadcast %cst_42 : f32 to vector<16x1xf32>
    %109 = arith.mulf %107, %108 : vector<16x1xf32>
    %110 = vector.broadcast %109 : vector<16x1xf32> to vector<16x128xf32>
    %111 = arith.subf %101, %110 : vector<16x128xf32>
    %112 = vector.broadcast %4 : vector<1x128xf32> to vector<16x128xf32>
    %113 = arith.mulf %111, %112 : vector<16x128xf32>
    %114 = arith.mulf %113, %113 : vector<16x128xf32>
    %cst_43 = arith.constant dense<0.000000e+00> : vector<16xf32>
    %115 = vector.multi_reduction <add>, %114, %cst_43 [1] : vector<16x128xf32> to vector<16xf32>
    %116 = vector.shape_cast %115 : vector<16xf32> to vector<16x1xf32>
    %cst_44 = arith.constant 3.125000e-02 : f32
    %117 = vector.broadcast %cst_44 : f32 to vector<16x1xf32>
    %118 = arith.mulf %116, %117 : vector<16x1xf32>
    %119 = vector.broadcast %109 : vector<16x1xf32> to vector<16x128xf32>
    %120 = arith.subf %101, %119 : vector<16x128xf32>
    %cst_45 = arith.constant 9.99999974E-6 : f32
    %121 = vector.broadcast %cst_45 : f32 to vector<16x1xf32>
    %122 = arith.addf %118, %121 : vector<16x1xf32>
    %123 = math.rsqrt %122 : vector<16x1xf32>
    %124 = vector.broadcast %123 : vector<16x1xf32> to vector<16x128xf32>
    %125 = arith.mulf %120, %124 : vector<16x128xf32>
    %126 = vector.broadcast %103 : vector<1x128xf32> to vector<16x128xf32>
    %127 = arith.mulf %125, %126 : vector<16x128xf32>
    %128 = vector.broadcast %105 : vector<1x128xf32> to vector<16x128xf32>
    %129 = arith.addf %127, %128 : vector<16x128xf32>
    %130 = arith.truncf %129 : vector<16x128xf32> to vector<16x128xbf16>
    %c0_46 = arith.constant 0 : index
    %c0_47 = arith.constant 0 : index
    %c0_48 = arith.constant 0 : index
    %131 = vector.load %arg10[%c0_46, %c0_47, %c0_48] : memref<2x128x128xbf16, #tpu.memory_space<vmem>>, vector<1x128x128xbf16>
    %132 = vector.shape_cast %131 : vector<1x128x128xbf16> to vector<128x128xbf16>
    %cst_49 = arith.constant dense<0.000000e+00> : vector<16x128xf32>
    %133 = tpu.matmul %130, %132, %cst_49 {dimension_numbers = #tpu.dot_dimension_numbers<[1], [0], [0], [1], [0, 0, 1, 1], [], []>} : vector<16x128xbf16>, vector<128x128xbf16>, vector<16x128xf32> -> vector<16x128xf32>
    %c0_50 = arith.constant 0 : index
    %c0_51 = arith.constant 0 : index
    %c0_52 = arith.constant 0 : index
    %134 = vector.load %arg11[%c0_50, %c0_51, %c0_52] : memref<2x1x128xf32, #tpu.memory_space<vmem>>, vector<1x1x128xf32>
    %135 = vector.shape_cast %134 : vector<1x1x128xf32> to vector<1x128xf32>
    %136 = vector.broadcast %135 : vector<1x128xf32> to vector<16x128xf32>
    %137 = arith.addf %133, %136 : vector<16x128xf32>
    %138 = arith.negf %137 : vector<16x128xf32>
    %139 = math.exp %138 : vector<16x128xf32>
    %cst_53 = arith.constant 1.000000e+00 : f32
    %140 = vector.broadcast %cst_53 : f32 to vector<16x128xf32>
    %141 = arith.addf %140, %139 : vector<16x128xf32>
    %142 = arith.divf %140, %141 : vector<16x128xf32>
    %143 = arith.mulf %137, %142 : vector<16x128xf32>
    %144 = arith.truncf %143 : vector<16x128xf32> to vector<16x128xbf16>
    %c0_54 = arith.constant 0 : index
    %c0_55 = arith.constant 0 : index
    %c0_56 = arith.constant 0 : index
    %145 = vector.load %arg12[%c0_54, %c0_55, %c0_56] : memref<2x128x128xbf16, #tpu.memory_space<vmem>>, vector<1x128x128xbf16>
    %146 = vector.shape_cast %145 : vector<1x128x128xbf16> to vector<128x128xbf16>
    %cst_57 = arith.constant dense<0.000000e+00> : vector<16x128xf32>
    %147 = tpu.matmul %144, %146, %cst_57 {dimension_numbers = #tpu.dot_dimension_numbers<[1], [0], [0], [1], [0, 0, 1, 1], [], []>} : vector<16x128xbf16>, vector<128x128xbf16>, vector<16x128xf32> -> vector<16x128xf32>
    %148 = arith.addf %101, %147 : vector<16x128xf32>
    %c0_58 = arith.constant 0 : index
    %c0_59 = arith.constant 0 : index
    %c0_60 = arith.constant 0 : index
    %149 = vector.load %arg13[%c0_58, %c0_59, %c0_60] : memref<2x1x128xf32, #tpu.memory_space<vmem>>, vector<1x1x128xf32>
    %150 = vector.shape_cast %149 : vector<1x1x128xf32> to vector<1x128xf32>
    %151 = vector.broadcast %150 : vector<1x128xf32> to vector<16x128xf32>
    %152 = arith.addf %148, %151 : vector<16x128xf32>
    %c1 = arith.constant 1 : index
    %c0_61 = arith.constant 0 : index
    %c0_62 = arith.constant 0 : index
    %153 = vector.load %arg2[%c1, %c0_61, %c0_62] : memref<2x1x128xf32, #tpu.memory_space<vmem>>, vector<1x1x128xf32>
    %154 = vector.shape_cast %153 : vector<1x1x128xf32> to vector<1x128xf32>
    %c1_63 = arith.constant 1 : index
    %c0_64 = arith.constant 0 : index
    %c0_65 = arith.constant 0 : index
    %155 = vector.load %arg3[%c1_63, %c0_64, %c0_65] : memref<2x1x128xf32, #tpu.memory_space<vmem>>, vector<1x1x128xf32>
    %156 = vector.shape_cast %155 : vector<1x1x128xf32> to vector<1x128xf32>
    %cst_66 = arith.constant dense<0.000000e+00> : vector<16xf32>
    %157 = vector.multi_reduction <add>, %152, %cst_66 [1] : vector<16x128xf32> to vector<16xf32>
    %158 = vector.shape_cast %157 : vector<16xf32> to vector<16x1xf32>
    %cst_67 = arith.constant 3.125000e-02 : f32
    %159 = vector.broadcast %cst_67 : f32 to vector<16x1xf32>
    %160 = arith.mulf %158, %159 : vector<16x1xf32>
    %161 = vector.broadcast %160 : vector<16x1xf32> to vector<16x128xf32>
    %162 = arith.subf %152, %161 : vector<16x128xf32>
    %163 = vector.broadcast %4 : vector<1x128xf32> to vector<16x128xf32>
    %164 = arith.mulf %162, %163 : vector<16x128xf32>
    %165 = arith.mulf %164, %164 : vector<16x128xf32>
    %cst_68 = arith.constant dense<0.000000e+00> : vector<16xf32>
    %166 = vector.multi_reduction <add>, %165, %cst_68 [1] : vector<16x128xf32> to vector<16xf32>
    %167 = vector.shape_cast %166 : vector<16xf32> to vector<16x1xf32>
    %cst_69 = arith.constant 3.125000e-02 : f32
    %168 = vector.broadcast %cst_69 : f32 to vector<16x1xf32>
    %169 = arith.mulf %167, %168 : vector<16x1xf32>
    %170 = vector.broadcast %160 : vector<16x1xf32> to vector<16x128xf32>
    %171 = arith.subf %152, %170 : vector<16x128xf32>
    %cst_70 = arith.constant 9.99999974E-6 : f32
    %172 = vector.broadcast %cst_70 : f32 to vector<16x1xf32>
    %173 = arith.addf %169, %172 : vector<16x1xf32>
    %174 = math.rsqrt %173 : vector<16x1xf32>
    %175 = vector.broadcast %174 : vector<16x1xf32> to vector<16x128xf32>
    %176 = arith.mulf %171, %175 : vector<16x128xf32>
    %177 = vector.broadcast %154 : vector<1x128xf32> to vector<16x128xf32>
    %178 = arith.mulf %176, %177 : vector<16x128xf32>
    %179 = vector.broadcast %156 : vector<1x128xf32> to vector<16x128xf32>
    %180 = arith.addf %178, %179 : vector<16x128xf32>
    %181 = arith.truncf %180 : vector<16x128xf32> to vector<16x128xbf16>
    %c1_71 = arith.constant 1 : index
    %c0_72 = arith.constant 0 : index
    %c0_73 = arith.constant 0 : index
    %182 = vector.load %arg4[%c1_71, %c0_72, %c0_73] : memref<2x128x768xbf16, #tpu.memory_space<vmem>>, vector<1x128x768xbf16>
    %183 = vector.shape_cast %182 : vector<1x128x768xbf16> to vector<128x768xbf16>
    %cst_74 = arith.constant dense<0.000000e+00> : vector<16x768xf32>
    %184 = tpu.matmul %181, %183, %cst_74 {dimension_numbers = #tpu.dot_dimension_numbers<[1], [0], [0], [1], [0, 0, 1, 1], [], []>} : vector<16x128xbf16>, vector<128x768xbf16>, vector<16x768xf32> -> vector<16x768xf32>
    %c1_75 = arith.constant 1 : index
    %c0_76 = arith.constant 0 : index
    %c0_77 = arith.constant 0 : index
    %185 = vector.load %arg5[%c1_75, %c0_76, %c0_77] : memref<2x1x768xf32, #tpu.memory_space<vmem>>, vector<1x1x768xf32>
    %186 = vector.shape_cast %185 : vector<1x1x768xf32> to vector<1x768xf32>
    %187 = vector.broadcast %186 : vector<1x768xf32> to vector<16x768xf32>
    %188 = arith.addf %184, %187 : vector<16x768xf32>
    %189 = vector.extract_strided_slice %188 {offsets = [0, 0], sizes = [16, 128], strides = [1, 1]} : vector<16x768xf32> to vector<16x128xf32>
    %190 = vector.shape_cast %189 : vector<16x128xf32> to vector<2x8x128xf32>
    %191 = vector.extract_strided_slice %188 {offsets = [0, 256], sizes = [16, 128], strides = [1, 1]} : vector<16x768xf32> to vector<16x128xf32>
    %192 = vector.shape_cast %191 : vector<16x128xf32> to vector<2x8x128xf32>
    %193 = vector.extract_strided_slice %188 {offsets = [0, 512], sizes = [16, 128], strides = [1, 1]} : vector<16x768xf32> to vector<16x128xf32>
    %194 = vector.shape_cast %193 : vector<16x128xf32> to vector<2x8x128xf32>
    %195 = arith.truncf %190 : vector<2x8x128xf32> to vector<2x8x128xbf16>
    %196 = arith.truncf %192 : vector<2x8x128xf32> to vector<2x8x128xbf16>
    "tpu.trace_start"() <{level = 10 : i32, message = "bqd,bkd->bqk"}> : () -> ()
    %cst_78 = arith.constant dense<0.000000e+00> : vector<2x8x8xf32>
    %197 = tpu.matmul %195, %196, %cst_78 {dimension_numbers = #tpu.dot_dimension_numbers<[2], [2], [1], [1], [0, 0, 0, 1, 1, 1], [0], [0]>} : vector<2x8x128xbf16>, vector<2x8x128xbf16>, vector<2x8x8xf32> -> vector<2x8x8xf32>
    "tpu.trace_stop"() : () -> ()
    %cst_79 = arith.constant 2.500000e-01 : f32
    %198 = vector.broadcast %cst_79 : f32 to vector<2x8x8xf32>
    %199 = arith.mulf %197, %198 : vector<2x8x8xf32>
    %cst_80 = arith.constant dense<0xFF800000> : vector<2x8xf32>
    %200 = vector.multi_reduction <maximumf>, %199, %cst_80 [2] : vector<2x8x8xf32> to vector<2x8xf32>
    %201 = vector.shape_cast %200 : vector<2x8xf32> to vector<2x8x1xf32>
    %202 = vector.broadcast %201 : vector<2x8x1xf32> to vector<2x8x8xf32>
    %203 = arith.subf %199, %202 : vector<2x8x8xf32>
    %204 = math.exp %203 : vector<2x8x8xf32>
    %cst_81 = arith.constant dense<0.000000e+00> : vector<2x8xf32>
    %205 = vector.multi_reduction <add>, %204, %cst_81 [2] : vector<2x8x8xf32> to vector<2x8xf32>
    %206 = vector.shape_cast %205 : vector<2x8xf32> to vector<2x8x1xf32>
    %207 = tpu.reciprocal %206 {approx = true} : vector<2x8x1xf32> -> vector<2x8x1xf32>
    %208 = vector.broadcast %207 : vector<2x8x1xf32> to vector<2x8x8xf32>
    %209 = arith.mulf %204, %208 : vector<2x8x8xf32>
    %210 = arith.truncf %209 : vector<2x8x8xf32> to vector<2x8x8xbf16>
    %211 = arith.truncf %194 : vector<2x8x128xf32> to vector<2x8x128xbf16>
    "tpu.trace_start"() <{level = 10 : i32, message = "bqk,bkd->bqd"}> : () -> ()
    %cst_82 = arith.constant dense<0.000000e+00> : vector<2x8x128xf32>
    %212 = tpu.matmul %210, %211, %cst_82 {dimension_numbers = #tpu.dot_dimension_numbers<[2], [1], [1], [2], [0, 0, 0, 1, 1, 2], [0], [0]>} : vector<2x8x8xbf16>, vector<2x8x128xbf16>, vector<2x8x128xf32> -> vector<2x8x128xf32>
    "tpu.trace_stop"() : () -> ()
    %213 = vector.shape_cast %212 : vector<2x8x128xf32> to vector<16x128xf32>
    %214 = vector.extract_strided_slice %188 {offsets = [0, 128], sizes = [16, 128], strides = [1, 1]} : vector<16x768xf32> to vector<16x128xf32>
    %215 = vector.shape_cast %214 : vector<16x128xf32> to vector<2x8x128xf32>
    %216 = vector.extract_strided_slice %188 {offsets = [0, 384], sizes = [16, 128], strides = [1, 1]} : vector<16x768xf32> to vector<16x128xf32>
    %217 = vector.shape_cast %216 : vector<16x128xf32> to vector<2x8x128xf32>
    %218 = vector.extract_strided_slice %188 {offsets = [0, 640], sizes = [16, 128], strides = [1, 1]} : vector<16x768xf32> to vector<16x128xf32>
    %219 = vector.shape_cast %218 : vector<16x128xf32> to vector<2x8x128xf32>
    %220 = arith.truncf %215 : vector<2x8x128xf32> to vector<2x8x128xbf16>
    %221 = arith.truncf %217 : vector<2x8x128xf32> to vector<2x8x128xbf16>
    "tpu.trace_start"() <{level = 10 : i32, message = "bqd,bkd->bqk"}> : () -> ()
    %cst_83 = arith.constant dense<0.000000e+00> : vector<2x8x8xf32>
    %222 = tpu.matmul %220, %221, %cst_83 {dimension_numbers = #tpu.dot_dimension_numbers<[2], [2], [1], [1], [0, 0, 0, 1, 1, 1], [0], [0]>} : vector<2x8x128xbf16>, vector<2x8x128xbf16>, vector<2x8x8xf32> -> vector<2x8x8xf32>
    "tpu.trace_stop"() : () -> ()
    %cst_84 = arith.constant 2.500000e-01 : f32
    %223 = vector.broadcast %cst_84 : f32 to vector<2x8x8xf32>
    %224 = arith.mulf %222, %223 : vector<2x8x8xf32>
    %cst_85 = arith.constant dense<0xFF800000> : vector<2x8xf32>
    %225 = vector.multi_reduction <maximumf>, %224, %cst_85 [2] : vector<2x8x8xf32> to vector<2x8xf32>
    %226 = vector.shape_cast %225 : vector<2x8xf32> to vector<2x8x1xf32>
    %227 = vector.broadcast %226 : vector<2x8x1xf32> to vector<2x8x8xf32>
    %228 = arith.subf %224, %227 : vector<2x8x8xf32>
    %229 = math.exp %228 : vector<2x8x8xf32>
    %cst_86 = arith.constant dense<0.000000e+00> : vector<2x8xf32>
    %230 = vector.multi_reduction <add>, %229, %cst_86 [2] : vector<2x8x8xf32> to vector<2x8xf32>
    %231 = vector.shape_cast %230 : vector<2x8xf32> to vector<2x8x1xf32>
    %232 = tpu.reciprocal %231 {approx = true} : vector<2x8x1xf32> -> vector<2x8x1xf32>
    %233 = vector.broadcast %232 : vector<2x8x1xf32> to vector<2x8x8xf32>
    %234 = arith.mulf %229, %233 : vector<2x8x8xf32>
    %235 = arith.truncf %234 : vector<2x8x8xf32> to vector<2x8x8xbf16>
    %236 = arith.truncf %219 : vector<2x8x128xf32> to vector<2x8x128xbf16>
    "tpu.trace_start"() <{level = 10 : i32, message = "bqk,bkd->bqd"}> : () -> ()
    %cst_87 = arith.constant dense<0.000000e+00> : vector<2x8x128xf32>
    %237 = tpu.matmul %235, %236, %cst_87 {dimension_numbers = #tpu.dot_dimension_numbers<[2], [1], [1], [2], [0, 0, 0, 1, 1, 2], [0], [0]>} : vector<2x8x8xbf16>, vector<2x8x128xbf16>, vector<2x8x128xf32> -> vector<2x8x128xf32>
    "tpu.trace_stop"() : () -> ()
    %238 = vector.shape_cast %237 : vector<2x8x128xf32> to vector<16x128xf32>
    %239 = tpu.concatenate %213, %238 in 1 : vector<16x128xf32>, vector<16x128xf32> -> vector<16x256xf32>
    %240 = arith.truncf %239 : vector<16x256xf32> to vector<16x256xbf16>
    %c1_88 = arith.constant 1 : index
    %c0_89 = arith.constant 0 : index
    %c0_90 = arith.constant 0 : index
    %241 = vector.load %arg6[%c1_88, %c0_89, %c0_90] : memref<2x256x128xbf16, #tpu.memory_space<vmem>>, vector<1x256x128xbf16>
    %242 = vector.shape_cast %241 : vector<1x256x128xbf16> to vector<256x128xbf16>
    %cst_91 = arith.constant dense<0.000000e+00> : vector<16x128xf32>
    %243 = tpu.matmul %240, %242, %cst_91 {dimension_numbers = #tpu.dot_dimension_numbers<[1], [0], [0], [1], [0, 0, 1, 1], [], []>} : vector<16x256xbf16>, vector<256x128xbf16>, vector<16x128xf32> -> vector<16x128xf32>
    %c1_92 = arith.constant 1 : index
    %c0_93 = arith.constant 0 : index
    %c0_94 = arith.constant 0 : index
    %244 = vector.load %arg7[%c1_92, %c0_93, %c0_94] : memref<2x1x128xf32, #tpu.memory_space<vmem>>, vector<1x1x128xf32>
    %245 = vector.shape_cast %244 : vector<1x1x128xf32> to vector<1x128xf32>
    %246 = vector.broadcast %245 : vector<1x128xf32> to vector<16x128xf32>
    %247 = arith.addf %243, %246 : vector<16x128xf32>
    %248 = arith.addf %152, %247 : vector<16x128xf32>
    %c1_95 = arith.constant 1 : index
    %c0_96 = arith.constant 0 : index
    %c0_97 = arith.constant 0 : index
    %249 = vector.load %arg8[%c1_95, %c0_96, %c0_97] : memref<2x1x128xf32, #tpu.memory_space<vmem>>, vector<1x1x128xf32>
    %250 = vector.shape_cast %249 : vector<1x1x128xf32> to vector<1x128xf32>
    %c1_98 = arith.constant 1 : index
    %c0_99 = arith.constant 0 : index
    %c0_100 = arith.constant 0 : index
    %251 = vector.load %arg9[%c1_98, %c0_99, %c0_100] : memref<2x1x128xf32, #tpu.memory_space<vmem>>, vector<1x1x128xf32>
    %252 = vector.shape_cast %251 : vector<1x1x128xf32> to vector<1x128xf32>
    %cst_101 = arith.constant dense<0.000000e+00> : vector<16xf32>
    %253 = vector.multi_reduction <add>, %248, %cst_101 [1] : vector<16x128xf32> to vector<16xf32>
    %254 = vector.shape_cast %253 : vector<16xf32> to vector<16x1xf32>
    %cst_102 = arith.constant 3.125000e-02 : f32
    %255 = vector.broadcast %cst_102 : f32 to vector<16x1xf32>
    %256 = arith.mulf %254, %255 : vector<16x1xf32>
    %257 = vector.broadcast %256 : vector<16x1xf32> to vector<16x128xf32>
    %258 = arith.subf %248, %257 : vector<16x128xf32>
    %259 = vector.broadcast %4 : vector<1x128xf32> to vector<16x128xf32>
    %260 = arith.mulf %258, %259 : vector<16x128xf32>
    %261 = arith.mulf %260, %260 : vector<16x128xf32>
    %cst_103 = arith.constant dense<0.000000e+00> : vector<16xf32>
    %262 = vector.multi_reduction <add>, %261, %cst_103 [1] : vector<16x128xf32> to vector<16xf32>
    %263 = vector.shape_cast %262 : vector<16xf32> to vector<16x1xf32>
    %cst_104 = arith.constant 3.125000e-02 : f32
    %264 = vector.broadcast %cst_104 : f32 to vector<16x1xf32>
    %265 = arith.mulf %263, %264 : vector<16x1xf32>
    %266 = vector.broadcast %256 : vector<16x1xf32> to vector<16x128xf32>
    %267 = arith.subf %248, %266 : vector<16x128xf32>
    %cst_105 = arith.constant 9.99999974E-6 : f32
    %268 = vector.broadcast %cst_105 : f32 to vector<16x1xf32>
    %269 = arith.addf %265, %268 : vector<16x1xf32>
    %270 = math.rsqrt %269 : vector<16x1xf32>
    %271 = vector.broadcast %270 : vector<16x1xf32> to vector<16x128xf32>
    %272 = arith.mulf %267, %271 : vector<16x128xf32>
    %273 = vector.broadcast %250 : vector<1x128xf32> to vector<16x128xf32>
    %274 = arith.mulf %272, %273 : vector<16x128xf32>
    %275 = vector.broadcast %252 : vector<1x128xf32> to vector<16x128xf32>
    %276 = arith.addf %274, %275 : vector<16x128xf32>
    %277 = arith.truncf %276 : vector<16x128xf32> to vector<16x128xbf16>
    %c1_106 = arith.constant 1 : index
    %c0_107 = arith.constant 0 : index
    %c0_108 = arith.constant 0 : index
    %278 = vector.load %arg10[%c1_106, %c0_107, %c0_108] : memref<2x128x128xbf16, #tpu.memory_space<vmem>>, vector<1x128x128xbf16>
    %279 = vector.shape_cast %278 : vector<1x128x128xbf16> to vector<128x128xbf16>
    %cst_109 = arith.constant dense<0.000000e+00> : vector<16x128xf32>
    %280 = tpu.matmul %277, %279, %cst_109 {dimension_numbers = #tpu.dot_dimension_numbers<[1], [0], [0], [1], [0, 0, 1, 1], [], []>} : vector<16x128xbf16>, vector<128x128xbf16>, vector<16x128xf32> -> vector<16x128xf32>
    %c1_110 = arith.constant 1 : index
    %c0_111 = arith.constant 0 : index
    %c0_112 = arith.constant 0 : index
    %281 = vector.load %arg11[%c1_110, %c0_111, %c0_112] : memref<2x1x128xf32, #tpu.memory_space<vmem>>, vector<1x1x128xf32>
    %282 = vector.shape_cast %281 : vector<1x1x128xf32> to vector<1x128xf32>
    %283 = vector.broadcast %282 : vector<1x128xf32> to vector<16x128xf32>
    %284 = arith.addf %280, %283 : vector<16x128xf32>
    %285 = arith.negf %284 : vector<16x128xf32>
    %286 = math.exp %285 : vector<16x128xf32>
    %cst_113 = arith.constant 1.000000e+00 : f32
    %287 = vector.broadcast %cst_113 : f32 to vector<16x128xf32>
    %288 = arith.addf %287, %286 : vector<16x128xf32>
    %289 = arith.divf %287, %288 : vector<16x128xf32>
    %290 = arith.mulf %284, %289 : vector<16x128xf32>
    %291 = arith.truncf %290 : vector<16x128xf32> to vector<16x128xbf16>
    %c1_114 = arith.constant 1 : index
    %c0_115 = arith.constant 0 : index
    %c0_116 = arith.constant 0 : index
    %292 = vector.load %arg12[%c1_114, %c0_115, %c0_116] : memref<2x128x128xbf16, #tpu.memory_space<vmem>>, vector<1x128x128xbf16>
    %293 = vector.shape_cast %292 : vector<1x128x128xbf16> to vector<128x128xbf16>
    %cst_117 = arith.constant dense<0.000000e+00> : vector<16x128xf32>
    %294 = tpu.matmul %291, %293, %cst_117 {dimension_numbers = #tpu.dot_dimension_numbers<[1], [0], [0], [1], [0, 0, 1, 1], [], []>} : vector<16x128xbf16>, vector<128x128xbf16>, vector<16x128xf32> -> vector<16x128xf32>
    %295 = arith.addf %248, %294 : vector<16x128xf32>
    %c1_118 = arith.constant 1 : index
    %c0_119 = arith.constant 0 : index
    %c0_120 = arith.constant 0 : index
    %296 = vector.load %arg13[%c1_118, %c0_119, %c0_120] : memref<2x1x128xf32, #tpu.memory_space<vmem>>, vector<1x1x128xf32>
    %297 = vector.shape_cast %296 : vector<1x1x128xf32> to vector<1x128xf32>
    %298 = vector.broadcast %297 : vector<1x128xf32> to vector<16x128xf32>
    %299 = arith.addf %295, %298 : vector<16x128xf32>
    %300 = vector.shape_cast %299 : vector<16x128xf32> to vector<2x8x128xf32>
    %cst_121 = arith.constant dense<0.000000e+00> : vector<2x128xf32>
    %301 = vector.multi_reduction <add>, %300, %cst_121 [1] : vector<2x8x128xf32> to vector<2x128xf32>
    %cst_122 = arith.constant 8.000000e+00 : f32
    %302 = vector.broadcast %cst_122 : f32 to vector<2x128xf32>
    %303 = arith.divf %301, %302 : vector<2x128xf32>
    %c0_123 = arith.constant 0 : index
    %c0_124 = arith.constant 0 : index
    %304 = vector.load %arg14[%c0_123, %c0_124] : memref<1x128xf32, #tpu.memory_space<vmem>>, vector<1x128xf32>
    %c0_125 = arith.constant 0 : index
    %c0_126 = arith.constant 0 : index
    %305 = vector.load %arg15[%c0_125, %c0_126] : memref<1x128xf32, #tpu.memory_space<vmem>>, vector<1x128xf32>
    %cst_127 = arith.constant dense<0.000000e+00> : vector<2xf32>
    %306 = vector.multi_reduction <add>, %303, %cst_127 [1] : vector<2x128xf32> to vector<2xf32>
    %307 = vector.shape_cast %306 : vector<2xf32> to vector<2x1xf32>
    %cst_128 = arith.constant 3.125000e-02 : f32
    %308 = vector.broadcast %cst_128 : f32 to vector<2x1xf32>
    %309 = arith.mulf %307, %308 : vector<2x1xf32>
    %310 = vector.broadcast %309 : vector<2x1xf32> to vector<2x128xf32>
    %311 = arith.subf %303, %310 : vector<2x128xf32>
    %312 = vector.broadcast %4 : vector<1x128xf32> to vector<2x128xf32>
    %313 = arith.mulf %311, %312 : vector<2x128xf32>
    %314 = arith.mulf %313, %313 : vector<2x128xf32>
    %cst_129 = arith.constant dense<0.000000e+00> : vector<2xf32>
    %315 = vector.multi_reduction <add>, %314, %cst_129 [1] : vector<2x128xf32> to vector<2xf32>
    %316 = vector.shape_cast %315 : vector<2xf32> to vector<2x1xf32>
    %cst_130 = arith.constant 3.125000e-02 : f32
    %317 = vector.broadcast %cst_130 : f32 to vector<2x1xf32>
    %318 = arith.mulf %316, %317 : vector<2x1xf32>
    %319 = vector.broadcast %309 : vector<2x1xf32> to vector<2x128xf32>
    %320 = arith.subf %303, %319 : vector<2x128xf32>
    %cst_131 = arith.constant 9.99999974E-6 : f32
    %321 = vector.broadcast %cst_131 : f32 to vector<2x1xf32>
    %322 = arith.addf %318, %321 : vector<2x1xf32>
    %323 = math.rsqrt %322 : vector<2x1xf32>
    %324 = vector.broadcast %323 : vector<2x1xf32> to vector<2x128xf32>
    %325 = arith.mulf %320, %324 : vector<2x128xf32>
    %326 = vector.broadcast %304 : vector<1x128xf32> to vector<2x128xf32>
    %327 = arith.mulf %325, %326 : vector<2x128xf32>
    %328 = vector.broadcast %305 : vector<1x128xf32> to vector<2x128xf32>
    %329 = arith.addf %327, %328 : vector<2x128xf32>
    %c0_132 = arith.constant 0 : index
    %c0_133 = arith.constant 0 : index
    %330 = vector.load %arg16[%c0_132, %c0_133] : memref<128x128xf32, #tpu.memory_space<vmem>>, vector<128x128xf32>
    %cst_134 = arith.constant dense<0.000000e+00> : vector<2x128xf32>
    %331 = tpu.matmul %329, %330, %cst_134 {dimension_numbers = #tpu.dot_dimension_numbers<[1], [0], [0], [1], [0, 0, 1, 1], [], []>} : vector<2x128xf32>, vector<128x128xf32>, vector<2x128xf32> -> vector<2x128xf32>
    %c0_135 = arith.constant 0 : index
    %c0_136 = arith.constant 0 : index
    %332 = vector.load %arg17[%c0_135, %c0_136] : memref<1x128xf32, #tpu.memory_space<vmem>>, vector<1x128xf32>
    %333 = vector.broadcast %332 : vector<1x128xf32> to vector<2x128xf32>
    %334 = arith.addf %331, %333 : vector<2x128xf32>
    %335 = arith.negf %334 : vector<2x128xf32>
    %336 = math.exp %335 : vector<2x128xf32>
    %cst_137 = arith.constant 1.000000e+00 : f32
    %337 = vector.broadcast %cst_137 : f32 to vector<2x128xf32>
    %338 = arith.addf %337, %336 : vector<2x128xf32>
    %339 = arith.divf %337, %338 : vector<2x128xf32>
    %340 = arith.mulf %334, %339 : vector<2x128xf32>
    %c0_138 = arith.constant 0 : index
    %c0_139 = arith.constant 0 : index
    %341 = vector.load %arg18[%c0_138, %c0_139] : memref<128x128xf32, #tpu.memory_space<vmem>>, vector<128x128xf32>
    %cst_140 = arith.constant dense<0.000000e+00> : vector<2x128xf32>
    %342 = tpu.matmul %340, %341, %cst_140 {dimension_numbers = #tpu.dot_dimension_numbers<[1], [0], [0], [1], [0, 0, 1, 1], [], []>} : vector<2x128xf32>, vector<128x128xf32>, vector<2x128xf32> -> vector<2x128xf32>
    %c0_141 = arith.constant 0 : index
    %c0_142 = arith.constant 0 : index
    %343 = vector.load %arg19[%c0_141, %c0_142] : memref<1x128xf32, #tpu.memory_space<vmem>>, vector<1x128xf32>
    %344 = vector.broadcast %343 : vector<1x128xf32> to vector<2x128xf32>
    %345 = arith.addf %342, %344 : vector<2x128xf32>
    %c0_143 = arith.constant 0 : index
    %c0_144 = arith.constant 0 : index
    %346 = vector.load %arg20[%c0_143, %c0_144] : memref<2x128xf32, #tpu.memory_space<vmem>>, vector<2x128xf32>
    tpu.vector_store %arg20[%c0_143, %c0_144], %345 {strides = array<i32>} : memref<2x128xf32, #tpu.memory_space<vmem>>, vector<2x128xf32>,
    return
  }
  func.func @transform_0(%arg0: i32) -> (i32, i32) {
    %c0_i32 = arith.constant 0 : i32
    %c0_i32_0 = arith.constant 0 : i32
    %c0_i32_1 = arith.constant 0 : i32
    return %c0_i32, %c0_i32_0 : i32, i32
  }
  func.func @transform_1(%arg0: i32) -> (i32, i32, i32) {
    %c0_i32 = arith.constant 0 : i32
    %c0_i32_0 = arith.constant 0 : i32
    %c0_i32_1 = arith.constant 0 : i32
    %c0_i32_2 = arith.constant 0 : i32
    return %c0_i32, %c0_i32_0, %c0_i32_1 : i32, i32, i32
  }
  func.func @transform_2(%arg0: i32) -> (i32, i32, i32) {
    %c0_i32 = arith.constant 0 : i32
    %c0_i32_0 = arith.constant 0 : i32
    %c0_i32_1 = arith.constant 0 : i32
    %c0_i32_2 = arith.constant 0 : i32
    return %c0_i32, %c0_i32_0, %c0_i32_1 : i32, i32, i32
  }
  func.func @transform_3(%arg0: i32) -> (i32, i32, i32) {
    %c0_i32 = arith.constant 0 : i32
    %c0_i32_0 = arith.constant 0 : i32
    %c0_i32_1 = arith.constant 0 : i32
    %c0_i32_2 = arith.constant 0 : i32
    return %c0_i32, %c0_i32_0, %c0_i32_1 : i32, i32, i32
  }
  func.func @transform_4(%arg0: i32) -> (i32, i32, i32) {
    %c0_i32 = arith.constant 0 : i32
    %c0_i32_0 = arith.constant 0 : i32
    %c0_i32_1 = arith.constant 0 : i32
    %c0_i32_2 = arith.constant 0 : i32
    return %c0_i32, %c0_i32_0, %c0_i32_1 : i32, i32, i32
  }
  func.func @transform_5(%arg0: i32) -> (i32, i32, i32) {
    %c0_i32 = arith.constant 0 : i32
    %c0_i32_0 = arith.constant 0 : i32
    %c0_i32_1 = arith.constant 0 : i32
    %c0_i32_2 = arith.constant 0 : i32
    return %c0_i32, %c0_i32_0, %c0_i32_1 : i32, i32, i32
  }
  func.func @transform_6(%arg0: i32) -> (i32, i32, i32) {
    %c0_i32 = arith.constant 0 : i32
    %c0_i32_0 = arith.constant 0 : i32
    %c0_i32_1 = arith.constant 0 : i32
    %c0_i32_2 = arith.constant 0 : i32
    return %c0_i32, %c0_i32_0, %c0_i32_1 : i32, i32, i32
  }
  func.func @transform_7(%arg0: i32) -> (i32, i32, i32) {
    %c0_i32 = arith.constant 0 : i32
    %c0_i32_0 = arith.constant 0 : i32
    %c0_i32_1 = arith.constant 0 : i32
    %c0_i32_2 = arith.constant 0 : i32
    return %c0_i32, %c0_i32_0, %c0_i32_1 : i32, i32, i32
  }
  func.func @transform_8(%arg0: i32) -> (i32, i32, i32) {
    %c0_i32 = arith.constant 0 : i32
    %c0_i32_0 = arith.constant 0 : i32
    %c0_i32_1 = arith.constant 0 : i32
    %c0_i32_2 = arith.constant 0 : i32
    return %c0_i32, %c0_i32_0, %c0_i32_1 : i32, i32, i32
  }
  func.func @transform_9(%arg0: i32) -> (i32, i32, i32) {
    %c0_i32 = arith.constant 0 : i32
    %c0_i32_0 = arith.constant 0 : i32
    %c0_i32_1 = arith.constant 0 : i32
    %c0_i32_2 = arith.constant 0 : i32
    return %c0_i32, %c0_i32_0, %c0_i32_1 : i32, i32, i32
  }
  func.func @transform_10(%arg0: i32) -> (i32, i32, i32) {
    %c0_i32 = arith.constant 0 : i32
    %c0_i32_0 = arith.constant 0 : i32
    %c0_i32_1 = arith.constant 0 : i32
    %c0_i32_2 = arith.constant 0 : i32
    return %c0_i32, %c0_i32_0, %c0_i32_1 : i32, i32, i32
  }
  func.func @transform_11(%arg0: i32) -> (i32, i32, i32) {
    %c0_i32 = arith.constant 0 : i32
    %c0_i32_0 = arith.constant 0 : i32
    %c0_i32_1 = arith.constant 0 : i32
    %c0_i32_2 = arith.constant 0 : i32
    return %c0_i32, %c0_i32_0, %c0_i32_1 : i32, i32, i32
  }
  func.func @transform_12(%arg0: i32) -> (i32, i32, i32) {
    %c0_i32 = arith.constant 0 : i32
    %c0_i32_0 = arith.constant 0 : i32
    %c0_i32_1 = arith.constant 0 : i32
    %c0_i32_2 = arith.constant 0 : i32
    return %c0_i32, %c0_i32_0, %c0_i32_1 : i32, i32, i32
  }
  func.func @transform_13(%arg0: i32) -> (i32, i32) {
    %c0_i32 = arith.constant 0 : i32
    %c0_i32_0 = arith.constant 0 : i32
    %c0_i32_1 = arith.constant 0 : i32
    return %c0_i32, %c0_i32_0 : i32, i32
  }
  func.func @transform_14(%arg0: i32) -> (i32, i32) {
    %c0_i32 = arith.constant 0 : i32
    %c0_i32_0 = arith.constant 0 : i32
    %c0_i32_1 = arith.constant 0 : i32
    return %c0_i32, %c0_i32_0 : i32, i32
  }
  func.func @transform_15(%arg0: i32) -> (i32, i32) {
    %c0_i32 = arith.constant 0 : i32
    %c0_i32_0 = arith.constant 0 : i32
    %c0_i32_1 = arith.constant 0 : i32
    return %c0_i32, %c0_i32_0 : i32, i32
  }
  func.func @transform_16(%arg0: i32) -> (i32, i32) {
    %c0_i32 = arith.constant 0 : i32
    %c0_i32_0 = arith.constant 0 : i32
    %c0_i32_1 = arith.constant 0 : i32
    return %c0_i32, %c0_i32_0 : i32, i32
  }
  func.func @transform_17(%arg0: i32) -> (i32, i32) {
    %c0_i32 = arith.constant 0 : i32
    %c0_i32_0 = arith.constant 0 : i32
    %c0_i32_1 = arith.constant 0 : i32
    return %c0_i32, %c0_i32_0 : i32, i32
  }
  func.func @transform_18(%arg0: i32) -> (i32, i32) {
    %c0_i32 = arith.constant 0 : i32
    %c0_i32_0 = arith.constant 0 : i32
    %c0_i32_1 = arith.constant 0 : i32
    return %c0_i32, %c0_i32_0 : i32, i32
  }
  func.func @transform_19(%arg0: i32) -> (i32, i32) {
    %c0_i32 = arith.constant 0 : i32
    %c0_i32_0 = arith.constant 0 : i32
    %c0_i32_1 = arith.constant 0 : i32
    return %c0_i32, %c0_i32_0 : i32, i32
  }
}

</mosaic_0001>

<llo_original>
// kernel: tpu_custom_call.1
$region0: #{tpu_custom_call.1}
  #allocation0 [shape = 'u32[]', space=smem, size = 0x4, offset = 0x4, fixed_abs, tag = 'smem constant byte address 0x4 - core index']
  #allocation1 [shape = 'u32[72,128]{1,0:T(1,128)}', space=vmem, size = 0x9000, scoped, tag = 'internal scratch']
  %s0 = inlined_call_operand.hbm [shape: f32[16,128], index: 0, kind: input, shape index: {}]
  %s1 = inlined_call_operand.hbm [shape: f32[2,1,128], index: 1, kind: input, shape index: {}]
  %s2 = inlined_call_operand.hbm [shape: f32[2,1,128], index: 2, kind: input, shape index: {}]
  %s3 = inlined_call_operand.hbm [shape: bf16[2,128,768], index: 3, kind: input, shape index: {}]
  %s4 = inlined_call_operand.hbm [shape: f32[2,1,768], index: 4, kind: input, shape index: {}]
  %s5 = inlined_call_operand.hbm [shape: bf16[2,256,128], index: 5, kind: input, shape index: {}]
  %s6 = inlined_call_operand.vmem [shape: f32[2,1,128], index: 6, kind: input, shape index: {}]
  %s7 = inlined_call_operand.vmem [shape: f32[2,1,128], index: 7, kind: input, shape index: {}]
  %s8 = inlined_call_operand.vmem [shape: f32[2,1,128], index: 8, kind: input, shape index: {}]
  %s9 = inlined_call_operand.hbm [shape: bf16[2,128,128], index: 9, kind: input, shape index: {}]
  %s10 = inlined_call_operand.vmem [shape: f32[2,1,128], index: 10, kind: input, shape index: {}]
  %s11 = inlined_call_operand.hbm [shape: bf16[2,128,128], index: 11, kind: input, shape index: {}]
  %s12 = inlined_call_operand.vmem [shape: f32[2,1,128], index: 12, kind: input, shape index: {}]
  %s13 = inlined_call_operand.vmem [shape: f32[1,128], index: 13, kind: input, shape index: {}]
  %s14 = inlined_call_operand.vmem [shape: f32[1,128], index: 14, kind: input, shape index: {}]
  %s15 = inlined_call_operand.hbm [shape: f32[128,128], index: 15, kind: input, shape index: {}]
  %s16 = inlined_call_operand.vmem [shape: f32[1,128], index: 16, kind: input, shape index: {}]
  %s17 = inlined_call_operand.hbm [shape: f32[128,128], index: 17, kind: input, shape index: {}]
  %s18 = inlined_call_operand.vmem [shape: f32[1,128], index: 18, kind: input, shape index: {}]
  %s19 = inlined_call_operand.hbm [shape: f32[2,128], index: 19, kind: output, shape index: {}]
  %s20 = sld [smem:[#allocation0]]
  $region126: #{tpu_custom_call.1} parent=0
    _
  %s22 = ssub.s32 1, %s20
  %s23 = scalar_select 0, %s22, %s20
  $region1: #{tpu_custom_call.1} parent=0
    #allocation2 [shape = 'u8[8192]{0}', space=vmem, size = 0x2000, scoped, tag = 'input window, operand 0, single buffered']
    #allocation3 [shape = 's32[1]{0}', space=sflag, size = 0x4, scoped, tag = 'scoped memory for tpu_custom_call.1']
    #allocation4 [shape = 's32[1]{0}', space=sflag, size = 0x4, scoped, tag = 'scoped memory for tpu_custom_call.1']
    #allocation5 [shape = 'u8[1024]{0}', space=vmem, size = 0x400, scoped, tag = 'input window, operand 1, single buffered']
    #allocation6 [shape = 's32[1]{0}', space=sflag, size = 0x4, scoped, tag = 'scoped memory for tpu_custom_call.1']
    #allocation7 [shape = 'u8[1024]{0}', space=vmem, size = 0x400, scoped, tag = 'input window, operand 2, single buffered']
    #allocation8 [shape = 'u8[393216]{0}', space=vmem, size = 0x60000, scoped, tag = 'input window, operand 3, single buffered']
    #allocation9 [shape = 's32[1]{0}', space=sflag, size = 0x4, scoped, tag = 'scoped memory for tpu_custom_call.1']
    #allocation10 [shape = 'u8[6144]{0}', space=vmem, size = 0x1800, scoped, tag = 'input window, operand 4, single buffered']
    #allocation11 [shape = 'u8[131072]{0}', space=vmem, size = 0x20000, scoped, tag = 'input window, operand 5, single buffered']
    #allocation12 [shape = 's32[1]{0}', space=sflag, size = 0x4, scoped, tag = 'scoped memory for tpu_custom_call.1']
    #allocation13 [shape = 'u8[65536]{0}', space=vmem, size = 0x10000, scoped, tag = 'input window, operand 9, single buffered']
    #allocation14 [shape = 'u8[65536]{0}', space=vmem, size = 0x10000, scoped, tag = 'input window, operand 11, single buffered']
    #allocation15 [shape = 's32[1]{0}', space=sflag, size = 0x4, scoped, tag = 'scoped memory for tpu_custom_call.1']
    #allocation16 [shape = 'u8[65536]{0}', space=vmem, size = 0x10000, scoped, tag = 'input window, operand 15, single buffered']
    #allocation17 [shape = 'u8[65536]{0}', space=vmem, size = 0x10000, scoped, tag = 'input window, operand 17, single buffered']
    #allocation18 [shape = 's32[1]{0}', space=sflag, size = 0x4, scoped, tag = 'scoped memory for tpu_custom_call.1']
    #allocation19 [shape = 'u8[1024]{0}', space=vmem, size = 0x400, scoped, tag = 'output window, operand 0, single buffered']
    %24 = vsyncpa [#allocation3], 0
    %25 = vsyncpa [#allocation6], 0
    %26 = vsyncpa [#allocation9], 0
    %27 = vsyncpa [#allocation12], 0
    %28 = vsyncpa [#allocation15], 0
    %29 = vsyncpa [#allocation18], 0
    %30 = vsyncpa [#allocation4], 0
    // Predicated region
    $region2: #{tpu_custom_call.1} parent=1 // pred_check
      _
    $region3: #{tpu_custom_call.1} parent=1 // pred_check_branch
      %32 = sbr.rel (0) target = $region5
    $region4: #{tpu_custom_call.1} parent=1 // pred_region
      %34 = vsyncadd [#allocation3], 0
      %s35 = sshll.u32 %s0, 4
      %s36 = int_to_ptr.hbm [resolvable:$true] %s35
      %s37 = sshll.u32 [#allocation2], 4
      %s38 = int_to_ptr.vmem [resolvable:$true] %s37
      %43 = dma.hbm_to_vmem [thread:$0]  %s36, 256, %s38, [#allocation3], 128, 128, 8
    $region5: #{tpu_custom_call.1} parent=1 // pred_fallthru
      _
    // Predicated region
    $region6: #{tpu_custom_call.1} parent=1 // pred_check
      _
    $region7: #{tpu_custom_call.1} parent=1 // pred_check_branch
      %45 = sbr.rel (0) target = $region9
    $region8: #{tpu_custom_call.1} parent=1 // pred_region
      %47 = vsyncadd [#allocation6], 0
      %s48 = sshll.u32 %s1, 4
      %s49 = int_to_ptr.hbm [resolvable:$true] %s48
      %s50 = sshll.u32 [#allocation5], 4
      %s51 = int_to_ptr.vmem [resolvable:$true] %s50
      %56 = dma.hbm_to_vmem [thread:$0]  %s49, 32, %s51, [#allocation6], 16, 16, 1
    $region9: #{tpu_custom_call.1} parent=1 // pred_fallthru
      _
    // Predicated region
    $region10: #{tpu_custom_call.1} parent=1 // pred_check
      _
    $region11: #{tpu_custom_call.1} parent=1 // pred_check_branch
      %58 = sbr.rel (0) target = $region13
    $region12: #{tpu_custom_call.1} parent=1 // pred_region
      %60 = vsyncadd [#allocation6], 0
      %s61 = sshll.u32 %s2, 4
      %s62 = int_to_ptr.hbm [resolvable:$true] %s61
      %s63 = sshll.u32 [#allocation7], 4
      %s64 = int_to_ptr.vmem [resolvable:$true] %s63
      %69 = dma.hbm_to_vmem [thread:$0]  %s62, 32, %s64, [#allocation6], 16, 16, 1
    $region13: #{tpu_custom_call.1} parent=1 // pred_fallthru
      _
    // Predicated region
    $region14: #{tpu_custom_call.1} parent=1 // pred_check
      _
    $region15: #{tpu_custom_call.1} parent=1 // pred_check_branch
      %71 = sbr.rel (0) target = $region17
    $region16: #{tpu_custom_call.1} parent=1 // pred_region
      %73 = vsyncadd [#allocation9], 0
      %s74 = sshll.u32 %s3, 4
      %s75 = int_to_ptr.hbm [resolvable:$true] %s74
      %s76 = sshll.u32 [#allocation8], 4
      %s77 = int_to_ptr.vmem [resolvable:$true] %s76
      %82 = dma.hbm_to_vmem [thread:$0]  %s75, 12288, %s77, [#allocation9], 384, 384, 24
    $region17: #{tpu_custom_call.1} parent=1 // pred_fallthru
      _
    // Predicated region
    $region18: #{tpu_custom_call.1} parent=1 // pred_check
      _
    $region19: #{tpu_custom_call.1} parent=1 // pred_check_branch
      %84 = sbr.rel (0) target = $region21
    $region20: #{tpu_custom_call.1} parent=1 // pred_region
      %86 = vsyncadd [#allocation9], 0
      %s87 = sshll.u32 %s4, 4
      %s88 = int_to_ptr.hbm [resolvable:$true] %s87
      %s89 = sshll.u32 [#allocation10], 4
      %s90 = int_to_ptr.vmem [resolvable:$true] %s89
      %95 = dma.hbm_to_vmem [thread:$0]  %s88, 192, %s90, [#allocation9], 96, 96, 6
    $region21: #{tpu_custom_call.1} parent=1 // pred_fallthru
      _
    // Predicated region
    $region22: #{tpu_custom_call.1} parent=1 // pred_check
      _
    $region23: #{tpu_custom_call.1} parent=1 // pred_check_branch
      %97 = sbr.rel (0) target = $region25
    $region24: #{tpu_custom_call.1} parent=1 // pred_region
      %99 = vsyncadd [#allocation12], 0
      %s100 = sshll.u32 %s5, 4
      %s101 = int_to_ptr.hbm [resolvable:$true] %s100
      %s102 = sshll.u32 [#allocation11], 4
      %s103 = int_to_ptr.vmem [resolvable:$true] %s102
      %108 = dma.hbm_to_vmem [thread:$0]  %s101, 4096, %s103, [#allocation12], 64, 64, 4
    $region25: #{tpu_custom_call.1} parent=1 // pred_fallthru
      _
    // Predicated region
    $region26: #{tpu_custom_call.1} parent=1 // pred_check
      _
    $region27: #{tpu_custom_call.1} parent=1 // pred_check_branch
      %110 = sbr.rel (0) target = $region29
    $region28: #{tpu_custom_call.1} parent=1 // pred_region
      _
    $region29: #{tpu_custom_call.1} parent=1 // pred_fallthru
      _
    // Predicated region
    $region30: #{tpu_custom_call.1} parent=1 // pred_check
      _
    $region31: #{tpu_custom_call.1} parent=1 // pred_check_branch
      %112 = sbr.rel (0) target = $region33
    $region32: #{tpu_custom_call.1} parent=1 // pred_region
      _
    $region33: #{tpu_custom_call.1} parent=1 // pred_fallthru
      _
    // Predicated region
    $region34: #{tpu_custom_call.1} parent=1 // pred_check
      _
    $region35: #{tpu_custom_call.1} parent=1 // pred_check_branch
      %114 = sbr.rel (0) target = $region37
    $region36: #{tpu_custom_call.1} parent=1 // pred_region
      _
    $region37: #{tpu_custom_call.1} parent=1 // pred_fallthru
      _
    // Predicated region
    $region38: #{tpu_custom_call.1} parent=1 // pred_check
      _
    $region39: #{tpu_custom_call.1} parent=1 // pred_check_branch
      %116 = sbr.rel (0) target = $region41
    $region40: #{tpu_custom_call.1} parent=1 // pred_region
      %118 = vsyncadd [#allocation12], 0
      %s119 = sshll.u32 %s9, 4
      %s120 = int_to_ptr.hbm [resolvable:$true] %s119
      %s121 = sshll.u32 [#allocation13], 4
      %s122 = int_to_ptr.vmem [resolvable:$true] %s121
      %127 = dma.hbm_to_vmem [thread:$0]  %s120, 2048, %s122, [#allocation12], 64, 64, 4
    $region41: #{tpu_custom_call.1} parent=1 // pred_fallthru
      _
    // Predicated region
    $region42: #{tpu_custom_call.1} parent=1 // pred_check
      _
    $region43: #{tpu_custom_call.1} parent=1 // pred_check_branch
      %129 = sbr.rel (0) target = $region45
    $region44: #{tpu_custom_call.1} parent=1 // pred_region
      _
    $region45: #{tpu_custom_call.1} parent=1 // pred_fallthru
      _
    // Predicated region
    $region46: #{tpu_custom_call.1} parent=1 // pred_check
      _
    $region47: #{tpu_custom_call.1} parent=1 // pred_check_branch
      %131 = sbr.rel (0) target = $region49
    $region48: #{tpu_custom_call.1} parent=1 // pred_region
      %133 = vsyncadd [#allocation15], 0
      %s134 = sshll.u32 %s11, 4
      %s135 = int_to_ptr.hbm [resolvable:$true] %s134
      %s136 = sshll.u32 [#allocation14], 4
      %s137 = int_to_ptr.vmem [resolvable:$true] %s136
      %142 = dma.hbm_to_vmem [thread:$0]  %s135, 2048, %s137, [#allocation15], 64, 64, 4
    $region49: #{tpu_custom_call.1} parent=1 // pred_fallthru
      _
    // Predicated region
    $region50: #{tpu_custom_call.1} parent=1 // pred_check
      _
    $region51: #{tpu_custom_call.1} parent=1 // pred_check_branch
      %144 = sbr.rel (0) target = $region53
    $region52: #{tpu_custom_call.1} parent=1 // pred_region
      _
    $region53: #{tpu_custom_call.1} parent=1 // pred_fallthru
      _
    // Predicated region
    $region54: #{tpu_custom_call.1} parent=1 // pred_check
      _
    $region55: #{tpu_custom_call.1} parent=1 // pred_check_branch
      %146 = sbr.rel (0) target = $region57
    $region56: #{tpu_custom_call.1} parent=1 // pred_region
      _
    $region57: #{tpu_custom_call.1} parent=1 // pred_fallthru
      _
    // Predicated region
    $region58: #{tpu_custom_call.1} parent=1 // pred_check
      _
    $region59: #{tpu_custom_call.1} parent=1 // pred_check_branch
      %148 = sbr.rel (0) target = $region61
    $region60: #{tpu_custom_call.1} parent=1 // pred_region
      _
    $region61: #{tpu_custom_call.1} parent=1 // pred_fallthru
      _
    // Predicated region
    $region62: #{tpu_custom_call.1} parent=1 // pred_check
      _
    $region63: #{tpu_custom_call.1} parent=1 // pred_check_branch
      %150 = sbr.rel (0) target = $region65
    $region64: #{tpu_custom_call.1} parent=1 // pred_region
      %152 = vsyncadd [#allocation15], 0
      %s153 = sshll.u32 %s15, 4
      %s154 = int_to_ptr.hbm [resolvable:$true] %s153
      %s155 = sshll.u32 [#allocation16], 4
      %s156 = int_to_ptr.vmem [resolvable:$true] %s155
      %161 = dma.hbm_to_vmem [thread:$0]  %s154, 2048, %s156, [#allocation15], 128, 128, 8
    $region65: #{tpu_custom_call.1} parent=1 // pred_fallthru
      _
    // Predicated region
    $region66: #{tpu_custom_call.1} parent=1 // pred_check
      _
    $region67: #{tpu_custom_call.1} parent=1 // pred_check_branch
      %163 = sbr.rel (0) target = $region69
    $region68: #{tpu_custom_call.1} parent=1 // pred_region
      _
    $region69: #{tpu_custom_call.1} parent=1 // pred_fallthru
      _
    // Predicated region
    $region70: #{tpu_custom_call.1} parent=1 // pred_check
      _
    $region71: #{tpu_custom_call.1} parent=1 // pred_check_branch
      %165 = sbr.rel (0) target = $region73
    $region72: #{tpu_custom_call.1} parent=1 // pred_region
      %167 = vsyncadd [#allocation18], 0
      %s168 = sshll.u32 %s17, 4
      %s169 = int_to_ptr.hbm [resolvable:$true] %s168
      %s170 = sshll.u32 [#allocation17], 4
      %s171 = int_to_ptr.vmem [resolvable:$true] %s170
      %176 = dma.hbm_to_vmem [thread:$0]  %s169, 2048, %s171, [#allocation18], 128, 128, 8
    $region73: #{tpu_custom_call.1} parent=1 // pred_fallthru
      _
    // Predicated region
    $region74: #{tpu_custom_call.1} parent=1 // pred_check
      _
    $region75: #{tpu_custom_call.1} parent=1 // pred_check_branch
      %178 = sbr.rel (0) target = $region77
    $region76: #{tpu_custom_call.1} parent=1 // pred_region
      _
    $region77: #{tpu_custom_call.1} parent=1 // pred_fallthru
      _
    // Predicated region
    $region78: #{tpu_custom_call.1} parent=1 // pred_check
      _
    $region79: #{tpu_custom_call.1} parent=1 // pred_check_branch
      %180 = sbr.rel (0) target = $region81
    $region80: #{tpu_custom_call.1} parent=1 // pred_region
      %182 = dma.done [#allocation3], 256
    $region81: #{tpu_custom_call.1} parent=1 // pred_fallthru
      _
    // Predicated region
    $region82: #{tpu_custom_call.1} parent=1 // pred_check
      _
    $region83: #{tpu_custom_call.1} parent=1 // pred_check_branch
      %184 = sbr.rel (0) target = $region85
    $region84: #{tpu_custom_call.1} parent=1 // pred_region
      %186 = dma.done [#allocation6], 32
    $region85: #{tpu_custom_call.1} parent=1 // pred_fallthru
      _
    // Predicated region
    $region86: #{tpu_custom_call.1} parent=1 // pred_check
      _
    $region87: #{tpu_custom_call.1} parent=1 // pred_check_branch
      %188 = sbr.rel (0) target = $region89
    $region88: #{tpu_custom_call.1} parent=1 // pred_region
      %190 = dma.done [#allocation6], 32
    $region89: #{tpu_custom_call.1} parent=1 // pred_fallthru
      _
    // Predicated region
    $region90: #{tpu_custom_call.1} parent=1 // pred_check
      _
    $region91: #{tpu_custom_call.1} parent=1 // pred_check_branch
      %192 = sbr.rel (0) target = $region93
    $region92: #{tpu_custom_call.1} parent=1 // pred_region
      %194 = dma.done [#allocation9], 12288
    $region93: #{tpu_custom_call.1} parent=1 // pred_fallthru
      _
    // Predicated region
    $region94: #{tpu_custom_call.1} parent=1 // pred_check
      _
    $region95: #{tpu_custom_call.1} parent=1 // pred_check_branch
      %196 = sbr.rel (0) target = $region97
    $region96: #{tpu_custom_call.1} parent=1 // pred_region
      %198 = dma.done [#allocation9], 192
    $region97: #{tpu_custom_call.1} parent=1 // pred_fallthru
      _
    // Predicated region
    $region98: #{tpu_custom_call.1} parent=1 // pred_check
      _
    $region99: #{tpu_custom_call.1} parent=1 // pred_check_branch
      %200 = sbr.rel (0) target = $region101
    $region100: #{tpu_custom_call.1} parent=1 // pred_region
      %202 = dma.done [#allocation12], 4096
    $region101: #{tpu_custom_call.1} parent=1 // pred_fallthru
      _
    // Predicated region
    $region102: #{tpu_custom_call.1} parent=1 // pred_check
      _
    $region103: #{tpu_custom_call.1} parent=1 // pred_check_branch
      %204 = sbr.rel (0) target = $region105
    $region104: #{tpu_custom_call.1} parent=1 // pred_region
      %206 = dma.done [#allocation12], 2048
    $region105: #{tpu_custom_call.1} parent=1 // pred_fallthru
      _
    // Predicated region
    $region106: #{tpu_custom_call.1} parent=1 // pred_check
      _
    $region107: #{tpu_custom_call.1} parent=1 // pred_check_branch
      %208 = sbr.rel (0) target = $region109
    $region108: #{tpu_custom_call.1} parent=1 // pred_region
      %210 = dma.done [#allocation15], 2048
    $region109: #{tpu_custom_call.1} parent=1 // pred_fallthru
      _
    // Predicated region
    $region110: #{tpu_custom_call.1} parent=1 // pred_check
      _
    $region111: #{tpu_custom_call.1} parent=1 // pred_check_branch
      %212 = sbr.rel (0) target = $region113
    $region112: #{tpu_custom_call.1} parent=1 // pred_region
      %214 = dma.done [#allocation15], 2048
    $region113: #{tpu_custom_call.1} parent=1 // pred_fallthru
      _
    // Predicated region
    $region114: #{tpu_custom_call.1} parent=1 // pred_check
      _
    $region115: #{tpu_custom_call.1} parent=1 // pred_check_branch
      %216 = sbr.rel (0) target = $region117
    $region116: #{tpu_custom_call.1} parent=1 // pred_region
      %218 = dma.done [#allocation18], 2048
    $region117: #{tpu_custom_call.1} parent=1 // pred_fallthru
      _
    %v220 = vlaneseq
    %v221 = vand.u32 %v220, 127
    %vm222 = vcmp.lt.s32.totalorder %v221, 32
    %v223 = vsel %vm222, 1, 0
    %v224 = vcvt.s32.f32 %v223
    %v225 = vld [vmem:[#allocation2] sm:$0xff]
    %v226 = vld [vmem:[#allocation2 + $0x8] sm:$0xff]
    %v227 = vld [vmem:[#allocation5] sm:$0x1]
    %v228 = vld [vmem:[#allocation7] sm:$0x1]
    %229 = vadd.xlane.f32.xlu0 %v225
    %v230 = vpop.xlane.xlu0 %229
    %231 = vadd.xlane.f32.xlu0 %v226
    %v232 = vpop.xlane.xlu0 %231
    %v233 = vmul.f32 %v230, 0.03125
    %v234 = vmul.f32 %v232, 0.03125
    %v235 = vsub.f32 %v225, %v233
    %v236 = vsub.f32 %v226, %v234
    %v237 = vmul.f32 %v235, %v224
    %v238 = vmul.f32 %v236, %v224
    %v239 = vmul.f32 %v237, %v237
    %v240 = vmul.f32 %v238, %v238
    %241 = vadd.xlane.f32.xlu0 %v239
    %v242 = vpop.xlane.xlu0 %241
    %243 = vadd.xlane.f32.xlu0 %v240
    %v244 = vpop.xlane.xlu0 %243
    %v245 = vmul.f32 %v242, 0.03125
    %v246 = vmul.f32 %v244, 0.03125
    %v247 = vadd.f32 %v245, 1e-05
    %v248 = vadd.f32 %v246, 1e-05
    %v249 = vrsqrt.pop %v247
    %v250 = vmul.f32 %v249, %v247
    %v251 = vmul.f32 %v250, %v249
    %v252 = vmul.f32 0.5, %v251
    %v253 = vsub.f32 1.5, %v252
    %v254 = vmul.f32 %v249, %v253
    %vm255 = vweird.f32 %v247
    %vm256 = vweird.f32 %v249
    %vm257 = vmor %vm255, %vm256
    %v258 = vsel %vm257, %v249, %v254
    %v259 = vrsqrt.pop %v248
    %v260 = vmul.f32 %v259, %v248
    %v261 = vmul.f32 %v260, %v259
    %v262 = vmul.f32 0.5, %v261
    %v263 = vsub.f32 1.5, %v262
    %v264 = vmul.f32 %v259, %v263
    %vm265 = vweird.f32 %v248
    %vm266 = vweird.f32 %v259
    %vm267 = vmor %vm265, %vm266
    %v268 = vsel %vm267, %v259, %v264
    %v269 = vmul.f32 %v235, %v258
    %v270 = vmul.f32 %v236, %v268
    %v272 = vperm.slane %v227, 0
    %v274 = vmul.f32 %v269, %v272
    %v275 = vmul.f32 %v270, %v272
    %v277 = vperm.slane %v228, 0
    %v279 = vadd.f32 %v274, %v277
    %v280 = vadd.f32 %v275, %v277
    %v281 = vpack.c.bf16 %v280, %v279
    %v282 = vld [vmem:[#allocation8] sm:$0xff]
    %v283 = vld [vmem:[#allocation8 + $0x8] sm:$0xff]
    %v284 = vld [vmem:[#allocation8 + $0x10] sm:$0xff]
    %v285 = vld [vmem:[#allocation8 + $0x18] sm:$0xff]
    %v286 = vld [vmem:[#allocation8 + $0x20] sm:$0xff]
    %v287 = vld [vmem:[#allocation8 + $0x28] sm:$0xff]
    %v288 = vld [vmem:[#allocation8 + $0x30] sm:$0xff]
    %v289 = vld [vmem:[#allocation8 + $0x38] sm:$0xff]
    %v290 = vld [vmem:[#allocation8 + $0x40] sm:$0xff]
    %v291 = vld [vmem:[#allocation8 + $0x48] sm:$0xff]
    %v292 = vld [vmem:[#allocation8 + $0x50] sm:$0xff]
    %v293 = vld [vmem:[#allocation8 + $0x58] sm:$0xff]
    %v294 = vld [vmem:[#allocation8 + $0x60] sm:$0xff]
    %v295 = vld [vmem:[#allocation8 + $0x68] sm:$0xff]
    %v296 = vld [vmem:[#allocation8 + $0x70] sm:$0xff]
    %v297 = vld [vmem:[#allocation8 + $0x78] sm:$0xff]
    %v298 = vld [vmem:[#allocation8 + $0x80] sm:$0xff]
    %v299 = vld [vmem:[#allocation8 + $0x88] sm:$0xff]
    %v300 = vld [vmem:[#allocation8 + $0x90] sm:$0xff]
    %v301 = vld [vmem:[#allocation8 + $0x98] sm:$0xff]
    %v302 = vld [vmem:[#allocation8 + $0xa0] sm:$0xff]
    %v303 = vld [vmem:[#allocation8 + $0xa8] sm:$0xff]
    %v304 = vld [vmem:[#allocation8 + $0xb0] sm:$0xff]
    %v305 = vld [vmem:[#allocation8 + $0xb8] sm:$0xff]
    %v306 = vld [vmem:[#allocation8 + $0xc0] sm:$0xff]
    %v307 = vld [vmem:[#allocation8 + $0xc8] sm:$0xff]
    %v308 = vld [vmem:[#allocation8 + $0xd0] sm:$0xff]
    %v309 = vld [vmem:[#allocation8 + $0xd8] sm:$0xff]
    %v310 = vld [vmem:[#allocation8 + $0xe0] sm:$0xff]
    %v311 = vld [vmem:[#allocation8 + $0xe8] sm:$0xff]
    %v312 = vld [vmem:[#allocation8 + $0xf0] sm:$0xff]
    %v313 = vld [vmem:[#allocation8 + $0xf8] sm:$0xff]
    %v314 = vld [vmem:[#allocation8 + $0x100] sm:$0xff]
    %v315 = vld [vmem:[#allocation8 + $0x108] sm:$0xff]
    %v316 = vld [vmem:[#allocation8 + $0x110] sm:$0xff]
    %v317 = vld [vmem:[#allocation8 + $0x118] sm:$0xff]
    %v318 = vld [vmem:[#allocation8 + $0x120] sm:$0xff]
    %v319 = vld [vmem:[#allocation8 + $0x128] sm:$0xff]
    %v320 = vld [vmem:[#allocation8 + $0x130] sm:$0xff]
    %v321 = vld [vmem:[#allocation8 + $0x138] sm:$0xff]
    %v322 = vld [vmem:[#allocation8 + $0x140] sm:$0xff]
    %v323 = vld [vmem:[#allocation8 + $0x148] sm:$0xff]
    %v324 = vld [vmem:[#allocation8 + $0x150] sm:$0xff]
    %v325 = vld [vmem:[#allocation8 + $0x158] sm:$0xff]
    %v326 = vld [vmem:[#allocation8 + $0x160] sm:$0xff]
    %v327 = vld [vmem:[#allocation8 + $0x168] sm:$0xff]
    %v328 = vld [vmem:[#allocation8 + $0x170] sm:$0xff]
    %v329 = vld [vmem:[#allocation8 + $0x178] sm:$0xff]
    %v330 = vld [vmem:[#allocation10] sm:$0x3f]
    %v332 = vperm.slane %v330, 0
    %v333 = vperm.slane %v330, 1
    %v334 = vperm.slane %v330, 2
    %v335 = vperm.slane %v330, 3
    %v336 = vperm.slane %v330, 4
    %v337 = vperm.slane %v330, 5
    %v392 = vunpack.c.l.b16 %v282
    %v393 = vunpack.c.h.b16 %v282
    %v394 = vunpack.c.l.b16 %v283
    %v395 = vunpack.c.h.b16 %v283
    %v396 = vunpack.c.l.b16 %v284
    %v397 = vunpack.c.h.b16 %v284
    %v398 = vunpack.c.l.b16 %v285
    %v399 = vunpack.c.h.b16 %v285
    %v400 = vunpack.c.l.b16 %v286
    %v401 = vunpack.c.h.b16 %v286
    %v402 = vunpack.c.l.b16 %v287
    %v403 = vunpack.c.h.b16 %v287
    %v404 = vunpack.c.l.b16 %v288
    %v405 = vunpack.c.h.b16 %v288
    %v406 = vunpack.c.l.b16 %v289
    %v407 = vunpack.c.h.b16 %v289
    %v408 = vunpack.c.l.b16 %v290
    %v409 = vunpack.c.h.b16 %v290
    %v410 = vunpack.c.l.b16 %v291
    %v411 = vunpack.c.h.b16 %v291
    %v412 = vunpack.c.l.b16 %v292
    %v413 = vunpack.c.h.b16 %v292
    %v414 = vunpack.c.l.b16 %v293
    %v415 = vunpack.c.h.b16 %v293
    %v416 = vunpack.c.l.b16 %v294
    %v417 = vunpack.c.h.b16 %v294
    %v418 = vunpack.c.l.b16 %v295
    %v419 = vunpack.c.h.b16 %v295
    %v420 = vunpack.c.l.b16 %v296
    %v421 = vunpack.c.h.b16 %v296
    %v422 = vunpack.c.l.b16 %v297
    %v423 = vunpack.c.h.b16 %v297
    %v424 = vunpack.c.l.b16 %v298
    %v425 = vunpack.c.h.b16 %v298
    %v426 = vunpack.c.l.b16 %v299
    %v427 = vunpack.c.h.b16 %v299
    %v428 = vunpack.c.l.b16 %v300
    %v429 = vunpack.c.h.b16 %v300
    %v430 = vunpack.c.l.b16 %v301
    %v431 = vunpack.c.h.b16 %v301
    %v432 = vunpack.c.l.b16 %v302
    %v433 = vunpack.c.h.b16 %v302
    %v434 = vunpack.c.l.b16 %v303
    %v435 = vunpack.c.h.b16 %v303
    %v436 = vunpack.c.l.b16 %v304
    %v437 = vunpack.c.h.b16 %v304
    %v438 = vunpack.c.l.b16 %v305
    %v439 = vunpack.c.h.b16 %v305
    %v440 = vunpack.c.l.b16 %v306
    %v441 = vunpack.c.h.b16 %v306
    %v442 = vunpack.c.l.b16 %v307
    %v443 = vunpack.c.h.b16 %v307
    %v444 = vunpack.c.l.b16 %v308
    %v445 = vunpack.c.h.b16 %v308
    %v446 = vunpack.c.l.b16 %v309
    %v447 = vunpack.c.h.b16 %v309
    %v448 = vunpack.c.l.b16 %v310
    %v449 = vunpack.c.h.b16 %v310
    %v450 = vunpack.c.l.b16 %v311
    %v451 = vunpack.c.h.b16 %v311
    %v452 = vunpack.c.l.b16 %v312
    %v453 = vunpack.c.h.b16 %v312
    %v454 = vunpack.c.l.b16 %v313
    %v455 = vunpack.c.h.b16 %v313
    %v456 = vunpack.c.l.b16 %v314
    %v457 = vunpack.c.h.b16 %v314
    %v458 = vunpack.c.l.b16 %v315
    %v459 = vunpack.c.h.b16 %v315
    %v460 = vunpack.c.l.b16 %v316
    %v461 = vunpack.c.h.b16 %v316
    %v462 = vunpack.c.l.b16 %v317
    %v463 = vunpack.c.h.b16 %v317
    %v464 = vunpack.c.l.b16 %v318
    %v465 = vunpack.c.h.b16 %v318
    %v466 = vunpack.c.l.b16 %v319
    %v467 = vunpack.c.h.b16 %v319
    %v468 = vunpack.c.l.b16 %v320
    %v469 = vunpack.c.h.b16 %v320
    %v470 = vunpack.c.l.b16 %v321
    %v471 = vunpack.c.h.b16 %v321
    %v472 = vunpack.c.l.b16 %v322
    %v473 = vunpack.c.h.b16 %v322
    %v474 = vunpack.c.l.b16 %v323
    %v475 = vunpack.c.h.b16 %v323
    %v476 = vunpack.c.l.b16 %v324
    %v477 = vunpack.c.h.b16 %v324
    %v478 = vunpack.c.l.b16 %v325
    %v479 = vunpack.c.h.b16 %v325
    %v480 = vunpack.c.l.b16 %v326
    %v481 = vunpack.c.h.b16 %v326
    %v482 = vunpack.c.l.b16 %v327
    %v483 = vunpack.c.h.b16 %v327
    %v484 = vunpack.c.l.b16 %v328
    %v485 = vunpack.c.h.b16 %v328
    %v486 = vunpack.c.l.b16 %v329
    %v487 = vunpack.c.h.b16 %v329
    %v488 = vpack.c.b16 %v398, %v392
    %v489 = vpack.c.b16 %v399, %v393
    %v490 = vpack.c.b16 %v400, %v394
    %v491 = vpack.c.b16 %v401, %v395
    %v492 = vpack.c.b16 %v402, %v396
    %v493 = vpack.c.b16 %v403, %v397
    %v494 = vpack.c.b16 %v410, %v404
    %v495 = vpack.c.b16 %v411, %v405
    %v496 = vpack.c.b16 %v412, %v406
    %v497 = vpack.c.b16 %v413, %v407
    %v498 = vpack.c.b16 %v414, %v408
    %v499 = vpack.c.b16 %v415, %v409
    %v500 = vpack.c.b16 %v422, %v416
    %v501 = vpack.c.b16 %v423, %v417
    %v502 = vpack.c.b16 %v424, %v418
    %v503 = vpack.c.b16 %v425, %v419
    %v504 = vpack.c.b16 %v426, %v420
    %v505 = vpack.c.b16 %v427, %v421
    %v506 = vpack.c.b16 %v434, %v428
    %v507 = vpack.c.b16 %v435, %v429
    %v508 = vpack.c.b16 %v436, %v430
    %v509 = vpack.c.b16 %v437, %v431
    %v510 = vpack.c.b16 %v438, %v432
    %v511 = vpack.c.b16 %v439, %v433
    %v512 = vpack.c.b16 %v446, %v440
    %v513 = vpack.c.b16 %v447, %v441
    %v514 = vpack.c.b16 %v448, %v442
    %v515 = vpack.c.b16 %v449, %v443
    %v516 = vpack.c.b16 %v450, %v444
    %v517 = vpack.c.b16 %v451, %v445
    %v518 = vpack.c.b16 %v458, %v452
    %v519 = vpack.c.b16 %v459, %v453
    %v520 = vpack.c.b16 %v460, %v454
    %v521 = vpack.c.b16 %v461, %v455
    %v522 = vpack.c.b16 %v462, %v456
    %v523 = vpack.c.b16 %v463, %v457
    %v524 = vpack.c.b16 %v470, %v464
    %v525 = vpack.c.b16 %v471, %v465
    %v526 = vpack.c.b16 %v472, %v466
    %v527 = vpack.c.b16 %v473, %v467
    %v528 = vpack.c.b16 %v474, %v468
    %v529 = vpack.c.b16 %v475, %v469
    %v530 = vpack.c.b16 %v482, %v476
    %v531 = vpack.c.b16 %v483, %v477
    %v532 = vpack.c.b16 %v484, %v478
    %v533 = vpack.c.b16 %v485, %v479
    %v534 = vpack.c.b16 %v486, %v480
    %v535 = vpack.c.b16 %v487, %v481
    %584 = vmatpush.bf16.msra.mxu0 %v530
    %585 = vmatpush.bf16.msra.mxu0 %v524
    %586 = vmatpush.bf16.msra.mxu0 %v518
    %587 = vmatpush.bf16.msra.mxu0 %v512
    %588 = vmatpush.bf16.msra.mxu0 %v506
    %589 = vmatpush.bf16.msra.mxu0 %v500
    %590 = vmatpush.bf16.msra.mxu0 %v494
    %591 = vmatpush.bf16.msra.mxu0 %v488
    %592 = vmatmul.bf16.gmra.mxu0 %v281
    %v593 = vpop.f32.mrf.mxu0
    %v594 = vadd.f32 %v332, %v593
    %v595 = vpop.f32.mrf.mxu0
    %v596 = vadd.f32 %v332, %v595
    %597 = vdwg.mxu0
    %598 = vmatpush.bf16.msra.mxu0 %v531
    %599 = vmatpush.bf16.msra.mxu0 %v525
    %600 = vmatpush.bf16.msra.mxu0 %v519
    %601 = vmatpush.bf16.msra.mxu0 %v513
    %602 = vmatpush.bf16.msra.mxu0 %v507
    %603 = vmatpush.bf16.msra.mxu0 %v501
    %604 = vmatpush.bf16.msra.mxu0 %v495
    %605 = vmatpush.bf16.msra.mxu0 %v489
    %606 = vmatmul.bf16.gmra.mxu0 %v281
    %v607 = vpop.f32.mrf.mxu0
    %v608 = vadd.f32 %v333, %v607
    %v609 = vpop.f32.mrf.mxu0
    %v610 = vadd.f32 %v333, %v609
    %611 = vdwg.mxu0
    %612 = vmatpush.bf16.msra.mxu0 %v532
    %613 = vmatpush.bf16.msra.mxu0 %v526
    %614 = vmatpush.bf16.msra.mxu0 %v520
    %615 = vmatpush.bf16.msra.mxu0 %v514
    %616 = vmatpush.bf16.msra.mxu0 %v508
    %617 = vmatpush.bf16.msra.mxu0 %v502
    %618 = vmatpush.bf16.msra.mxu0 %v496
    %619 = vmatpush.bf16.msra.mxu0 %v490
    %620 = vmatmul.bf16.gmra.mxu0 %v281
    %v621 = vpop.f32.mrf.mxu0
    %v622 = vadd.f32 %v334, %v621
    %v623 = vpop.f32.mrf.mxu0
    %v624 = vadd.f32 %v334, %v623
    %625 = vdwg.mxu0
    %626 = vmatpush.bf16.msra.mxu0 %v533
    %627 = vmatpush.bf16.msra.mxu0 %v527
    %628 = vmatpush.bf16.msra.mxu0 %v521
    %629 = vmatpush.bf16.msra.mxu0 %v515
    %630 = vmatpush.bf16.msra.mxu0 %v509
    %631 = vmatpush.bf16.msra.mxu0 %v503
    %632 = vmatpush.bf16.msra.mxu0 %v497
    %633 = vmatpush.bf16.msra.mxu0 %v491
    %634 = vmatmul.bf16.gmra.mxu0 %v281
    %v635 = vpop.f32.mrf.mxu0
    %v636 = vadd.f32 %v335, %v635
    %v637 = vpop.f32.mrf.mxu0
    %v638 = vadd.f32 %v335, %v637
    %639 = vdwg.mxu0
    %640 = vmatpush.bf16.msra.mxu0 %v534
    %641 = vmatpush.bf16.msra.mxu0 %v528
    %642 = vmatpush.bf16.msra.mxu0 %v522
    %643 = vmatpush.bf16.msra.mxu0 %v516
    %644 = vmatpush.bf16.msra.mxu0 %v510
    %645 = vmatpush.bf16.msra.mxu0 %v504
    %646 = vmatpush.bf16.msra.mxu0 %v498
    %647 = vmatpush.bf16.msra.mxu0 %v492
    %648 = vmatmul.bf16.gmra.mxu0 %v281
    %v649 = vpop.f32.mrf.mxu0
    %v650 = vadd.f32 %v336, %v649
    %v651 = vpop.f32.mrf.mxu0
    %v652 = vadd.f32 %v336, %v651
    %653 = vdwg.mxu0
    %654 = vmatpush.bf16.msra.mxu0 %v535
    %655 = vmatpush.bf16.msra.mxu0 %v529
    %656 = vmatpush.bf16.msra.mxu0 %v523
    %657 = vmatpush.bf16.msra.mxu0 %v517
    %658 = vmatpush.bf16.msra.mxu0 %v511
    %659 = vmatpush.bf16.msra.mxu0 %v505
    %660 = vmatpush.bf16.msra.mxu0 %v499
    %661 = vmatpush.bf16.msra.mxu0 %v493
    %662 = vmatmul.bf16.gmra.mxu0 %v281
    %v663 = vpop.f32.mrf.mxu0
    %v664 = vadd.f32 %v337, %v663
    %v665 = vpop.f32.mrf.mxu0
    %v666 = vadd.f32 %v337, %v665
    %667 = vdwg.mxu0
    %v668 = vpack.c.bf16 %v594, %v594
    %v669 = vpack.c.bf16 %v596, %v596
    %v670 = vpack.c.bf16 %v622, %v622
    %v671 = vpack.c.bf16 %v624, %v624
    %672 = vmatpush.bf16.xpose.msra.mxu0 0
    %673 = vmatpush.bf16.xpose.msra.mxu0 0
    %674 = vmatpush.bf16.xpose.msra.mxu0 0
    %675 = vmatpush.bf16.xpose.msra.mxu0 0
    %676 = vmatpush.bf16.xpose.msra.mxu0 0
    %677 = vmatpush.bf16.xpose.msra.mxu0 0
    %678 = vmatpush.bf16.xpose.msra.mxu0 0
    %679 = vmatpush.bf16.xpose.msra.mxu0 %v670
    %680 = vmatmul.bf16.gmra.mxu0 %v668
    %v681 = vpop.f32.mrf.mxu0
    %v682 = vadd.f32 0.0, %v681
    %v683 = vpop.f32.mrf.mxu0
    %684 = vdwg.mxu0
    %685 = vmatpush.bf16.xpose.msra.mxu0 0
    %686 = vmatpush.bf16.xpose.msra.mxu0 0
    %687 = vmatpush.bf16.xpose.msra.mxu0 0
    %688 = vmatpush.bf16.xpose.msra.mxu0 0
    %689 = vmatpush.bf16.xpose.msra.mxu0 0
    %690 = vmatpush.bf16.xpose.msra.mxu0 0
    %691 = vmatpush.bf16.xpose.msra.mxu0 0
    %692 = vmatpush.bf16.xpose.msra.mxu0 %v671
    %693 = vmatmul.bf16.gmra.mxu0 %v669
    %v694 = vpop.f32.mrf.mxu0
    %v695 = vadd.f32 0.0, %v694
    %v696 = vpop.f32.mrf.mxu0
    %697 = vdwg.mxu0
    %v698 = vmul.f32 %v682, 0.25
    %v699 = vmul.f32 %v695, 0.25
    %vm700 = vcmask 64512
    %v701 = vsel %vm700, %v698, -inf
    %702 = vmax.xlane.f32.xlu0 %v701
    %v703 = vpop.xlane.xlu0 %702
    %v704 = vsel %vm700, %v699, -inf
    %705 = vmax.xlane.f32.xlu0 %v704
    %v706 = vpop.xlane.xlu0 %705
    %v707 = vsub.f32 %v698, %v703
    %v708 = vsub.f32 %v699, %v706
    %v709 = vmul.f32 %v707, 1.442695
    %v710 = vpow.pop %v709
    %v711 = vmul.f32 %v708, 1.442695
    %v712 = vpow.pop %v711
    %v713 = vsel %vm700, %v710, 0.0
    %714 = vadd.xlane.f32.xlu0 %v713
    %v715 = vpop.xlane.xlu0 %714
    %v716 = vsel %vm700, %v712, 0.0
    %717 = vadd.xlane.f32.xlu0 %v716
    %v718 = vpop.xlane.xlu0 %717
    %v719 = vrcp.pop %v715
    %v720 = vrcp.pop %v718
    %v721 = vmul.f32 %v710, %v719
    %v722 = vmul.f32 %v712, %v720
    %v723 = vpack.c.bf16 %v721, %v721
    %v724 = vpack.c.bf16 %v722, %v722
    %v725 = vpack.c.bf16 %v650, %v650
    %v726 = vpack.c.bf16 %v652, %v652
    %v728 = vsel %vm700, %v723, 0
    %vm730 = vcmask 1043456
    %v732 = vsel %vm730, %v725, 0
    %734 = vmatpush.bf16.msra.mxu0 0
    %735 = vmatpush.bf16.msra.mxu0 0
    %736 = vmatpush.bf16.msra.mxu0 0
    %737 = vmatpush.bf16.msra.mxu0 0
    %738 = vmatpush.bf16.msra.mxu0 0
    %739 = vmatpush.bf16.msra.mxu0 0
    %740 = vmatpush.bf16.msra.mxu0 0
    %741 = vmatpush.bf16.msra.mxu0 %v732
    %742 = vmatmul.bf16.gmra.mxu0 %v728
    %v743 = vpop.f32.mrf.mxu0
    %v744 = vadd.f32 0.0, %v743
    %v745 = vpop.f32.mrf.mxu0
    %746 = vdwg.mxu0
    %v748 = vsel %vm700, %v724, 0
    %v751 = vsel %vm730, %v726, 0
    %753 = vmatpush.bf16.msra.mxu0 0
    %754 = vmatpush.bf16.msra.mxu0 0
    %755 = vmatpush.bf16.msra.mxu0 0
    %756 = vmatpush.bf16.msra.mxu0 0
    %757 = vmatpush.bf16.msra.mxu0 0
    %758 = vmatpush.bf16.msra.mxu0 0
    %759 = vmatpush.bf16.msra.mxu0 0
    %760 = vmatpush.bf16.msra.mxu0 %v751
    %761 = vmatmul.bf16.gmra.mxu0 %v748
    %v762 = vpop.f32.mrf.mxu0
    %v763 = vadd.f32 0.0, %v762
    %v764 = vpop.f32.mrf.mxu0
    %765 = vdwg.mxu0
    %v766 = vpack.c.bf16 %v608, %v608
    %v767 = vpack.c.bf16 %v610, %v610
    %v768 = vpack.c.bf16 %v636, %v636
    %v769 = vpack.c.bf16 %v638, %v638
    %770 = vmatpush.bf16.xpose.msra.mxu0 0
    %771 = vmatpush.bf16.xpose.msra.mxu0 0
    %772 = vmatpush.bf16.xpose.msra.mxu0 0
    %773 = vmatpush.bf16.xpose.msra.mxu0 0
    %774 = vmatpush.bf16.xpose.msra.mxu0 0
    %775 = vmatpush.bf16.xpose.msra.mxu0 0
    %776 = vmatpush.bf16.xpose.msra.mxu0 0
    %777 = vmatpush.bf16.xpose.msra.mxu0 %v768
    %778 = vmatmul.bf16.gmra.mxu0 %v766
    %v779 = vpop.f32.mrf.mxu0
    %v780 = vadd.f32 0.0, %v779
    %v781 = vpop.f32.mrf.mxu0
    %782 = vdwg.mxu0
    %783 = vmatpush.bf16.xpose.msra.mxu0 0
    %784 = vmatpush.bf16.xpose.msra.mxu0 0
    %785 = vmatpush.bf16.xpose.msra.mxu0 0
    %786 = vmatpush.bf16.xpose.msra.mxu0 0
    %787 = vmatpush.bf16.xpose.msra.mxu0 0
    %788 = vmatpush.bf16.xpose.msra.mxu0 0
    %789 = vmatpush.bf16.xpose.msra.mxu0 0
    %790 = vmatpush.bf16.xpose.msra.mxu0 %v769
    %791 = vmatmul.bf16.gmra.mxu0 %v767
    %v792 = vpop.f32.mrf.mxu0
    %v793 = vadd.f32 0.0, %v792
    %v794 = vpop.f32.mrf.mxu0
    %795 = vdwg.mxu0
    %v796 = vmul.f32 %v780, 0.25
    %v797 = vmul.f32 %v793, 0.25
    %v798 = vsel %vm700, %v796, -inf
    %799 = vmax.xlane.f32.xlu0 %v798
    %v800 = vpop.xlane.xlu0 %799
    %v801 = vsel %vm700, %v797, -inf
    %802 = vmax.xlane.f32.xlu0 %v801
    %v803 = vpop.xlane.xlu0 %802
    %v804 = vsub.f32 %v796, %v800
    %v805 = vsub.f32 %v797, %v803
    %v806 = vmul.f32 %v804, 1.442695
    %v807 = vpow.pop %v806
    %v808 = vmul.f32 %v805, 1.442695
    %v809 = vpow.pop %v808
    %v810 = vsel %vm700, %v807, 0.0
    %811 = vadd.xlane.f32.xlu0 %v810
    %v812 = vpop.xlane.xlu0 %811
    %v813 = vsel %vm700, %v809, 0.0
    %814 = vadd.xlane.f32.xlu0 %v813
    %v815 = vpop.xlane.xlu0 %814
    %v816 = vrcp.pop %v812
    %v817 = vrcp.pop %v815
    %v818 = vmul.f32 %v807, %v816
    %v819 = vmul.f32 %v809, %v817
    %v820 = vpack.c.bf16 %v818, %v818
    %v821 = vpack.c.bf16 %v819, %v819
    %v822 = vpack.c.bf16 %v664, %v664
    %v823 = vpack.c.bf16 %v666, %v666
    %v825 = vsel %vm700, %v820, 0
    %v828 = vsel %vm730, %v822, 0
    %830 = vmatpush.bf16.msra.mxu0 0
    %831 = vmatpush.bf16.msra.mxu0 0
    %832 = vmatpush.bf16.msra.mxu0 0
    %833 = vmatpush.bf16.msra.mxu0 0
    %834 = vmatpush.bf16.msra.mxu0 0
    %835 = vmatpush.bf16.msra.mxu0 0
    %836 = vmatpush.bf16.msra.mxu0 0
    %837 = vmatpush.bf16.msra.mxu0 %v828
    %838 = vmatmul.bf16.gmra.mxu0 %v825
    %v839 = vpop.f32.mrf.mxu0
    %v840 = vadd.f32 0.0, %v839
    %v841 = vpop.f32.mrf.mxu0
    %842 = vdwg.mxu0
    %v844 = vsel %vm700, %v821, 0
    %v847 = vsel %vm730, %v823, 0
    %849 = vmatpush.bf16.msra.mxu0 0
    %850 = vmatpush.bf16.msra.mxu0 0
    %851 = vmatpush.bf16.msra.mxu0 0
    %852 = vmatpush.bf16.msra.mxu0 0
    %853 = vmatpush.bf16.msra.mxu0 0
    %854 = vmatpush.bf16.msra.mxu0 0
    %855 = vmatpush.bf16.msra.mxu0 0
    %856 = vmatpush.bf16.msra.mxu0 %v847
    %857 = vmatmul.bf16.gmra.mxu0 %v844
    %v858 = vpop.f32.mrf.mxu0
    %v859 = vadd.f32 0.0, %v858
    %v860 = vpop.f32.mrf.mxu0
    %861 = vdwg.mxu0
    %v862 = vpack.c.bf16 %v763, %v744
    %v863 = vpack.c.bf16 %v859, %v840
    %v864 = vld [vmem:[#allocation11] sm:$0xf]
    %v865 = vld [vmem:[#allocation11 + $0x4] sm:$0xf]
    %v866 = vld [vmem:[#allocation11 + $0x8] sm:$0xf]
    %v867 = vld [vmem:[#allocation11 + $0xc] sm:$0xf]
    %v868 = vld [vmem:[#allocation11 + $0x10] sm:$0xf]
    %v869 = vld [vmem:[#allocation11 + $0x14] sm:$0xf]
    %v870 = vld [vmem:[#allocation11 + $0x18] sm:$0xf]
    %v871 = vld [vmem:[#allocation11 + $0x1c] sm:$0xf]
    %v872 = vld [vmem:[#allocation11 + $0x20] sm:$0xf]
    %v873 = vld [vmem:[#allocation11 + $0x24] sm:$0xf]
    %v874 = vld [vmem:[#allocation11 + $0x28] sm:$0xf]
    %v875 = vld [vmem:[#allocation11 + $0x2c] sm:$0xf]
    %v876 = vld [vmem:[#allocation11 + $0x30] sm:$0xf]
    %v877 = vld [vmem:[#allocation11 + $0x34] sm:$0xf]
    %v878 = vld [vmem:[#allocation11 + $0x38] sm:$0xf]
    %v879 = vld [vmem:[#allocation11 + $0x3c] sm:$0xf]
    %v880 = vld [vmem:[#allocation11 + $0x40] sm:$0xf]
    %v881 = vld [vmem:[#allocation11 + $0x44] sm:$0xf]
    %v882 = vld [vmem:[#allocation11 + $0x48] sm:$0xf]
    %v883 = vld [vmem:[#allocation11 + $0x4c] sm:$0xf]
    %v884 = vld [vmem:[#allocation11 + $0x50] sm:$0xf]
    %v885 = vld [vmem:[#allocation11 + $0x54] sm:$0xf]
    %v886 = vld [vmem:[#allocation11 + $0x58] sm:$0xf]
    %v887 = vld [vmem:[#allocation11 + $0x5c] sm:$0xf]
    %v888 = vld [vmem:[#allocation11 + $0x60] sm:$0xf]
    %v889 = vld [vmem:[#allocation11 + $0x64] sm:$0xf]
    %v890 = vld [vmem:[#allocation11 + $0x68] sm:$0xf]
    %v891 = vld [vmem:[#allocation11 + $0x6c] sm:$0xf]
    %v892 = vld [vmem:[#allocation11 + $0x70] sm:$0xf]
    %v893 = vld [vmem:[#allocation11 + $0x74] sm:$0xf]
    %v894 = vld [vmem:[#allocation11 + $0x78] sm:$0xf]
    %v895 = vld [vmem:[#allocation11 + $0x7c] sm:$0xf]
    %v896 = vld [vmem:[%s6] sm:$0x1]
    %v898 = vperm.slane %v896, 0
    %v932 = vunpack.c.l.b16 %v864
    %v933 = vunpack.c.l.b16 %v865
    %v934 = vunpack.c.l.b16 %v866
    %v935 = vunpack.c.l.b16 %v867
    %v936 = vunpack.c.l.b16 %v868
    %v937 = vunpack.c.l.b16 %v869
    %v938 = vunpack.c.l.b16 %v870
    %v939 = vunpack.c.l.b16 %v871
    %v940 = vunpack.c.l.b16 %v872
    %v941 = vunpack.c.l.b16 %v873
    %v942 = vunpack.c.l.b16 %v874
    %v943 = vunpack.c.l.b16 %v875
    %v944 = vunpack.c.l.b16 %v876
    %v945 = vunpack.c.l.b16 %v877
    %v946 = vunpack.c.l.b16 %v878
    %v947 = vunpack.c.l.b16 %v879
    %v948 = vunpack.c.l.b16 %v880
    %v949 = vunpack.c.l.b16 %v881
    %v950 = vunpack.c.l.b16 %v882
    %v951 = vunpack.c.l.b16 %v883
    %v952 = vunpack.c.l.b16 %v884
    %v953 = vunpack.c.l.b16 %v885
    %v954 = vunpack.c.l.b16 %v886
    %v955 = vunpack.c.l.b16 %v887
    %v956 = vunpack.c.l.b16 %v888
    %v957 = vunpack.c.l.b16 %v889
    %v958 = vunpack.c.l.b16 %v890
    %v959 = vunpack.c.l.b16 %v891
    %v960 = vunpack.c.l.b16 %v892
    %v961 = vunpack.c.l.b16 %v893
    %v962 = vunpack.c.l.b16 %v894
    %v963 = vunpack.c.l.b16 %v895
    %v964 = vpack.c.b16 %v933, %v932
    %v965 = vpack.c.b16 %v935, %v934
    %v966 = vpack.c.b16 %v937, %v936
    %v967 = vpack.c.b16 %v939, %v938
    %v968 = vpack.c.b16 %v941, %v940
    %v969 = vpack.c.b16 %v943, %v942
    %v970 = vpack.c.b16 %v945, %v944
    %v971 = vpack.c.b16 %v947, %v946
    %v972 = vpack.c.b16 %v949, %v948
    %v973 = vpack.c.b16 %v951, %v950
    %v974 = vpack.c.b16 %v953, %v952
    %v975 = vpack.c.b16 %v955, %v954
    %v976 = vpack.c.b16 %v957, %v956
    %v977 = vpack.c.b16 %v959, %v958
    %v978 = vpack.c.b16 %v961, %v960
    %v979 = vpack.c.b16 %v963, %v962
    %996 = vmatpush.bf16.msra.mxu0 %v971
    %997 = vmatpush.bf16.msra.mxu0 %v970
    %998 = vmatpush.bf16.msra.mxu0 %v969
    %999 = vmatpush.bf16.msra.mxu0 %v968
    %1000 = vmatpush.bf16.msra.mxu0 %v967
    %1001 = vmatpush.bf16.msra.mxu0 %v966
    %1002 = vmatpush.bf16.msra.mxu0 %v965
    %1003 = vmatpush.bf16.msra.mxu0 %v964
    %1004 = vmatmul.bf16.gmra.mxu0 %v862
    %v1005 = vpop.f32.mrf.mxu0
    %v1006 = vadd.f32 %v898, %v1005
    %v1007 = vpop.f32.mrf.mxu0
    %v1008 = vadd.f32 %v898, %v1007
    %1009 = vdwg.mxu0
    %1010 = vmatpush.bf16.msra.mxu0 %v979
    %1011 = vmatpush.bf16.msra.mxu0 %v978
    %1012 = vmatpush.bf16.msra.mxu0 %v977
    %1013 = vmatpush.bf16.msra.mxu0 %v976
    %1014 = vmatpush.bf16.msra.mxu0 %v975
    %1015 = vmatpush.bf16.msra.mxu0 %v974
    %1016 = vmatpush.bf16.msra.mxu0 %v973
    %1017 = vmatpush.bf16.msra.mxu0 %v972
    %1018 = vmatmul.bf16.gmra.mxu0 %v863
    %v1019 = vpop.f32.mrf.mxu0
    %v1020 = vadd.f32 %v1006, %v1019
    %v1021 = vpop.f32.mrf.mxu0
    %v1022 = vadd.f32 %v1008, %v1021
    %1023 = vdwg.mxu0
    %v1024 = vadd.f32 %v225, %v1020
    %v1025 = vadd.f32 %v226, %v1022
    %v1026 = vld [vmem:[%s7] sm:$0x1]
    %v1027 = vld [vmem:[%s8] sm:$0x1]
    %1028 = vadd.xlane.f32.xlu0 %v1024
    %v1029 = vpop.xlane.xlu0 %1028
    %1030 = vadd.xlane.f32.xlu0 %v1025
    %v1031 = vpop.xlane.xlu0 %1030
    %v1032 = vmul.f32 %v1029, 0.03125
    %v1033 = vmul.f32 %v1031, 0.03125
    %v1034 = vsub.f32 %v1024, %v1032
    %v1035 = vsub.f32 %v1025, %v1033
    %v1036 = vmul.f32 %v1034, %v224
    %v1037 = vmul.f32 %v1035, %v224
    %v1038 = vmul.f32 %v1036, %v1036
    %v1039 = vmul.f32 %v1037, %v1037
    %1040 = vadd.xlane.f32.xlu0 %v1038
    %v1041 = vpop.xlane.xlu0 %1040
    %1042 = vadd.xlane.f32.xlu0 %v1039
    %v1043 = vpop.xlane.xlu0 %1042
    %v1044 = vmul.f32 %v1041, 0.03125
    %v1045 = vmul.f32 %v1043, 0.03125
    %v1046 = vadd.f32 %v1044, 1e-05
    %v1047 = vadd.f32 %v1045, 1e-05
    %v1048 = vrsqrt.pop %v1046
    %v1049 = vmul.f32 %v1048, %v1046
    %v1050 = vmul.f32 %v1049, %v1048
    %v1051 = vmul.f32 0.5, %v1050
    %v1052 = vsub.f32 1.5, %v1051
    %v1053 = vmul.f32 %v1048, %v1052
    %vm1054 = vweird.f32 %v1046
    %vm1055 = vweird.f32 %v1048
    %vm1056 = vmor %vm1054, %vm1055
    %v1057 = vsel %vm1056, %v1048, %v1053
    %v1058 = vrsqrt.pop %v1047
    %v1059 = vmul.f32 %v1058, %v1047
    %v1060 = vmul.f32 %v1059, %v1058
    %v1061 = vmul.f32 0.5, %v1060
    %v1062 = vsub.f32 1.5, %v1061
    %v1063 = vmul.f32 %v1058, %v1062
    %vm1064 = vweird.f32 %v1047
    %vm1065 = vweird.f32 %v1058
    %vm1066 = vmor %vm1064, %vm1065
    %v1067 = vsel %vm1066, %v1058, %v1063
    %v1068 = vmul.f32 %v1034, %v1057
    %v1069 = vmul.f32 %v1035, %v1067
    %v1071 = vperm.slane %v1026, 0
    %v1073 = vmul.f32 %v1068, %v1071
    %v1074 = vmul.f32 %v1069, %v1071
    %v1076 = vperm.slane %v1027, 0
    %v1078 = vadd.f32 %v1073, %v1076
    %v1079 = vadd.f32 %v1074, %v1076
    %v1080 = vpack.c.bf16 %v1079, %v1078
    %v1081 = vld [vmem:[#allocation13] sm:$0xf]
    %v1082 = vld [vmem:[#allocation13 + $0x4] sm:$0xf]
    %v1083 = vld [vmem:[#allocation13 + $0x8] sm:$0xf]
    %v1084 = vld [vmem:[#allocation13 + $0xc] sm:$0xf]
    %v1085 = vld [vmem:[#allocation13 + $0x10] sm:$0xf]
    %v1086 = vld [vmem:[#allocation13 + $0x14] sm:$0xf]
    %v1087 = vld [vmem:[#allocation13 + $0x18] sm:$0xf]
    %v1088 = vld [vmem:[#allocation13 + $0x1c] sm:$0xf]
    %v1089 = vld [vmem:[#allocation13 + $0x20] sm:$0xf]
    %v1090 = vld [vmem:[#allocation13 + $0x24] sm:$0xf]
    %v1091 = vld [vmem:[#allocation13 + $0x28] sm:$0xf]
    %v1092 = vld [vmem:[#allocation13 + $0x2c] sm:$0xf]
    %v1093 = vld [vmem:[#allocation13 + $0x30] sm:$0xf]
    %v1094 = vld [vmem:[#allocation13 + $0x34] sm:$0xf]
    %v1095 = vld [vmem:[#allocation13 + $0x38] sm:$0xf]
    %v1096 = vld [vmem:[#allocation13 + $0x3c] sm:$0xf]
    %v1097 = vld [vmem:[%s10] sm:$0x1]
    %v1099 = vperm.slane %v1097, 0
    %v1117 = vunpack.c.l.b16 %v1081
    %v1118 = vunpack.c.l.b16 %v1082
    %v1119 = vunpack.c.l.b16 %v1083
    %v1120 = vunpack.c.l.b16 %v1084
    %v1121 = vunpack.c.l.b16 %v1085
    %v1122 = vunpack.c.l.b16 %v1086
    %v1123 = vunpack.c.l.b16 %v1087
    %v1124 = vunpack.c.l.b16 %v1088
    %v1125 = vunpack.c.l.b16 %v1089
    %v1126 = vunpack.c.l.b16 %v1090
    %v1127 = vunpack.c.l.b16 %v1091
    %v1128 = vunpack.c.l.b16 %v1092
    %v1129 = vunpack.c.l.b16 %v1093
    %v1130 = vunpack.c.l.b16 %v1094
    %v1131 = vunpack.c.l.b16 %v1095
    %v1132 = vunpack.c.l.b16 %v1096
    %v1133 = vpack.c.b16 %v1118, %v1117
    %v1134 = vpack.c.b16 %v1120, %v1119
    %v1135 = vpack.c.b16 %v1122, %v1121
    %v1136 = vpack.c.b16 %v1124, %v1123
    %v1137 = vpack.c.b16 %v1126, %v1125
    %v1138 = vpack.c.b16 %v1128, %v1127
    %v1139 = vpack.c.b16 %v1130, %v1129
    %v1140 = vpack.c.b16 %v1132, %v1131
    %1149 = vmatpush.bf16.msra.mxu0 %v1140
    %1150 = vmatpush.bf16.msra.mxu0 %v1139
    %1151 = vmatpush.bf16.msra.mxu0 %v1138
    %1152 = vmatpush.bf16.msra.mxu0 %v1137
    %1153 = vmatpush.bf16.msra.mxu0 %v1136
    %1154 = vmatpush.bf16.msra.mxu0 %v1135
    %1155 = vmatpush.bf16.msra.mxu0 %v1134
    %1156 = vmatpush.bf16.msra.mxu0 %v1133
    %1157 = vmatmul.bf16.gmra.mxu0 %v1080
    %v1158 = vpop.f32.mrf.mxu0
    %v1159 = vadd.f32 %v1099, %v1158
    %v1160 = vpop.f32.mrf.mxu0
    %v1161 = vadd.f32 %v1099, %v1160
    %1162 = vdwg.mxu0
    %v1163 = vxor.u32 %v1159, 2147483648
    %v1164 = vxor.u32 %v1161, 2147483648
    %v1165 = vmul.f32 %v1163, 1.442695
    %v1166 = vpow.pop %v1165
    %v1167 = vmul.f32 %v1164, 1.442695
    %v1168 = vpow.pop %v1167
    %v1169 = vadd.f32 %v1166, 1.0
    %v1170 = vadd.f32 %v1168, 1.0
    %v1171 = vrcp.pop %v1169
    %v1172 = vmul.f32 %v1169, %v1171
    %v1173 = vsub.f32 1.0, %v1172
    %v1174 = vmul.f32 %v1171, %v1173
    %v1175 = vadd.f32 %v1171, %v1174
    %vm1176 = vweird.f32 %v1169
    %vm1177 = vweird.f32 %v1171
    %vm1178 = vmor %vm1176, %vm1177
    %v1179 = vsel %vm1178, %v1171, %v1175
    %v1180 = vand.u32 2147483647, %v1169
    %vm1181 = vcmp.eq.f32.partialorder %v1180, 8.507059e+37
    %v1182 = vand.u32 %v1169, 2147483648
    %v1183 = vor.u32 1.1754944e-38, %v1182
    %v1184 = vsel %vm1181, %v1183, %v1179
    %v1185 = vmul.f32 1.0, %v1184
    %v1186 = vrcp.pop %v1170
    %v1187 = vmul.f32 %v1170, %v1186
    %v1188 = vsub.f32 1.0, %v1187
    %v1189 = vmul.f32 %v1186, %v1188
    %v1190 = vadd.f32 %v1186, %v1189
    %vm1191 = vweird.f32 %v1170
    %vm1192 = vweird.f32 %v1186
    %vm1193 = vmor %vm1191, %vm1192
    %v1194 = vsel %vm1193, %v1186, %v1190
    %v1195 = vand.u32 2147483647, %v1170
    %vm1196 = vcmp.eq.f32.partialorder %v1195, 8.507059e+37
    %v1197 = vand.u32 %v1170, 2147483648
    %v1198 = vor.u32 1.1754944e-38, %v1197
    %v1199 = vsel %vm1196, %v1198, %v1194
    %v1200 = vmul.f32 1.0, %v1199
    %v1201 = vmul.f32 %v1159, %v1185
    %v1202 = vmul.f32 %v1161, %v1200
    %v1203 = vpack.c.bf16 %v1202, %v1201
    %v1204 = vld [vmem:[#allocation14] sm:$0xf]
    %v1205 = vld [vmem:[#allocation14 + $0x4] sm:$0xf]
    %v1206 = vld [vmem:[#allocation14 + $0x8] sm:$0xf]
    %v1207 = vld [vmem:[#allocation14 + $0xc] sm:$0xf]
    %v1208 = vld [vmem:[#allocation14 + $0x10] sm:$0xf]
    %v1209 = vld [vmem:[#allocation14 + $0x14] sm:$0xf]
    %v1210 = vld [vmem:[#allocation14 + $0x18] sm:$0xf]
    %v1211 = vld [vmem:[#allocation14 + $0x1c] sm:$0xf]
    %v1212 = vld [vmem:[#allocation14 + $0x20] sm:$0xf]
    %v1213 = vld [vmem:[#allocation14 + $0x24] sm:$0xf]
    %v1214 = vld [vmem:[#allocation14 + $0x28] sm:$0xf]
    %v1215 = vld [vmem:[#allocation14 + $0x2c] sm:$0xf]
    %v1216 = vld [vmem:[#allocation14 + $0x30] sm:$0xf]
    %v1217 = vld [vmem:[#allocation14 + $0x34] sm:$0xf]
    %v1218 = vld [vmem:[#allocation14 + $0x38] sm:$0xf]
    %v1219 = vld [vmem:[#allocation14 + $0x3c] sm:$0xf]
    %v1236 = vunpack.c.l.b16 %v1204
    %v1237 = vunpack.c.l.b16 %v1205
    %v1238 = vunpack.c.l.b16 %v1206
    %v1239 = vunpack.c.l.b16 %v1207
    %v1240 = vunpack.c.l.b16 %v1208
    %v1241 = vunpack.c.l.b16 %v1209
    %v1242 = vunpack.c.l.b16 %v1210
    %v1243 = vunpack.c.l.b16 %v1211
    %v1244 = vunpack.c.l.b16 %v1212
    %v1245 = vunpack.c.l.b16 %v1213
    %v1246 = vunpack.c.l.b16 %v1214
    %v1247 = vunpack.c.l.b16 %v1215
    %v1248 = vunpack.c.l.b16 %v1216
    %v1249 = vunpack.c.l.b16 %v1217
    %v1250 = vunpack.c.l.b16 %v1218
    %v1251 = vunpack.c.l.b16 %v1219
    %v1252 = vpack.c.b16 %v1237, %v1236
    %v1253 = vpack.c.b16 %v1239, %v1238
    %v1254 = vpack.c.b16 %v1241, %v1240
    %v1255 = vpack.c.b16 %v1243, %v1242
    %v1256 = vpack.c.b16 %v1245, %v1244
    %v1257 = vpack.c.b16 %v1247, %v1246
    %v1258 = vpack.c.b16 %v1249, %v1248
    %v1259 = vpack.c.b16 %v1251, %v1250
    %1268 = vmatpush.bf16.msra.mxu0 %v1259
    %1269 = vmatpush.bf16.msra.mxu0 %v1258
    %1270 = vmatpush.bf16.msra.mxu0 %v1257
    %1271 = vmatpush.bf16.msra.mxu0 %v1256
    %1272 = vmatpush.bf16.msra.mxu0 %v1255
    %1273 = vmatpush.bf16.msra.mxu0 %v1254
    %1274 = vmatpush.bf16.msra.mxu0 %v1253
    %1275 = vmatpush.bf16.msra.mxu0 %v1252
    %1276 = vmatmul.bf16.gmra.mxu0 %v1203
    %v1277 = vpop.f32.mrf.mxu0
    %v1278 = vadd.f32 0.0, %v1277
    %v1279 = vpop.f32.mrf.mxu0
    %v1280 = vadd.f32 0.0, %v1279
    %1281 = vdwg.mxu0
    %v1282 = vadd.f32 %v1024, %v1278
    %v1283 = vadd.f32 %v1025, %v1280
    %v1284 = vld [vmem:[%s12] sm:$0x1]
    %v1286 = vperm.slane %v1284, 0
    %v1288 = vadd.f32 %v1282, %v1286
    %v1289 = vadd.f32 %v1283, %v1286
    %s1290 = scalar_lea.vmem [#allocation5], 1
    %v1291 = vld [vmem:[%s1290] sm:$0x1]
    %s1292 = scalar_lea.vmem [#allocation7], 1
    %v1293 = vld [vmem:[%s1292] sm:$0x1]
    %1294 = vadd.xlane.f32.xlu0 %v1288
    %v1295 = vpop.xlane.xlu0 %1294
    %1296 = vadd.xlane.f32.xlu0 %v1289
    %v1297 = vpop.xlane.xlu0 %1296
    %v1298 = vmul.f32 %v1295, 0.03125
    %v1299 = vmul.f32 %v1297, 0.03125
    %v1300 = vsub.f32 %v1288, %v1298
    %v1301 = vsub.f32 %v1289, %v1299
    %v1302 = vmul.f32 %v1300, %v224
    %v1303 = vmul.f32 %v1301, %v224
    %v1304 = vmul.f32 %v1302, %v1302
    %v1305 = vmul.f32 %v1303, %v1303
    %1306 = vadd.xlane.f32.xlu0 %v1304
    %v1307 = vpop.xlane.xlu0 %1306
    %1308 = vadd.xlane.f32.xlu0 %v1305
    %v1309 = vpop.xlane.xlu0 %1308
    %v1310 = vmul.f32 %v1307, 0.03125
    %v1311 = vmul.f32 %v1309, 0.03125
    %v1312 = vadd.f32 %v1310, 1e-05
    %v1313 = vadd.f32 %v1311, 1e-05
    %v1314 = vrsqrt.pop %v1312
    %v1315 = vmul.f32 %v1314, %v1312
    %v1316 = vmul.f32 %v1315, %v1314
    %v1317 = vmul.f32 0.5, %v1316
    %v1318 = vsub.f32 1.5, %v1317
    %v1319 = vmul.f32 %v1314, %v1318
    %vm1320 = vweird.f32 %v1312
    %vm1321 = vweird.f32 %v1314
    %vm1322 = vmor %vm1320, %vm1321
    %v1323 = vsel %vm1322, %v1314, %v1319
    %v1324 = vrsqrt.pop %v1313
    %v1325 = vmul.f32 %v1324, %v1313
    %v1326 = vmul.f32 %v1325, %v1324
    %v1327 = vmul.f32 0.5, %v1326
    %v1328 = vsub.f32 1.5, %v1327
    %v1329 = vmul.f32 %v1324, %v1328
    %vm1330 = vweird.f32 %v1313
    %vm1331 = vweird.f32 %v1324
    %vm1332 = vmor %vm1330, %vm1331
    %v1333 = vsel %vm1332, %v1324, %v1329
    %v1334 = vmul.f32 %v1300, %v1323
    %v1335 = vmul.f32 %v1301, %v1333
    %v1337 = vperm.slane %v1291, 0
    %v1339 = vmul.f32 %v1334, %v1337
    %v1340 = vmul.f32 %v1335, %v1337
    %v1342 = vperm.slane %v1293, 0
    %v1344 = vadd.f32 %v1339, %v1342
    %v1345 = vadd.f32 %v1340, %v1342
    %v1346 = vpack.c.bf16 %v1345, %v1344
    %s1347 = scalar_lea.vmem [#allocation8], 384
    %v1348 = vld [vmem:[%s1347] sm:$0xff]
    %v1349 = vld [vmem:[%s1347 + $0x8] sm:$0xff]
    %v1350 = vld [vmem:[%s1347 + $0x10] sm:$0xff]
    %v1351 = vld [vmem:[%s1347 + $0x18] sm:$0xff]
    %v1352 = vld [vmem:[%s1347 + $0x20] sm:$0xff]
    %v1353 = vld [vmem:[%s1347 + $0x28] sm:$0xff]
    %v1354 = vld [vmem:[%s1347 + $0x30] sm:$0xff]
    %v1355 = vld [vmem:[%s1347 + $0x38] sm:$0xff]
    %v1356 = vld [vmem:[%s1347 + $0x40] sm:$0xff]
    %v1357 = vld [vmem:[%s1347 + $0x48] sm:$0xff]
    %v1358 = vld [vmem:[%s1347 + $0x50] sm:$0xff]
    %v1359 = vld [vmem:[%s1347 + $0x58] sm:$0xff]
    %v1360 = vld [vmem:[%s1347 + $0x60] sm:$0xff]
    %v1361 = vld [vmem:[%s1347 + $0x68] sm:$0xff]
    %v1362 = vld [vmem:[%s1347 + $0x70] sm:$0xff]
    %v1363 = vld [vmem:[%s1347 + $0x78] sm:$0xff]
    %v1364 = vld [vmem:[%s1347 + $0x80] sm:$0xff]
    %v1365 = vld [vmem:[%s1347 + $0x88] sm:$0xff]
    %v1366 = vld [vmem:[%s1347 + $0x90] sm:$0xff]
    %v1367 = vld [vmem:[%s1347 + $0x98] sm:$0xff]
    %v1368 = vld [vmem:[%s1347 + $0xa0] sm:$0xff]
    %v1369 = vld [vmem:[%s1347 + $0xa8] sm:$0xff]
    %v1370 = vld [vmem:[%s1347 + $0xb0] sm:$0xff]
    %v1371 = vld [vmem:[%s1347 + $0xb8] sm:$0xff]
    %v1372 = vld [vmem:[%s1347 + $0xc0] sm:$0xff]
    %v1373 = vld [vmem:[%s1347 + $0xc8] sm:$0xff]
    %v1374 = vld [vmem:[%s1347 + $0xd0] sm:$0xff]
    %v1375 = vld [vmem:[%s1347 + $0xd8] sm:$0xff]
    %v1376 = vld [vmem:[%s1347 + $0xe0] sm:$0xff]
    %v1377 = vld [vmem:[%s1347 + $0xe8] sm:$0xff]
    %v1378 = vld [vmem:[%s1347 + $0xf0] sm:$0xff]
    %v1379 = vld [vmem:[%s1347 + $0xf8] sm:$0xff]
    %v1380 = vld [vmem:[%s1347 + $0x100] sm:$0xff]
    %v1381 = vld [vmem:[%s1347 + $0x108] sm:$0xff]
    %v1382 = vld [vmem:[%s1347 + $0x110] sm:$0xff]
    %v1383 = vld [vmem:[%s1347 + $0x118] sm:$0xff]
    %v1384 = vld [vmem:[%s1347 + $0x120] sm:$0xff]
    %v1385 = vld [vmem:[%s1347 + $0x128] sm:$0xff]
    %v1386 = vld [vmem:[%s1347 + $0x130] sm:$0xff]
    %v1387 = vld [vmem:[%s1347 + $0x138] sm:$0xff]
    %v1388 = vld [vmem:[%s1347 + $0x140] sm:$0xff]
    %v1389 = vld [vmem:[%s1347 + $0x148] sm:$0xff]
    %v1390 = vld [vmem:[%s1347 + $0x150] sm:$0xff]
    %v1391 = vld [vmem:[%s1347 + $0x158] sm:$0xff]
    %v1392 = vld [vmem:[%s1347 + $0x160] sm:$0xff]
    %v1393 = vld [vmem:[%s1347 + $0x168] sm:$0xff]
    %v1394 = vld [vmem:[%s1347 + $0x170] sm:$0xff]
    %v1395 = vld [vmem:[%s1347 + $0x178] sm:$0xff]
    %s1396 = scalar_lea.vmem [#allocation10], 6
    %v1397 = vld [vmem:[%s1396] sm:$0x3f]
    %v1399 = vperm.slane %v1397, 0
    %v1400 = vperm.slane %v1397, 1
    %v1401 = vperm.slane %v1397, 2
    %v1402 = vperm.slane %v1397, 3
    %v1403 = vperm.slane %v1397, 4
    %v1404 = vperm.slane %v1397, 5
    %v1459 = vunpack.c.l.b16 %v1348
    %v1460 = vunpack.c.h.b16 %v1348
    %v1461 = vunpack.c.l.b16 %v1349
    %v1462 = vunpack.c.h.b16 %v1349
    %v1463 = vunpack.c.l.b16 %v1350
    %v1464 = vunpack.c.h.b16 %v1350
    %v1465 = vunpack.c.l.b16 %v1351
    %v1466 = vunpack.c.h.b16 %v1351
    %v1467 = vunpack.c.l.b16 %v1352
    %v1468 = vunpack.c.h.b16 %v1352
    %v1469 = vunpack.c.l.b16 %v1353
    %v1470 = vunpack.c.h.b16 %v1353
    %v1471 = vunpack.c.l.b16 %v1354
    %v1472 = vunpack.c.h.b16 %v1354
    %v1473 = vunpack.c.l.b16 %v1355
    %v1474 = vunpack.c.h.b16 %v1355
    %v1475 = vunpack.c.l.b16 %v1356
    %v1476 = vunpack.c.h.b16 %v1356
    %v1477 = vunpack.c.l.b16 %v1357
    %v1478 = vunpack.c.h.b16 %v1357
    %v1479 = vunpack.c.l.b16 %v1358
    %v1480 = vunpack.c.h.b16 %v1358
    %v1481 = vunpack.c.l.b16 %v1359
    %v1482 = vunpack.c.h.b16 %v1359
    %v1483 = vunpack.c.l.b16 %v1360
    %v1484 = vunpack.c.h.b16 %v1360
    %v1485 = vunpack.c.l.b16 %v1361
    %v1486 = vunpack.c.h.b16 %v1361
    %v1487 = vunpack.c.l.b16 %v1362
    %v1488 = vunpack.c.h.b16 %v1362
    %v1489 = vunpack.c.l.b16 %v1363
    %v1490 = vunpack.c.h.b16 %v1363
    %v1491 = vunpack.c.l.b16 %v1364
    %v1492 = vunpack.c.h.b16 %v1364
    %v1493 = vunpack.c.l.b16 %v1365
    %v1494 = vunpack.c.h.b16 %v1365
    %v1495 = vunpack.c.l.b16 %v1366
    %v1496 = vunpack.c.h.b16 %v1366
    %v1497 = vunpack.c.l.b16 %v1367
    %v1498 = vunpack.c.h.b16 %v1367
    %v1499 = vunpack.c.l.b16 %v1368
    %v1500 = vunpack.c.h.b16 %v1368
    %v1501 = vunpack.c.l.b16 %v1369
    %v1502 = vunpack.c.h.b16 %v1369
    %v1503 = vunpack.c.l.b16 %v1370
    %v1504 = vunpack.c.h.b16 %v1370
    %v1505 = vunpack.c.l.b16 %v1371
    %v1506 = vunpack.c.h.b16 %v1371
    %v1507 = vunpack.c.l.b16 %v1372
    %v1508 = vunpack.c.h.b16 %v1372
    %v1509 = vunpack.c.l.b16 %v1373
    %v1510 = vunpack.c.h.b16 %v1373
    %v1511 = vunpack.c.l.b16 %v1374
    %v1512 = vunpack.c.h.b16 %v1374
    %v1513 = vunpack.c.l.b16 %v1375
    %v1514 = vunpack.c.h.b16 %v1375
    %v1515 = vunpack.c.l.b16 %v1376
    %v1516 = vunpack.c.h.b16 %v1376
    %v1517 = vunpack.c.l.b16 %v1377
    %v1518 = vunpack.c.h.b16 %v1377
    %v1519 = vunpack.c.l.b16 %v1378
    %v1520 = vunpack.c.h.b16 %v1378
    %v1521 = vunpack.c.l.b16 %v1379
    %v1522 = vunpack.c.h.b16 %v1379
    %v1523 = vunpack.c.l.b16 %v1380
    %v1524 = vunpack.c.h.b16 %v1380
    %v1525 = vunpack.c.l.b16 %v1381
    %v1526 = vunpack.c.h.b16 %v1381
    %v1527 = vunpack.c.l.b16 %v1382
    %v1528 = vunpack.c.h.b16 %v1382
    %v1529 = vunpack.c.l.b16 %v1383
    %v1530 = vunpack.c.h.b16 %v1383
    %v1531 = vunpack.c.l.b16 %v1384
    %v1532 = vunpack.c.h.b16 %v1384
    %v1533 = vunpack.c.l.b16 %v1385
    %v1534 = vunpack.c.h.b16 %v1385
    %v1535 = vunpack.c.l.b16 %v1386
    %v1536 = vunpack.c.h.b16 %v1386
    %v1537 = vunpack.c.l.b16 %v1387
    %v1538 = vunpack.c.h.b16 %v1387
    %v1539 = vunpack.c.l.b16 %v1388
    %v1540 = vunpack.c.h.b16 %v1388
    %v1541 = vunpack.c.l.b16 %v1389
    %v1542 = vunpack.c.h.b16 %v1389
    %v1543 = vunpack.c.l.b16 %v1390
    %v1544 = vunpack.c.h.b16 %v1390
    %v1545 = vunpack.c.l.b16 %v1391
    %v1546 = vunpack.c.h.b16 %v1391
    %v1547 = vunpack.c.l.b16 %v1392
    %v1548 = vunpack.c.h.b16 %v1392
    %v1549 = vunpack.c.l.b16 %v1393
    %v1550 = vunpack.c.h.b16 %v1393
    %v1551 = vunpack.c.l.b16 %v1394
    %v1552 = vunpack.c.h.b16 %v1394
    %v1553 = vunpack.c.l.b16 %v1395
    %v1554 = vunpack.c.h.b16 %v1395
    %v1555 = vpack.c.b16 %v1465, %v1459
    %v1556 = vpack.c.b16 %v1466, %v1460
    %v1557 = vpack.c.b16 %v1467, %v1461
    %v1558 = vpack.c.b16 %v1468, %v1462
    %v1559 = vpack.c.b16 %v1469, %v1463
    %v1560 = vpack.c.b16 %v1470, %v1464
    %v1561 = vpack.c.b16 %v1477, %v1471
    %v1562 = vpack.c.b16 %v1478, %v1472
    %v1563 = vpack.c.b16 %v1479, %v1473
    %v1564 = vpack.c.b16 %v1480, %v1474
    %v1565 = vpack.c.b16 %v1481, %v1475
    %v1566 = vpack.c.b16 %v1482, %v1476
    %v1567 = vpack.c.b16 %v1489, %v1483
    %v1568 = vpack.c.b16 %v1490, %v1484
    %v1569 = vpack.c.b16 %v1491, %v1485
    %v1570 = vpack.c.b16 %v1492, %v1486
    %v1571 = vpack.c.b16 %v1493, %v1487
    %v1572 = vpack.c.b16 %v1494, %v1488
    %v1573 = vpack.c.b16 %v1501, %v1495
    %v1574 = vpack.c.b16 %v1502, %v1496
    %v1575 = vpack.c.b16 %v1503, %v1497
    %v1576 = vpack.c.b16 %v1504, %v1498
    %v1577 = vpack.c.b16 %v1505, %v1499
    %v1578 = vpack.c.b16 %v1506, %v1500
    %v1579 = vpack.c.b16 %v1513, %v1507
    %v1580 = vpack.c.b16 %v1514, %v1508
    %v1581 = vpack.c.b16 %v1515, %v1509
    %v1582 = vpack.c.b16 %v1516, %v1510
    %v1583 = vpack.c.b16 %v1517, %v1511
    %v1584 = vpack.c.b16 %v1518, %v1512
    %v1585 = vpack.c.b16 %v1525, %v1519
    %v1586 = vpack.c.b16 %v1526, %v1520
    %v1587 = vpack.c.b16 %v1527, %v1521
    %v1588 = vpack.c.b16 %v1528, %v1522
    %v1589 = vpack.c.b16 %v1529, %v1523
    %v1590 = vpack.c.b16 %v1530, %v1524
    %v1591 = vpack.c.b16 %v1537, %v1531
    %v1592 = vpack.c.b16 %v1538, %v1532
    %v1593 = vpack.c.b16 %v1539, %v1533
    %v1594 = vpack.c.b16 %v1540, %v1534
    %v1595 = vpack.c.b16 %v1541, %v1535
    %v1596 = vpack.c.b16 %v1542, %v1536
    %v1597 = vpack.c.b16 %v1549, %v1543
    %v1598 = vpack.c.b16 %v1550, %v1544
    %v1599 = vpack.c.b16 %v1551, %v1545
    %v1600 = vpack.c.b16 %v1552, %v1546
    %v1601 = vpack.c.b16 %v1553, %v1547
    %v1602 = vpack.c.b16 %v1554, %v1548
    %1651 = vmatpush.bf16.msra.mxu0 %v1597
    %1652 = vmatpush.bf16.msra.mxu0 %v1591
    %1653 = vmatpush.bf16.msra.mxu0 %v1585
    %1654 = vmatpush.bf16.msra.mxu0 %v1579
    %1655 = vmatpush.bf16.msra.mxu0 %v1573
    %1656 = vmatpush.bf16.msra.mxu0 %v1567
    %1657 = vmatpush.bf16.msra.mxu0 %v1561
    %1658 = vmatpush.bf16.msra.mxu0 %v1555
    %1659 = vmatmul.bf16.gmra.mxu0 %v1346
    %v1660 = vpop.f32.mrf.mxu0
    %v1661 = vadd.f32 %v1399, %v1660
    %v1662 = vpop.f32.mrf.mxu0
    %v1663 = vadd.f32 %v1399, %v1662
    %1664 = vdwg.mxu0
    %1665 = vmatpush.bf16.msra.mxu0 %v1598
    %1666 = vmatpush.bf16.msra.mxu0 %v1592
    %1667 = vmatpush.bf16.msra.mxu0 %v1586
    %1668 = vmatpush.bf16.msra.mxu0 %v1580
    %1669 = vmatpush.bf16.msra.mxu0 %v1574
    %1670 = vmatpush.bf16.msra.mxu0 %v1568
    %1671 = vmatpush.bf16.msra.mxu0 %v1562
    %1672 = vmatpush.bf16.msra.mxu0 %v1556
    %1673 = vmatmul.bf16.gmra.mxu0 %v1346
    %v1674 = vpop.f32.mrf.mxu0
    %v1675 = vadd.f32 %v1400, %v1674
    %v1676 = vpop.f32.mrf.mxu0
    %v1677 = vadd.f32 %v1400, %v1676
    %1678 = vdwg.mxu0
    %1679 = vmatpush.bf16.msra.mxu0 %v1599
    %1680 = vmatpush.bf16.msra.mxu0 %v1593
    %1681 = vmatpush.bf16.msra.mxu0 %v1587
    %1682 = vmatpush.bf16.msra.mxu0 %v1581
    %1683 = vmatpush.bf16.msra.mxu0 %v1575
    %1684 = vmatpush.bf16.msra.mxu0 %v1569
    %1685 = vmatpush.bf16.msra.mxu0 %v1563
    %1686 = vmatpush.bf16.msra.mxu0 %v1557
    %1687 = vmatmul.bf16.gmra.mxu0 %v1346
    %v1688 = vpop.f32.mrf.mxu0
    %v1689 = vadd.f32 %v1401, %v1688
    %v1690 = vpop.f32.mrf.mxu0
    %v1691 = vadd.f32 %v1401, %v1690
    %1692 = vdwg.mxu0
    %1693 = vmatpush.bf16.msra.mxu0 %v1600
    %1694 = vmatpush.bf16.msra.mxu0 %v1594
    %1695 = vmatpush.bf16.msra.mxu0 %v1588
    %1696 = vmatpush.bf16.msra.mxu0 %v1582
    %1697 = vmatpush.bf16.msra.mxu0 %v1576
    %1698 = vmatpush.bf16.msra.mxu0 %v1570
    %1699 = vmatpush.bf16.msra.mxu0 %v1564
    %1700 = vmatpush.bf16.msra.mxu0 %v1558
    %1701 = vmatmul.bf16.gmra.mxu0 %v1346
    %v1702 = vpop.f32.mrf.mxu0
    %v1703 = vadd.f32 %v1402, %v1702
    %v1704 = vpop.f32.mrf.mxu0
    %v1705 = vadd.f32 %v1402, %v1704
    %1706 = vdwg.mxu0
    %1707 = vmatpush.bf16.msra.mxu0 %v1601
    %1708 = vmatpush.bf16.msra.mxu0 %v1595
    %1709 = vmatpush.bf16.msra.mxu0 %v1589
    %1710 = vmatpush.bf16.msra.mxu0 %v1583
    %1711 = vmatpush.bf16.msra.mxu0 %v1577
    %1712 = vmatpush.bf16.msra.mxu0 %v1571
    %1713 = vmatpush.bf16.msra.mxu0 %v1565
    %1714 = vmatpush.bf16.msra.mxu0 %v1559
    %1715 = vmatmul.bf16.gmra.mxu0 %v1346
    %v1716 = vpop.f32.mrf.mxu0
    %v1717 = vadd.f32 %v1403, %v1716
    %v1718 = vpop.f32.mrf.mxu0
    %v1719 = vadd.f32 %v1403, %v1718
    %1720 = vdwg.mxu0
    %1721 = vmatpush.bf16.msra.mxu0 %v1602
    %1722 = vmatpush.bf16.msra.mxu0 %v1596
    %1723 = vmatpush.bf16.msra.mxu0 %v1590
    %1724 = vmatpush.bf16.msra.mxu0 %v1584
    %1725 = vmatpush.bf16.msra.mxu0 %v1578
    %1726 = vmatpush.bf16.msra.mxu0 %v1572
    %1727 = vmatpush.bf16.msra.mxu0 %v1566
    %1728 = vmatpush.bf16.msra.mxu0 %v1560
    %1729 = vmatmul.bf16.gmra.mxu0 %v1346
    %v1730 = vpop.f32.mrf.mxu0
    %v1731 = vadd.f32 %v1404, %v1730
    %v1732 = vpop.f32.mrf.mxu0
    %v1733 = vadd.f32 %v1404, %v1732
    %1734 = vdwg.mxu0
    %v1735 = vpack.c.bf16 %v1661, %v1661
    %v1736 = vpack.c.bf16 %v1663, %v1663
    %v1737 = vpack.c.bf16 %v1689, %v1689
    %v1738 = vpack.c.bf16 %v1691, %v1691
    %1739 = vmatpush.bf16.xpose.msra.mxu0 0
    %1740 = vmatpush.bf16.xpose.msra.mxu0 0
    %1741 = vmatpush.bf16.xpose.msra.mxu0 0
    %1742 = vmatpush.bf16.xpose.msra.mxu0 0
    %1743 = vmatpush.bf16.xpose.msra.mxu0 0
    %1744 = vmatpush.bf16.xpose.msra.mxu0 0
    %1745 = vmatpush.bf16.xpose.msra.mxu0 0
    %1746 = vmatpush.bf16.xpose.msra.mxu0 %v1737
    %1747 = vmatmul.bf16.gmra.mxu0 %v1735
    %v1748 = vpop.f32.mrf.mxu0
    %v1749 = vadd.f32 0.0, %v1748
    %v1750 = vpop.f32.mrf.mxu0
    %1751 = vdwg.mxu0
    %1752 = vmatpush.bf16.xpose.msra.mxu0 0
    %1753 = vmatpush.bf16.xpose.msra.mxu0 0
    %1754 = vmatpush.bf16.xpose.msra.mxu0 0
    %1755 = vmatpush.bf16.xpose.msra.mxu0 0
    %1756 = vmatpush.bf16.xpose.msra.mxu0 0
    %1757 = vmatpush.bf16.xpose.msra.mxu0 0
    %1758 = vmatpush.bf16.xpose.msra.mxu0 0
    %1759 = vmatpush.bf16.xpose.msra.mxu0 %v1738
    %1760 = vmatmul.bf16.gmra.mxu0 %v1736
    %v1761 = vpop.f32.mrf.mxu0
    %v1762 = vadd.f32 0.0, %v1761
    %v1763 = vpop.f32.mrf.mxu0
    %1764 = vdwg.mxu0
    %v1765 = vmul.f32 %v1749, 0.25
    %v1766 = vmul.f32 %v1762, 0.25
    %v1767 = vsel %vm700, %v1765, -inf
    %1768 = vmax.xlane.f32.xlu0 %v1767
    %v1769 = vpop.xlane.xlu0 %1768
    %v1770 = vsel %vm700, %v1766, -inf
    %1771 = vmax.xlane.f32.xlu0 %v1770
    %v1772 = vpop.xlane.xlu0 %1771
    %v1773 = vsub.f32 %v1765, %v1769
    %v1774 = vsub.f32 %v1766, %v1772
    %v1775 = vmul.f32 %v1773, 1.442695
    %v1776 = vpow.pop %v1775
    %v1777 = vmul.f32 %v1774, 1.442695
    %v1778 = vpow.pop %v1777
    %v1779 = vsel %vm700, %v1776, 0.0
    %1780 = vadd.xlane.f32.xlu0 %v1779
    %v1781 = vpop.xlane.xlu0 %1780
    %v1782 = vsel %vm700, %v1778, 0.0
    %1783 = vadd.xlane.f32.xlu0 %v1782
    %v1784 = vpop.xlane.xlu0 %1783
    %v1785 = vrcp.pop %v1781
    %v1786 = vrcp.pop %v1784
    %v1787 = vmul.f32 %v1776, %v1785
    %v1788 = vmul.f32 %v1778, %v1786
    %v1789 = vpack.c.bf16 %v1787, %v1787
    %v1790 = vpack.c.bf16 %v1788, %v1788
    %v1791 = vpack.c.bf16 %v1717, %v1717
    %v1792 = vpack.c.bf16 %v1719, %v1719
    %v1794 = vsel %vm700, %v1789, 0
    %v1797 = vsel %vm730, %v1791, 0
    %1799 = vmatpush.bf16.msra.mxu0 0
    %1800 = vmatpush.bf16.msra.mxu0 0
    %1801 = vmatpush.bf16.msra.mxu0 0
    %1802 = vmatpush.bf16.msra.mxu0 0
    %1803 = vmatpush.bf16.msra.mxu0 0
    %1804 = vmatpush.bf16.msra.mxu0 0
    %1805 = vmatpush.bf16.msra.mxu0 0
    %1806 = vmatpush.bf16.msra.mxu0 %v1797
    %1807 = vmatmul.bf16.gmra.mxu0 %v1794
    %v1808 = vpop.f32.mrf.mxu0
    %v1809 = vadd.f32 0.0, %v1808
    %v1810 = vpop.f32.mrf.mxu0
    %1811 = vdwg.mxu0
    %v1813 = vsel %vm700, %v1790, 0
    %v1816 = vsel %vm730, %v1792, 0
    %1818 = vmatpush.bf16.msra.mxu0 0
    %1819 = vmatpush.bf16.msra.mxu0 0
    %1820 = vmatpush.bf16.msra.mxu0 0
    %1821 = vmatpush.bf16.msra.mxu0 0
    %1822 = vmatpush.bf16.msra.mxu0 0
    %1823 = vmatpush.bf16.msra.mxu0 0
    %1824 = vmatpush.bf16.msra.mxu0 0
    %1825 = vmatpush.bf16.msra.mxu0 %v1816
    %1826 = vmatmul.bf16.gmra.mxu0 %v1813
    %v1827 = vpop.f32.mrf.mxu0
    %v1828 = vadd.f32 0.0, %v1827
    %v1829 = vpop.f32.mrf.mxu0
    %1830 = vdwg.mxu0
    %v1831 = vpack.c.bf16 %v1675, %v1675
    %v1832 = vpack.c.bf16 %v1677, %v1677
    %v1833 = vpack.c.bf16 %v1703, %v1703
    %v1834 = vpack.c.bf16 %v1705, %v1705
    %1835 = vmatpush.bf16.xpose.msra.mxu0 0
    %1836 = vmatpush.bf16.xpose.msra.mxu0 0
    %1837 = vmatpush.bf16.xpose.msra.mxu0 0
    %1838 = vmatpush.bf16.xpose.msra.mxu0 0
    %1839 = vmatpush.bf16.xpose.msra.mxu0 0
    %1840 = vmatpush.bf16.xpose.msra.mxu0 0
    %1841 = vmatpush.bf16.xpose.msra.mxu0 0
    %1842 = vmatpush.bf16.xpose.msra.mxu0 %v1833
    %1843 = vmatmul.bf16.gmra.mxu0 %v1831
    %v1844 = vpop.f32.mrf.mxu0
    %v1845 = vadd.f32 0.0, %v1844
    %v1846 = vpop.f32.mrf.mxu0
    %1847 = vdwg.mxu0
    %1848 = vmatpush.bf16.xpose.msra.mxu0 0
    %1849 = vmatpush.bf16.xpose.msra.mxu0 0
    %1850 = vmatpush.bf16.xpose.msra.mxu0 0
    %1851 = vmatpush.bf16.xpose.msra.mxu0 0
    %1852 = vmatpush.bf16.xpose.msra.mxu0 0
    %1853 = vmatpush.bf16.xpose.msra.mxu0 0
    %1854 = vmatpush.bf16.xpose.msra.mxu0 0
    %1855 = vmatpush.bf16.xpose.msra.mxu0 %v1834
    %1856 = vmatmul.bf16.gmra.mxu0 %v1832
    %v1857 = vpop.f32.mrf.mxu0
    %v1858 = vadd.f32 0.0, %v1857
    %v1859 = vpop.f32.mrf.mxu0
    %1860 = vdwg.mxu0
    %v1861 = vmul.f32 %v1845, 0.25
    %v1862 = vmul.f32 %v1858, 0.25
    %v1863 = vsel %vm700, %v1861, -inf
    %1864 = vmax.xlane.f32.xlu0 %v1863
    %v1865 = vpop.xlane.xlu0 %1864
    %v1866 = vsel %vm700, %v1862, -inf
    %1867 = vmax.xlane.f32.xlu0 %v1866
    %v1868 = vpop.xlane.xlu0 %1867
    %v1869 = vsub.f32 %v1861, %v1865
    %v1870 = vsub.f32 %v1862, %v1868
    %v1871 = vmul.f32 %v1869, 1.442695
    %v1872 = vpow.pop %v1871
    %v1873 = vmul.f32 %v1870, 1.442695
    %v1874 = vpow.pop %v1873
    %v1875 = vsel %vm700, %v1872, 0.0
    %1876 = vadd.xlane.f32.xlu0 %v1875
    %v1877 = vpop.xlane.xlu0 %1876
    %v1878 = vsel %vm700, %v1874, 0.0
    %1879 = vadd.xlane.f32.xlu0 %v1878
    %v1880 = vpop.xlane.xlu0 %1879
    %v1881 = vrcp.pop %v1877
    %v1882 = vrcp.pop %v1880
    %v1883 = vmul.f32 %v1872, %v1881
    %v1884 = vmul.f32 %v1874, %v1882
    %v1885 = vpack.c.bf16 %v1883, %v1883
    %v1886 = vpack.c.bf16 %v1884, %v1884
    %v1887 = vpack.c.bf16 %v1731, %v1731
    %v1888 = vpack.c.bf16 %v1733, %v1733
    %v1890 = vsel %vm700, %v1885, 0
    %v1893 = vsel %vm730, %v1887, 0
    %1895 = vmatpush.bf16.msra.mxu0 0
    %1896 = vmatpush.bf16.msra.mxu0 0
    %1897 = vmatpush.bf16.msra.mxu0 0
    %1898 = vmatpush.bf16.msra.mxu0 0
    %1899 = vmatpush.bf16.msra.mxu0 0
    %1900 = vmatpush.bf16.msra.mxu0 0
    %1901 = vmatpush.bf16.msra.mxu0 0
    %1902 = vmatpush.bf16.msra.mxu0 %v1893
    %1903 = vmatmul.bf16.gmra.mxu0 %v1890
    %v1904 = vpop.f32.mrf.mxu0
    %v1905 = vadd.f32 0.0, %v1904
    %v1906 = vpop.f32.mrf.mxu0
    %1907 = vdwg.mxu0
    %v1909 = vsel %vm700, %v1886, 0
    %v1912 = vsel %vm730, %v1888, 0
    %1914 = vmatpush.bf16.msra.mxu0 0
    %1915 = vmatpush.bf16.msra.mxu0 0
    %1916 = vmatpush.bf16.msra.mxu0 0
    %1917 = vmatpush.bf16.msra.mxu0 0
    %1918 = vmatpush.bf16.msra.mxu0 0
    %1919 = vmatpush.bf16.msra.mxu0 0
    %1920 = vmatpush.bf16.msra.mxu0 0
    %1921 = vmatpush.bf16.msra.mxu0 %v1912
    %1922 = vmatmul.bf16.gmra.mxu0 %v1909
    %v1923 = vpop.f32.mrf.mxu0
    %v1924 = vadd.f32 0.0, %v1923
    %v1925 = vpop.f32.mrf.mxu0
    %1926 = vdwg.mxu0
    %v1927 = vpack.c.bf16 %v1828, %v1809
    %v1928 = vpack.c.bf16 %v1924, %v1905
    %s1929 = scalar_lea.vmem [#allocation11], 128
    %v1930 = vld [vmem:[%s1929] sm:$0xf]
    %v1931 = vld [vmem:[%s1929 + $0x4] sm:$0xf]
    %v1932 = vld [vmem:[%s1929 + $0x8] sm:$0xf]
    %v1933 = vld [vmem:[%s1929 + $0xc] sm:$0xf]
    %v1934 = vld [vmem:[%s1929 + $0x10] sm:$0xf]
    %v1935 = vld [vmem:[%s1929 + $0x14] sm:$0xf]
    %v1936 = vld [vmem:[%s1929 + $0x18] sm:$0xf]
    %v1937 = vld [vmem:[%s1929 + $0x1c] sm:$0xf]
    %v1938 = vld [vmem:[%s1929 + $0x20] sm:$0xf]
    %v1939 = vld [vmem:[%s1929 + $0x24] sm:$0xf]
    %v1940 = vld [vmem:[%s1929 + $0x28] sm:$0xf]
    %v1941 = vld [vmem:[%s1929 + $0x2c] sm:$0xf]
    %v1942 = vld [vmem:[%s1929 + $0x30] sm:$0xf]
    %v1943 = vld [vmem:[%s1929 + $0x34] sm:$0xf]
    %v1944 = vld [vmem:[%s1929 + $0x38] sm:$0xf]
    %v1945 = vld [vmem:[%s1929 + $0x3c] sm:$0xf]
    %v1946 = vld [vmem:[%s1929 + $0x40] sm:$0xf]
    %v1947 = vld [vmem:[%s1929 + $0x44] sm:$0xf]
    %v1948 = vld [vmem:[%s1929 + $0x48] sm:$0xf]
    %v1949 = vld [vmem:[%s1929 + $0x4c] sm:$0xf]
    %v1950 = vld [vmem:[%s1929 + $0x50] sm:$0xf]
    %v1951 = vld [vmem:[%s1929 + $0x54] sm:$0xf]
    %v1952 = vld [vmem:[%s1929 + $0x58] sm:$0xf]
    %v1953 = vld [vmem:[%s1929 + $0x5c] sm:$0xf]
    %v1954 = vld [vmem:[%s1929 + $0x60] sm:$0xf]
    %v1955 = vld [vmem:[%s1929 + $0x64] sm:$0xf]
    %v1956 = vld [vmem:[%s1929 + $0x68] sm:$0xf]
    %v1957 = vld [vmem:[%s1929 + $0x6c] sm:$0xf]
    %v1958 = vld [vmem:[%s1929 + $0x70] sm:$0xf]
    %v1959 = vld [vmem:[%s1929 + $0x74] sm:$0xf]
    %v1960 = vld [vmem:[%s1929 + $0x78] sm:$0xf]
    %v1961 = vld [vmem:[%s1929 + $0x7c] sm:$0xf]
    %s1962 = scalar_lea.vmem %s6, 1
    %v1963 = vld [vmem:[%s1962] sm:$0x1]
    %v1965 = vperm.slane %v1963, 0
    %v1999 = vunpack.c.l.b16 %v1930
    %v2000 = vunpack.c.l.b16 %v1931
    %v2001 = vunpack.c.l.b16 %v1932
    %v2002 = vunpack.c.l.b16 %v1933
    %v2003 = vunpack.c.l.b16 %v1934
    %v2004 = vunpack.c.l.b16 %v1935
    %v2005 = vunpack.c.l.b16 %v1936
    %v2006 = vunpack.c.l.b16 %v1937
    %v2007 = vunpack.c.l.b16 %v1938
    %v2008 = vunpack.c.l.b16 %v1939
    %v2009 = vunpack.c.l.b16 %v1940
    %v2010 = vunpack.c.l.b16 %v1941
    %v2011 = vunpack.c.l.b16 %v1942
    %v2012 = vunpack.c.l.b16 %v1943
    %v2013 = vunpack.c.l.b16 %v1944
    %v2014 = vunpack.c.l.b16 %v1945
    %v2015 = vunpack.c.l.b16 %v1946
    %v2016 = vunpack.c.l.b16 %v1947
    %v2017 = vunpack.c.l.b16 %v1948
    %v2018 = vunpack.c.l.b16 %v1949
    %v2019 = vunpack.c.l.b16 %v1950
    %v2020 = vunpack.c.l.b16 %v1951
    %v2021 = vunpack.c.l.b16 %v1952
    %v2022 = vunpack.c.l.b16 %v1953
    %v2023 = vunpack.c.l.b16 %v1954
    %v2024 = vunpack.c.l.b16 %v1955
    %v2025 = vunpack.c.l.b16 %v1956
    %v2026 = vunpack.c.l.b16 %v1957
    %v2027 = vunpack.c.l.b16 %v1958
    %v2028 = vunpack.c.l.b16 %v1959
    %v2029 = vunpack.c.l.b16 %v1960
    %v2030 = vunpack.c.l.b16 %v1961
    %v2031 = vpack.c.b16 %v2000, %v1999
    %v2032 = vpack.c.b16 %v2002, %v2001
    %v2033 = vpack.c.b16 %v2004, %v2003
    %v2034 = vpack.c.b16 %v2006, %v2005
    %v2035 = vpack.c.b16 %v2008, %v2007
    %v2036 = vpack.c.b16 %v2010, %v2009
    %v2037 = vpack.c.b16 %v2012, %v2011
    %v2038 = vpack.c.b16 %v2014, %v2013
    %v2039 = vpack.c.b16 %v2016, %v2015
    %v2040 = vpack.c.b16 %v2018, %v2017
    %v2041 = vpack.c.b16 %v2020, %v2019
    %v2042 = vpack.c.b16 %v2022, %v2021
    %v2043 = vpack.c.b16 %v2024, %v2023
    %v2044 = vpack.c.b16 %v2026, %v2025
    %v2045 = vpack.c.b16 %v2028, %v2027
    %v2046 = vpack.c.b16 %v2030, %v2029
    %2063 = vmatpush.bf16.msra.mxu0 %v2038
    %2064 = vmatpush.bf16.msra.mxu0 %v2037
    %2065 = vmatpush.bf16.msra.mxu0 %v2036
    %2066 = vmatpush.bf16.msra.mxu0 %v2035
    %2067 = vmatpush.bf16.msra.mxu0 %v2034
    %2068 = vmatpush.bf16.msra.mxu0 %v2033
    %2069 = vmatpush.bf16.msra.mxu0 %v2032
    %2070 = vmatpush.bf16.msra.mxu0 %v2031
    %2071 = vmatmul.bf16.gmra.mxu0 %v1927
    %v2072 = vpop.f32.mrf.mxu0
    %v2073 = vadd.f32 %v1965, %v2072
    %v2074 = vpop.f32.mrf.mxu0
    %v2075 = vadd.f32 %v1965, %v2074
    %2076 = vdwg.mxu0
    %2077 = vmatpush.bf16.msra.mxu0 %v2046
    %2078 = vmatpush.bf16.msra.mxu0 %v2045
    %2079 = vmatpush.bf16.msra.mxu0 %v2044
    %2080 = vmatpush.bf16.msra.mxu0 %v2043
    %2081 = vmatpush.bf16.msra.mxu0 %v2042
    %2082 = vmatpush.bf16.msra.mxu0 %v2041
    %2083 = vmatpush.bf16.msra.mxu0 %v2040
    %2084 = vmatpush.bf16.msra.mxu0 %v2039
    %2085 = vmatmul.bf16.gmra.mxu0 %v1928
    %v2086 = vpop.f32.mrf.mxu0
    %v2087 = vadd.f32 %v2073, %v2086
    %v2088 = vpop.f32.mrf.mxu0
    %v2089 = vadd.f32 %v2075, %v2088
    %2090 = vdwg.mxu0
    %v2091 = vadd.f32 %v1288, %v2087
    %v2092 = vadd.f32 %v1289, %v2089
    %s2093 = scalar_lea.vmem %s7, 1
    %v2094 = vld [vmem:[%s2093] sm:$0x1]
    %s2095 = scalar_lea.vmem %s8, 1
    %v2096 = vld [vmem:[%s2095] sm:$0x1]
    %2097 = vadd.xlane.f32.xlu0 %v2091
    %v2098 = vpop.xlane.xlu0 %2097
    %2099 = vadd.xlane.f32.xlu0 %v2092
    %v2100 = vpop.xlane.xlu0 %2099
    %v2101 = vmul.f32 %v2098, 0.03125
    %v2102 = vmul.f32 %v2100, 0.03125
    %v2103 = vsub.f32 %v2091, %v2101
    %v2104 = vsub.f32 %v2092, %v2102
    %v2105 = vmul.f32 %v2103, %v224
    %v2106 = vmul.f32 %v2104, %v224
    %v2107 = vmul.f32 %v2105, %v2105
    %v2108 = vmul.f32 %v2106, %v2106
    %2109 = vadd.xlane.f32.xlu0 %v2107
    %v2110 = vpop.xlane.xlu0 %2109
    %2111 = vadd.xlane.f32.xlu0 %v2108
    %v2112 = vpop.xlane.xlu0 %2111
    %v2113 = vmul.f32 %v2110, 0.03125
    %v2114 = vmul.f32 %v2112, 0.03125
    %v2115 = vadd.f32 %v2113, 1e-05
    %v2116 = vadd.f32 %v2114, 1e-05
    %v2117 = vrsqrt.pop %v2115
    %v2118 = vmul.f32 %v2117, %v2115
    %v2119 = vmul.f32 %v2118, %v2117
    %v2120 = vmul.f32 0.5, %v2119
    %v2121 = vsub.f32 1.5, %v2120
    %v2122 = vmul.f32 %v2117, %v2121
    %vm2123 = vweird.f32 %v2115
    %vm2124 = vweird.f32 %v2117
    %vm2125 = vmor %vm2123, %vm2124
    %v2126 = vsel %vm2125, %v2117, %v2122
    %v2127 = vrsqrt.pop %v2116
    %v2128 = vmul.f32 %v2127, %v2116
    %v2129 = vmul.f32 %v2128, %v2127
    %v2130 = vmul.f32 0.5, %v2129
    %v2131 = vsub.f32 1.5, %v2130
    %v2132 = vmul.f32 %v2127, %v2131
    %vm2133 = vweird.f32 %v2116
    %vm2134 = vweird.f32 %v2127
    %vm2135 = vmor %vm2133, %vm2134
    %v2136 = vsel %vm2135, %v2127, %v2132
    %v2137 = vmul.f32 %v2103, %v2126
    %v2138 = vmul.f32 %v2104, %v2136
    %v2140 = vperm.slane %v2094, 0
    %v2142 = vmul.f32 %v2137, %v2140
    %v2143 = vmul.f32 %v2138, %v2140
    %v2145 = vperm.slane %v2096, 0
    %v2147 = vadd.f32 %v2142, %v2145
    %v2148 = vadd.f32 %v2143, %v2145
    %v2149 = vpack.c.bf16 %v2148, %v2147
    %s2150 = scalar_lea.vmem [#allocation13], 64
    %v2151 = vld [vmem:[%s2150] sm:$0xf]
    %v2152 = vld [vmem:[%s2150 + $0x4] sm:$0xf]
    %v2153 = vld [vmem:[%s2150 + $0x8] sm:$0xf]
    %v2154 = vld [vmem:[%s2150 + $0xc] sm:$0xf]
    %v2155 = vld [vmem:[%s2150 + $0x10] sm:$0xf]
    %v2156 = vld [vmem:[%s2150 + $0x14] sm:$0xf]
    %v2157 = vld [vmem:[%s2150 + $0x18] sm:$0xf]
    %v2158 = vld [vmem:[%s2150 + $0x1c] sm:$0xf]
    %v2159 = vld [vmem:[%s2150 + $0x20] sm:$0xf]
    %v2160 = vld [vmem:[%s2150 + $0x24] sm:$0xf]
    %v2161 = vld [vmem:[%s2150 + $0x28] sm:$0xf]
    %v2162 = vld [vmem:[%s2150 + $0x2c] sm:$0xf]
    %v2163 = vld [vmem:[%s2150 + $0x30] sm:$0xf]
    %v2164 = vld [vmem:[%s2150 + $0x34] sm:$0xf]
    %v2165 = vld [vmem:[%s2150 + $0x38] sm:$0xf]
    %v2166 = vld [vmem:[%s2150 + $0x3c] sm:$0xf]
    %s2167 = scalar_lea.vmem %s10, 1
    %v2168 = vld [vmem:[%s2167] sm:$0x1]
    %v2170 = vperm.slane %v2168, 0
    %v2188 = vunpack.c.l.b16 %v2151
    %v2189 = vunpack.c.l.b16 %v2152
    %v2190 = vunpack.c.l.b16 %v2153
    %v2191 = vunpack.c.l.b16 %v2154
    %v2192 = vunpack.c.l.b16 %v2155
    %v2193 = vunpack.c.l.b16 %v2156
    %v2194 = vunpack.c.l.b16 %v2157
    %v2195 = vunpack.c.l.b16 %v2158
    %v2196 = vunpack.c.l.b16 %v2159
    %v2197 = vunpack.c.l.b16 %v2160
    %v2198 = vunpack.c.l.b16 %v2161
    %v2199 = vunpack.c.l.b16 %v2162
    %v2200 = vunpack.c.l.b16 %v2163
    %v2201 = vunpack.c.l.b16 %v2164
    %v2202 = vunpack.c.l.b16 %v2165
    %v2203 = vunpack.c.l.b16 %v2166
    %v2204 = vpack.c.b16 %v2189, %v2188
    %v2205 = vpack.c.b16 %v2191, %v2190
    %v2206 = vpack.c.b16 %v2193, %v2192
    %v2207 = vpack.c.b16 %v2195, %v2194
    %v2208 = vpack.c.b16 %v2197, %v2196
    %v2209 = vpack.c.b16 %v2199, %v2198
    %v2210 = vpack.c.b16 %v2201, %v2200
    %v2211 = vpack.c.b16 %v2203, %v2202
    %2220 = vmatpush.bf16.msra.mxu0 %v2211
    %2221 = vmatpush.bf16.msra.mxu0 %v2210
    %2222 = vmatpush.bf16.msra.mxu0 %v2209
    %2223 = vmatpush.bf16.msra.mxu0 %v2208
    %2224 = vmatpush.bf16.msra.mxu0 %v2207
    %2225 = vmatpush.bf16.msra.mxu0 %v2206
    %2226 = vmatpush.bf16.msra.mxu0 %v2205
    %2227 = vmatpush.bf16.msra.mxu0 %v2204
    %2228 = vmatmul.bf16.gmra.mxu0 %v2149
    %v2229 = vpop.f32.mrf.mxu0
    %v2230 = vadd.f32 %v2170, %v2229
    %v2231 = vpop.f32.mrf.mxu0
    %v2232 = vadd.f32 %v2170, %v2231
    %2233 = vdwg.mxu0
    %v2234 = vxor.u32 %v2230, 2147483648
    %v2235 = vxor.u32 %v2232, 2147483648
    %v2236 = vmul.f32 %v2234, 1.442695
    %v2237 = vpow.pop %v2236
    %v2238 = vmul.f32 %v2235, 1.442695
    %v2239 = vpow.pop %v2238
    %v2240 = vadd.f32 %v2237, 1.0
    %v2241 = vadd.f32 %v2239, 1.0
    %v2242 = vrcp.pop %v2240
    %v2243 = vmul.f32 %v2240, %v2242
    %v2244 = vsub.f32 1.0, %v2243
    %v2245 = vmul.f32 %v2242, %v2244
    %v2246 = vadd.f32 %v2242, %v2245
    %vm2247 = vweird.f32 %v2240
    %vm2248 = vweird.f32 %v2242
    %vm2249 = vmor %vm2247, %vm2248
    %v2250 = vsel %vm2249, %v2242, %v2246
    %v2251 = vand.u32 2147483647, %v2240
    %vm2252 = vcmp.eq.f32.partialorder %v2251, 8.507059e+37
    %v2253 = vand.u32 %v2240, 2147483648
    %v2254 = vor.u32 1.1754944e-38, %v2253
    %v2255 = vsel %vm2252, %v2254, %v2250
    %v2256 = vmul.f32 1.0, %v2255
    %v2257 = vrcp.pop %v2241
    %v2258 = vmul.f32 %v2241, %v2257
    %v2259 = vsub.f32 1.0, %v2258
    %v2260 = vmul.f32 %v2257, %v2259
    %v2261 = vadd.f32 %v2257, %v2260
    %vm2262 = vweird.f32 %v2241
    %vm2263 = vweird.f32 %v2257
    %vm2264 = vmor %vm2262, %vm2263
    %v2265 = vsel %vm2264, %v2257, %v2261
    %v2266 = vand.u32 2147483647, %v2241
    %vm2267 = vcmp.eq.f32.partialorder %v2266, 8.507059e+37
    %v2268 = vand.u32 %v2241, 2147483648
    %v2269 = vor.u32 1.1754944e-38, %v2268
    %v2270 = vsel %vm2267, %v2269, %v2265
    %v2271 = vmul.f32 1.0, %v2270
    %v2272 = vmul.f32 %v2230, %v2256
    %v2273 = vmul.f32 %v2232, %v2271
    %v2274 = vpack.c.bf16 %v2273, %v2272
    %s2275 = scalar_lea.vmem [#allocation14], 64
    %v2276 = vld [vmem:[%s2275] sm:$0xf]
    %v2277 = vld [vmem:[%s2275 + $0x4] sm:$0xf]
    %v2278 = vld [vmem:[%s2275 + $0x8] sm:$0xf]
    %v2279 = vld [vmem:[%s2275 + $0xc] sm:$0xf]
    %v2280 = vld [vmem:[%s2275 + $0x10] sm:$0xf]
    %v2281 = vld [vmem:[%s2275 + $0x14] sm:$0xf]
    %v2282 = vld [vmem:[%s2275 + $0x18] sm:$0xf]
    %v2283 = vld [vmem:[%s2275 + $0x1c] sm:$0xf]
    %v2284 = vld [vmem:[%s2275 + $0x20] sm:$0xf]
    %v2285 = vld [vmem:[%s2275 + $0x24] sm:$0xf]
    %v2286 = vld [vmem:[%s2275 + $0x28] sm:$0xf]
    %v2287 = vld [vmem:[%s2275 + $0x2c] sm:$0xf]
    %v2288 = vld [vmem:[%s2275 + $0x30] sm:$0xf]
    %v2289 = vld [vmem:[%s2275 + $0x34] sm:$0xf]
    %v2290 = vld [vmem:[%s2275 + $0x38] sm:$0xf]
    %v2291 = vld [vmem:[%s2275 + $0x3c] sm:$0xf]
    %v2308 = vunpack.c.l.b16 %v2276
    %v2309 = vunpack.c.l.b16 %v2277
    %v2310 = vunpack.c.l.b16 %v2278
    %v2311 = vunpack.c.l.b16 %v2279
    %v2312 = vunpack.c.l.b16 %v2280
    %v2313 = vunpack.c.l.b16 %v2281
    %v2314 = vunpack.c.l.b16 %v2282
    %v2315 = vunpack.c.l.b16 %v2283
    %v2316 = vunpack.c.l.b16 %v2284
    %v2317 = vunpack.c.l.b16 %v2285
    %v2318 = vunpack.c.l.b16 %v2286
    %v2319 = vunpack.c.l.b16 %v2287
    %v2320 = vunpack.c.l.b16 %v2288
    %v2321 = vunpack.c.l.b16 %v2289
    %v2322 = vunpack.c.l.b16 %v2290
    %v2323 = vunpack.c.l.b16 %v2291
    %v2324 = vpack.c.b16 %v2309, %v2308
    %v2325 = vpack.c.b16 %v2311, %v2310
    %v2326 = vpack.c.b16 %v2313, %v2312
    %v2327 = vpack.c.b16 %v2315, %v2314
    %v2328 = vpack.c.b16 %v2317, %v2316
    %v2329 = vpack.c.b16 %v2319, %v2318
    %v2330 = vpack.c.b16 %v2321, %v2320
    %v2331 = vpack.c.b16 %v2323, %v2322
    %2340 = vmatpush.bf16.msra.mxu0 %v2331
    %2341 = vmatpush.bf16.msra.mxu0 %v2330
    %2342 = vmatpush.bf16.msra.mxu0 %v2329
    %2343 = vmatpush.bf16.msra.mxu0 %v2328
    %2344 = vmatpush.bf16.msra.mxu0 %v2327
    %2345 = vmatpush.bf16.msra.mxu0 %v2326
    %2346 = vmatpush.bf16.msra.mxu0 %v2325
    %2347 = vmatpush.bf16.msra.mxu0 %v2324
    %2348 = vmatmul.bf16.gmra.mxu0 %v2274
    %v2349 = vpop.f32.mrf.mxu0
    %v2350 = vadd.f32 0.0, %v2349
    %v2351 = vpop.f32.mrf.mxu0
    %v2352 = vadd.f32 0.0, %v2351
    %2353 = vdwg.mxu0
    %v2354 = vadd.f32 %v2091, %v2350
    %v2355 = vadd.f32 %v2092, %v2352
    %s2356 = scalar_lea.vmem %s12, 1
    %v2357 = vld [vmem:[%s2356] sm:$0x1]
    %v2359 = vperm.slane %v2357, 0
    %v2361 = vadd.f32 %v2354, %v2359
    %v2362 = vadd.f32 %v2355, %v2359
    %v2363 = vrot.slane %v2361, 4
    %v2364 = vadd.f32 %v2361, %v2363
    %v2365 = vrot.slane %v2364, 2
    %v2366 = vadd.f32 %v2364, %v2365
    %v2367 = vrot.slane %v2366, 1
    %v2368 = vadd.f32 %v2366, %v2367
    %v2369 = vrot.slane %v2362, 4
    %v2370 = vadd.f32 %v2362, %v2369
    %v2371 = vrot.slane %v2370, 2
    %v2372 = vadd.f32 %v2370, %v2371
    %v2373 = vrot.slane %v2372, 1
    %v2374 = vadd.f32 %v2372, %v2373
    %v2375 = vrcp.pop 8.0
    %v2376 = vmul.f32 8.0, %v2375
    %v2377 = vsub.f32 1.0, %v2376
    %v2378 = vmul.f32 %v2375, %v2377
    %v2379 = vadd.f32 %v2375, %v2378
    %vm2380 = vweird.f32 %v2375
    %v2381 = vsel %vm2380, %v2375, %v2379
    %v2382 = vmul.f32 %v2368, %v2381
    %v2383 = vmul.f32 %v2374, %v2381
    %v2384 = vld [vmem:[%s13] sm:$0x1]
    %v2385 = vld [vmem:[%s14] sm:$0x1]
    %vm2388 = vcmask 1041409
    %v2389 = vsel %vm2388, %v2383, %v2382
    %vm2391 = vcmask 1041408
    %v2392 = vsel %vm2391, %v2389, 0.0
    %2393 = vadd.xlane.f32.xlu0 %v2392
    %v2394 = vpop.xlane.xlu0 %2393
    %v2395 = vmul.f32 %v2394, 0.03125
    %v2397 = vrot.slane %v2395, 1
    %v2400 = vsub.f32 %v2382, %v2395
    %v2401 = vsub.f32 %v2383, %v2397
    %v2402 = vmul.f32 %v2400, %v224
    %v2403 = vmul.f32 %v2401, %v224
    %v2404 = vmul.f32 %v2402, %v2402
    %v2405 = vmul.f32 %v2403, %v2403
    %v2408 = vrot.slane %v2405, 7
    %v2409 = vsel %vm2388, %v2408, %v2404
    %v2411 = vsel %vm2391, %v2409, 0.0
    %2412 = vadd.xlane.f32.xlu0 %v2411
    %v2413 = vpop.xlane.xlu0 %2412
    %v2414 = vmul.f32 %v2413, 0.03125
    %v2415 = vadd.f32 %v2414, 1e-05
    %v2416 = vrsqrt.pop %v2415
    %v2417 = vmul.f32 %v2416, %v2415
    %v2418 = vmul.f32 %v2417, %v2416
    %v2419 = vmul.f32 0.5, %v2418
    %v2420 = vsub.f32 1.5, %v2419
    %v2421 = vmul.f32 %v2416, %v2420
    %vm2422 = vweird.f32 %v2415
    %vm2423 = vweird.f32 %v2416
    %vm2424 = vmor %vm2422, %vm2423
    %v2425 = vsel %vm2424, %v2416, %v2421
    %v2427 = vrot.slane %v2425, 1
    %v2430 = vmul.f32 %v2400, %v2425
    %v2431 = vmul.f32 %v2401, %v2427
    %v2433 = vperm.slane %v2384, 0
    %v2435 = vmul.f32 %v2430, %v2433
    %v2436 = vmul.f32 %v2431, %v2433
    %v2438 = vperm.slane %v2385, 0
    %v2440 = vadd.f32 %v2435, %v2438
    %v2441 = vadd.f32 %v2436, %v2438
    %v2442 = vld [vmem:[#allocation16] sm:$0xff]
    %v2443 = vld [vmem:[#allocation16 + $0x8] sm:$0xff]
    %v2444 = vld [vmem:[#allocation16 + $0x10] sm:$0xff]
    %v2445 = vld [vmem:[#allocation16 + $0x18] sm:$0xff]
    %v2446 = vld [vmem:[#allocation16 + $0x20] sm:$0xff]
    %v2447 = vld [vmem:[#allocation16 + $0x28] sm:$0xff]
    %v2448 = vld [vmem:[#allocation16 + $0x30] sm:$0xff]
    %v2449 = vld [vmem:[#allocation16 + $0x38] sm:$0xff]
    %v2450 = vld [vmem:[#allocation16 + $0x40] sm:$0xff]
    %v2451 = vld [vmem:[#allocation16 + $0x48] sm:$0xff]
    %v2452 = vld [vmem:[#allocation16 + $0x50] sm:$0xff]
    %v2453 = vld [vmem:[#allocation16 + $0x58] sm:$0xff]
    %v2454 = vld [vmem:[#allocation16 + $0x60] sm:$0xff]
    %v2455 = vld [vmem:[#allocation16 + $0x68] sm:$0xff]
    %v2456 = vld [vmem:[#allocation16 + $0x70] sm:$0xff]
    %v2457 = vld [vmem:[#allocation16 + $0x78] sm:$0xff]
    %v2458 = vld [vmem:[%s16] sm:$0x1]
    %v2460 = vperm.slane %v2458, 0
    %v2464 = vrot.slane %v2441, 7
    %v2465 = vsel %vm2388, %v2464, %v2440
    %2467 = vmatpush.msra.mxu0 %v2457
    %2468 = vmatpush.msra.mxu0 %v2456
    %2469 = vmatpush.msra.mxu0 %v2455
    %2470 = vmatpush.msra.mxu0 %v2454
    %2471 = vmatpush.msra.mxu0 %v2453
    %2472 = vmatpush.msra.mxu0 %v2452
    %2473 = vmatpush.msra.mxu0 %v2451
    %2474 = vmatpush.msra.mxu0 %v2450
    %2475 = vmatpush.msra.mxu0 %v2449
    %2476 = vmatpush.msra.mxu0 %v2448
    %2477 = vmatpush.msra.mxu0 %v2447
    %2478 = vmatpush.msra.mxu0 %v2446
    %2479 = vmatpush.msra.mxu0 %v2445
    %2480 = vmatpush.msra.mxu0 %v2444
    %2481 = vmatpush.msra.mxu0 %v2443
    %2482 = vmatpush.msra.mxu0 %v2442
    %2483 = vmatmul.f32.gmra.mxu0 %v2465
    %v2484 = vpop.f32.mrf.mxu0
    %v2485 = vadd.f32 %v2460, %v2484
    %2486 = vdwg.mxu0
    %v2487 = vxor.u32 %v2485, 2147483648
    %v2488 = vmul.f32 %v2487, 1.442695
    %v2489 = vpow.pop %v2488
    %v2490 = vadd.f32 %v2489, 1.0
    %v2491 = vrcp.pop %v2490
    %v2492 = vmul.f32 %v2490, %v2491
    %v2493 = vsub.f32 1.0, %v2492
    %v2494 = vmul.f32 %v2491, %v2493
    %v2495 = vadd.f32 %v2491, %v2494
    %vm2496 = vweird.f32 %v2490
    %vm2497 = vweird.f32 %v2491
    %vm2498 = vmor %vm2496, %vm2497
    %v2499 = vsel %vm2498, %v2491, %v2495
    %v2500 = vand.u32 2147483647, %v2490
    %vm2501 = vcmp.eq.f32.partialorder %v2500, 8.507059e+37
    %v2502 = vand.u32 %v2490, 2147483648
    %v2503 = vor.u32 1.1754944e-38, %v2502
    %v2504 = vsel %vm2501, %v2503, %v2499
    %v2505 = vmul.f32 1.0, %v2504
    %v2506 = vmul.f32 %v2485, %v2505
    %v2507 = vld [vmem:[#allocation17] sm:$0xff]
    %v2508 = vld [vmem:[#allocation17 + $0x8] sm:$0xff]
    %v2509 = vld [vmem:[#allocation17 + $0x10] sm:$0xff]
    %v2510 = vld [vmem:[#allocation17 + $0x18] sm:$0xff]
    %v2511 = vld [vmem:[#allocation17 + $0x20] sm:$0xff]
    %v2512 = vld [vmem:[#allocation17 + $0x28] sm:$0xff]
    %v2513 = vld [vmem:[#allocation17 + $0x30] sm:$0xff]
    %v2514 = vld [vmem:[#allocation17 + $0x38] sm:$0xff]
    %v2515 = vld [vmem:[#allocation17 + $0x40] sm:$0xff]
    %v2516 = vld [vmem:[#allocation17 + $0x48] sm:$0xff]
    %v2517 = vld [vmem:[#allocation17 + $0x50] sm:$0xff]
    %v2518 = vld [vmem:[#allocation17 + $0x58] sm:$0xff]
    %v2519 = vld [vmem:[#allocation17 + $0x60] sm:$0xff]
    %v2520 = vld [vmem:[#allocation17 + $0x68] sm:$0xff]
    %v2521 = vld [vmem:[#allocation17 + $0x70] sm:$0xff]
    %v2522 = vld [vmem:[#allocation17 + $0x78] sm:$0xff]
    %v2523 = vld [vmem:[%s18] sm:$0x1]
    %v2525 = vperm.slane %v2523, 0
    %2527 = vmatpush.msra.mxu0 %v2522
    %2528 = vmatpush.msra.mxu0 %v2521
    %2529 = vmatpush.msra.mxu0 %v2520
    %2530 = vmatpush.msra.mxu0 %v2519
    %2531 = vmatpush.msra.mxu0 %v2518
    %2532 = vmatpush.msra.mxu0 %v2517
    %2533 = vmatpush.msra.mxu0 %v2516
    %2534 = vmatpush.msra.mxu0 %v2515
    %2535 = vmatpush.msra.mxu0 %v2514
    %2536 = vmatpush.msra.mxu0 %v2513
    %2537 = vmatpush.msra.mxu0 %v2512
    %2538 = vmatpush.msra.mxu0 %v2511
    %2539 = vmatpush.msra.mxu0 %v2510
    %2540 = vmatpush.msra.mxu0 %v2509
    %2541 = vmatpush.msra.mxu0 %v2508
    %2542 = vmatpush.msra.mxu0 %v2507
    %2543 = vmatmul.f32.gmra.mxu0 %v2506
    %v2544 = vpop.f32.mrf.mxu0
    %v2545 = vadd.f32 %v2525, %v2544
    %2546 = vdwg.mxu0
    %2547 = vst [vmem:[#allocation19] sm:$0x3] %v2545
    // Predicated region
    $region118: #{tpu_custom_call.1} parent=1 // pred_check
      _
    $region119: #{tpu_custom_call.1} parent=1 // pred_check_branch
      %2549 = sbr.rel (0) target = $region121
    $region120: #{tpu_custom_call.1} parent=1 // pred_region
      %2551 = vsyncadd [#allocation4], 0
      %s2553 = sshll.u32 [#allocation19], 4
      %s2554 = int_to_ptr.vmem [resolvable:$true] %s2553
      %s2555 = sshll.u32 %s19, 4
      %s2556 = int_to_ptr.hbm [resolvable:$true] %s2555
      %2558 = dma.vmem_to_hbm [thread:$0]  %s2554, 32, %s2556, [#allocation4]
    $region121: #{tpu_custom_call.1} parent=1 // pred_fallthru
      _
    // Predicated region
    $region122: #{tpu_custom_call.1} parent=1 // pred_check
      _
    $region123: #{tpu_custom_call.1} parent=1 // pred_check_branch
      %2560 = sbr.rel (0) target = $region125
    $region124: #{tpu_custom_call.1} parent=1 // pred_region
      %2562 = dma.done [#allocation4], 32
    $region125: #{tpu_custom_call.1} parent=1 // pred_fallthru
      _
    %2563 = vsyncpa [#allocation3], 1
    %2564 = vsyncpa [#allocation6], 1
    %2565 = vsyncpa [#allocation9], 1
    %2566 = vsyncpa [#allocation12], 1
    %2567 = vsyncpa [#allocation15], 1
    %2568 = vsyncpa [#allocation18], 1
    %2569 = vsyncpa [#allocation4], 1

</llo_original>
